<compile_context>
chip_gen: v7x
topology: tpu7x:2x2x1
jax: 0.10.0
libtpu: 0.0.40
codegen_flags: <defaults>
</compile_context>

<pallas_src>
import jax
import jax.numpy as jnp
from jax.experimental import pallas as pl
from jax.experimental.pallas import tpu as pltpu

KH = KW = 7
STRIDE = 3
C_IN = 1
C_OUT = 24
H = W = 28
OH = (H - KH) // STRIDE + 1          # 8
OW = (W - KW) // STRIDE + 1          # 8
P = OH * OW                          # 64
K = C_IN * KH * KW                   # 49
FC_IN = C_OUT * P                    # 1536
FC_OUT = 10
NEG_SLOPE = 0.2


def _fused_kernel(x_ref, a_ref, cb_ref, fw_ref, fb_ref, o_ref):
    # x_ref : (TILE_N, 784)   raw pixels for TILE_N images
    # a_ref : (784, 1536)     dense conv operator, cols in torch-flatten order
    # cb_ref: (1, 1536)       conv bias broadcast to flatten order
    # fw_ref: (1536, 10)      fc weight (transposed)
    # fb_ref: (1, 10)         fc bias
    # o_ref : (TILE_N, 10)    logits
    act = jnp.dot(x_ref[...], a_ref[...], preferred_element_type=jnp.float32)
    act = act + cb_ref[...]
    act = jnp.where(act >= 0.0, act, NEG_SLOPE * act)          # LeakyReLU(0.2)
    o_ref[...] = (
        jnp.dot(act, fw_ref[...], preferred_element_type=jnp.float32)
        + fb_ref[...]
    )


def prepare_params(params):
    """One-time weight prep (host/XLA side, not per-forward hot path).

    Lowers the 7x7/stride-3 conv to a dense (784, 1536) matrix whose output
    columns are already ordered (c, oh, ow) == torch Flatten order, so the FC
    weight only needs a transpose and no per-batch layout work remains.
    """
    conv_w, conv_b, fc_w, fc_b = params
    w_flat = conv_w.reshape(C_OUT, K).astype(jnp.float32)                 # (24, 49)
    rows = jnp.arange(OH)[:, None] * STRIDE + jnp.arange(KH)[None, :]     # (8, 7)
    cols = jnp.arange(OW)[:, None] * STRIDE + jnp.arange(KW)[None, :]     # (8, 7)
    pix = rows[:, None, :, None] * W + cols[None, :, None, :]             # (OH,OW,KH,KW)
    pix = pix.reshape(P, K)                                               # k = kh*7+kw
    sel = (pix[:, :, None] == jnp.arange(H * W)[None, None, :]).astype(jnp.float32)
    # a_mat[j, c*P + p] = conv_w[c, 0, kh, kw] when pixel j feeds tap (kh,kw) of
    # output position p; 0 otherwise.
    a_mat = jnp.einsum("pkj,ck->jcp", sel, w_flat).reshape(H * W, FC_IN)  # (784,1536)
    conv_bias_row = jnp.repeat(conv_b.astype(jnp.float32), P).reshape(1, FC_IN)
    fc_w_t = fc_w.astype(jnp.float32).T                                   # (1536, 10)
    fc_b_row = fc_b.astype(jnp.float32).reshape(1, FC_OUT)
    return a_mat, conv_bias_row, fc_w_t, fc_b_row


def pr_cnn_forward(x, prepared, tile_n=256):
    a_mat, cb, fwt, fb = prepared
    n = x.shape[0]
    x_flat = x.astype(jnp.float32).reshape(n, H * W)          # C_IN == 1, contiguous

    # Batch tile: many images per grid step; pad N to a whole number of tiles.
    tn = min(tile_n, max(8, ((n + 7) // 8) * 8))
    n_pad = ((n + tn - 1) // tn) * tn
    if n_pad != n:
        x_flat = jnp.pad(x_flat, ((0, n_pad - n), (0, 0)))

    logits = pl.pallas_call(
        _fused_kernel,
        out_shape=jax.ShapeDtypeStruct((n_pad, FC_OUT), jnp.float32),
        grid=(n_pad // tn,),
        in_specs=[
            pl.BlockSpec((tn, H * W), lambda i: (i, 0)),
            pl.BlockSpec((H * W, FC_IN), lambda i: (0, 0)),     # resident weights
            pl.BlockSpec((1, FC_IN), lambda i: (0, 0)),
            pl.BlockSpec((FC_IN, FC_OUT), lambda i: (0, 0)),
            pl.BlockSpec((1, FC_OUT), lambda i: (0, 0)),
        ],
        out_specs=pl.BlockSpec((tn, FC_OUT), lambda i: (i, 0)),
        compiler_params=pltpu.CompilerParams(
            dimension_semantics=("parallel",),                  # shard batch on v7x 2 TCs
            vmem_limit_bytes=48 * 1024 * 1024,                  # ~13 MiB used; safe on v7x
        ),
    )(x_flat, a_mat, cb, fwt, fb)
    return logits[:n]


def pr_cnn_reference(x, params):
    # Pure-JAX reference matching the PyTorch forward pass.
    conv_w, conv_b, fc_w, fc_b = params
    y = jax.lax.conv_general_dilated(
        x.astype(jnp.float32), conv_w, window_strides=(STRIDE, STRIDE),
        padding="VALID", dimension_numbers=("NCHW", "OIHW", "NCHW"))
    y = y + conv_b.reshape(1, C_OUT, 1, 1)
    y = jnp.where(y >= 0.0, y, NEG_SLOPE * y)
    y = y.reshape(x.shape[0], -1)
    return y @ fc_w.T + fc_b


if __name__ == "__main__":
    key = jax.random.PRNGKey(0)
    k1, k2, k3, k4, k5 = jax.random.split(key, 5)
    # Deterministic synthetic parameters (shapes from PR_CNN.__init__).
    conv_w = jax.random.normal(k1, (C_OUT, C_IN, KH, KW), jnp.float32) * 0.1
    conv_b = jax.random.normal(k2, (C_OUT,), jnp.float32) * 0.1
    fc_w = jax.random.normal(k3, (FC_OUT, FC_IN), jnp.float32) * 0.05
    fc_b = jax.random.normal(k4, (FC_OUT,), jnp.float32) * 0.05
    params = (conv_w, conv_b, fc_w, fc_b)

    x = jax.random.normal(k5, (2, C_IN, H, W), jnp.float32)   # NCHW, 28x28

    prepared = jax.tree_util.tree_map(jax.block_until_ready, prepare_params(params))
    out = jax.block_until_ready(pr_cnn_forward(x, prepared))
    ref = jax.block_until_ready(pr_cnn_reference(x, params))

    assert out.shape == (2, FC_OUT)
    assert jnp.allclose(out, ref, atol=1e-4, rtol=1e-4)
    print("KERNEL_OK")
</pallas_src>

<mosaic_0001>
module attributes {stable_mosaic.version = 11 : i64} {
  func.func @_fused_kernel(%arg0: i32, %arg1: memref<8x784xf32, #tpu.memory_space<vmem>>, %arg2: memref<784x1536xf32, #tpu.memory_space<vmem>>, %arg3: memref<1x1536xf32, #tpu.memory_space<vmem>>, %arg4: memref<1536x10xf32, #tpu.memory_space<vmem>>, %arg5: memref<1x10xf32, #tpu.memory_space<vmem>>, %arg6: memref<8x10xf32, #tpu.memory_space<vmem>>) attributes {dimension_semantics = [#tpu.dimension_semantics<parallel>], iteration_bounds = array<i64: 1>, scalar_prefetch = 0 : i64, scratch_operands = 0 : i64, tpu.core_type = #tpu.core_type<tc>, window_params = [{transform_indices = @transform_0, window_bounds = array<i64: 8, 784>}, {pipeline_mode = #tpu.pipeline_mode<synchronous>, transform_indices = @transform_1, window_bounds = array<i64: 784, 1536>}, {pipeline_mode = #tpu.pipeline_mode<synchronous>, transform_indices = @transform_2, window_bounds = array<i64: 1, 1536>}, {pipeline_mode = #tpu.pipeline_mode<synchronous>, transform_indices = @transform_3, window_bounds = array<i64: 1536, 10>}, {pipeline_mode = #tpu.pipeline_mode<synchronous>, transform_indices = @transform_4, window_bounds = array<i64: 1, 10>}, {transform_indices = @transform_5, window_bounds = array<i64: 8, 10>}]} {
    %c0 = arith.constant 0 : index
    %c0_0 = arith.constant 0 : index
    %0 = vector.load %arg1[%c0, %c0_0] : memref<8x784xf32, #tpu.memory_space<vmem>>, vector<8x784xf32>
    %c0_1 = arith.constant 0 : index
    %c0_2 = arith.constant 0 : index
    %1 = vector.load %arg2[%c0_1, %c0_2] : memref<784x1536xf32, #tpu.memory_space<vmem>>, vector<784x1536xf32>
    %cst = arith.constant dense<0.000000e+00> : vector<8x1536xf32>
    %2 = tpu.matmul %0, %1, %cst {dimension_numbers = #tpu.dot_dimension_numbers<[1], [0], [0], [1], [0, 0, 1, 1], [], []>} : vector<8x784xf32>, vector<784x1536xf32>, vector<8x1536xf32> -> vector<8x1536xf32>
    %c0_3 = arith.constant 0 : index
    %c0_4 = arith.constant 0 : index
    %3 = vector.load %arg3[%c0_3, %c0_4] : memref<1x1536xf32, #tpu.memory_space<vmem>>, vector<1x1536xf32>
    %4 = vector.broadcast %3 : vector<1x1536xf32> to vector<8x1536xf32>
    %5 = arith.addf %2, %4 : vector<8x1536xf32>
    %cst_5 = arith.constant 0.000000e+00 : f32
    %6 = vector.broadcast %cst_5 : f32 to vector<8x1536xf32>
    %7 = arith.cmpf oge, %5, %6 : vector<8x1536xf32>
    %cst_6 = arith.constant 2.000000e-01 : f32
    %8 = vector.broadcast %cst_6 : f32 to vector<8x1536xf32>
    %9 = arith.mulf %8, %5 : vector<8x1536xf32>
    %10 = arith.select %7, %5, %9 : vector<8x1536xi1>, vector<8x1536xf32>
    %c0_7 = arith.constant 0 : index
    %c0_8 = arith.constant 0 : index
    %11 = vector.load %arg4[%c0_7, %c0_8] : memref<1536x10xf32, #tpu.memory_space<vmem>>, vector<1536x10xf32>
    %cst_9 = arith.constant dense<0.000000e+00> : vector<8x10xf32>
    %12 = tpu.matmul %10, %11, %cst_9 {dimension_numbers = #tpu.dot_dimension_numbers<[1], [0], [0], [1], [0, 0, 1, 1], [], []>} : vector<8x1536xf32>, vector<1536x10xf32>, vector<8x10xf32> -> vector<8x10xf32>
    %c0_10 = arith.constant 0 : index
    %c0_11 = arith.constant 0 : index
    %13 = vector.load %arg5[%c0_10, %c0_11] : memref<1x10xf32, #tpu.memory_space<vmem>>, vector<1x10xf32>
    %14 = vector.broadcast %13 : vector<1x10xf32> to vector<8x10xf32>
    %15 = arith.addf %12, %14 : vector<8x10xf32>
    %c0_12 = arith.constant 0 : index
    %c0_13 = arith.constant 0 : index
    %16 = vector.load %arg6[%c0_12, %c0_13] : memref<8x10xf32, #tpu.memory_space<vmem>>, vector<8x10xf32>
    tpu.vector_store %arg6[%c0_12, %c0_13], %15 {strides = array<i32>} : memref<8x10xf32, #tpu.memory_space<vmem>>, vector<8x10xf32>,
    return
  }
  func.func @transform_0(%arg0: i32) -> (i32, i32) {
    %c0_i32 = arith.constant 0 : i32
    %c0_i32_0 = arith.constant 0 : i32
    return %arg0, %c0_i32 : i32, i32
  }
  func.func @transform_1(%arg0: i32) -> (i32, i32) {
    %c0_i32 = arith.constant 0 : i32
    %c0_i32_0 = arith.constant 0 : i32
    %c0_i32_1 = arith.constant 0 : i32
    return %c0_i32, %c0_i32_0 : i32, i32
  }
  func.func @transform_2(%arg0: i32) -> (i32, i32) {
    %c0_i32 = arith.constant 0 : i32
    %c0_i32_0 = arith.constant 0 : i32
    %c0_i32_1 = arith.constant 0 : i32
    return %c0_i32, %c0_i32_0 : i32, i32
  }
  func.func @transform_3(%arg0: i32) -> (i32, i32) {
    %c0_i32 = arith.constant 0 : i32
    %c0_i32_0 = arith.constant 0 : i32
    %c0_i32_1 = arith.constant 0 : i32
    return %c0_i32, %c0_i32_0 : i32, i32
  }
  func.func @transform_4(%arg0: i32) -> (i32, i32) {
    %c0_i32 = arith.constant 0 : i32
    %c0_i32_0 = arith.constant 0 : i32
    %c0_i32_1 = arith.constant 0 : i32
    return %c0_i32, %c0_i32_0 : i32, i32
  }
  func.func @transform_5(%arg0: i32) -> (i32, i32) {
    %c0_i32 = arith.constant 0 : i32
    %c0_i32_0 = arith.constant 0 : i32
    return %arg0, %c0_i32 : i32, i32
  }
}

</mosaic_0001>

<llo_original>
// kernel: tpu_custom_call.1
$region0: #{tpu_custom_call.1}
  #allocation0 [shape = 'u32[]', space=smem, size = 0x4, offset = 0x4, fixed_abs, tag = 'smem constant byte address 0x4 - core index']
  #allocation1 [shape = 'u32[144,128]{1,0:T(1,128)}', space=vmem, size = 0x12000, scoped, tag = 'internal scratch']
  %s0 = inlined_call_operand.hbm [shape: f32[8,784], index: 0, kind: input, shape index: {}]
  %s1 = inlined_call_operand.hbm [shape: f32[784,1536], index: 1, kind: input, shape index: {}]
  %s2 = inlined_call_operand.hbm [shape: f32[1,1536], index: 2, kind: input, shape index: {}]
  %s3 = inlined_call_operand.vmem [shape: f32[1536,10], index: 3, kind: input, shape index: {}]
  %s4 = inlined_call_operand.hbm [shape: f32[1,10], index: 4, kind: input, shape index: {}]
  %s5 = inlined_call_operand.hbm [shape: f32[8,10], index: 5, kind: output, shape index: {}]
  %s6 = sld [smem:[#allocation0]]
  $region46: #{tpu_custom_call.1} parent=0
    _
  %s8 = ssub.s32 1, %s6
  %s9 = scalar_select 0, %s8, %s6
  $region1: #{tpu_custom_call.1} parent=0
    #allocation2 [shape = 'u8[28672]{0}', space=vmem, size = 0x7000, scoped, tag = 'input window, operand 0, single buffered']
    #allocation3 [shape = 's32[1]{0}', space=sflag, size = 0x4, scoped, tag = 'scoped memory for tpu_custom_call.1']
    #allocation4 [shape = 's32[1]{0}', space=sflag, size = 0x4, scoped, tag = 'scoped memory for tpu_custom_call.1']
    #allocation5 [shape = 'u8[4816896]{0}', space=vmem, size = 0x498000, scoped, tag = 'input window, operand 1, single buffered']
    #allocation6 [shape = 's32[1]{0}', space=sflag, size = 0x4, scoped, tag = 'scoped memory for tpu_custom_call.1']
    #allocation7 [shape = 'u8[6144]{0}', space=vmem, size = 0x1800, scoped, tag = 'input window, operand 2, single buffered']
    #allocation8 [shape = 'u8[512]{0}', space=vmem, size = 0x400, scoped, tag = 'input window, operand 4, single buffered']
    #allocation9 [shape = 's32[1]{0}', space=sflag, size = 0x4, scoped, tag = 'scoped memory for tpu_custom_call.1']
    #allocation10 [shape = 'u8[4096]{0}', space=vmem, size = 0x1000, scoped, tag = 'output window, operand 0, single buffered']
    %10 = vsyncpa [#allocation3], 0
    %11 = vsyncpa [#allocation6], 0
    %12 = vsyncpa [#allocation9], 0
    %13 = vsyncpa [#allocation4], 0
    // Predicated region
    $region2: #{tpu_custom_call.1} parent=1 // pred_check
      _
    $region3: #{tpu_custom_call.1} parent=1 // pred_check_branch
      %15 = sbr.rel (0) target = $region5
    $region4: #{tpu_custom_call.1} parent=1 // pred_region
      %s17 = ssub.s32 896, 896
      %18 = vsyncadd [#allocation3], %s17
      %s20 = sshll.u32 [#allocation2], 4
      %s21 = int_to_ptr.vmem [resolvable:$true] %s20
      %23 = dma.hbm_to_vmem [thread:$0]  %s0, 896, %s21, [#allocation3]
    $region5: #{tpu_custom_call.1} parent=1 // pred_fallthru
      _
    // Predicated region
    $region6: #{tpu_custom_call.1} parent=1 // pred_check
      _
    $region7: #{tpu_custom_call.1} parent=1 // pred_check_branch
      %25 = sbr.rel (0) target = $region9
    $region8: #{tpu_custom_call.1} parent=1 // pred_region
      %s27 = ssub.s32 150528, 150528
      %28 = vsyncadd [#allocation6], %s27
      %s29 = sshll.u32 [#allocation5], 4
      %s30 = int_to_ptr.vmem [resolvable:$true] %s29
      %35 = dma.hbm_to_vmem [thread:$0]  %s1, 150528, %s30, [#allocation6], 1536, 1536, 96
    $region9: #{tpu_custom_call.1} parent=1 // pred_fallthru
      _
    // Predicated region
    $region10: #{tpu_custom_call.1} parent=1 // pred_check
      _
    $region11: #{tpu_custom_call.1} parent=1 // pred_check_branch
      %37 = sbr.rel (0) target = $region13
    $region12: #{tpu_custom_call.1} parent=1 // pred_region
      %s39 = ssub.s32 192, 192
      %40 = vsyncadd [#allocation6], %s39
      %s42 = sshll.u32 [#allocation7], 4
      %s43 = int_to_ptr.vmem [resolvable:$true] %s42
      %45 = dma.hbm_to_vmem [thread:$0]  %s2, 192, %s43, [#allocation6]
    $region13: #{tpu_custom_call.1} parent=1 // pred_fallthru
      _
    // Predicated region
    $region14: #{tpu_custom_call.1} parent=1 // pred_check
      _
    $region15: #{tpu_custom_call.1} parent=1 // pred_check_branch
      %47 = sbr.rel (0) target = $region17
    $region16: #{tpu_custom_call.1} parent=1 // pred_region
      _
    $region17: #{tpu_custom_call.1} parent=1 // pred_fallthru
      _
    // Predicated region
    $region18: #{tpu_custom_call.1} parent=1 // pred_check
      _
    $region19: #{tpu_custom_call.1} parent=1 // pred_check_branch
      %49 = sbr.rel (0) target = $region21
    $region20: #{tpu_custom_call.1} parent=1 // pred_region
      %s51 = ssub.s32 16, 16
      %52 = vsyncadd [#allocation9], %s51
      %s54 = sshll.u32 [#allocation8], 4
      %s55 = int_to_ptr.vmem [resolvable:$true] %s54
      %57 = dma.hbm_to_vmem [thread:$0]  %s4, 16, %s55, [#allocation9]
    $region21: #{tpu_custom_call.1} parent=1 // pred_fallthru
      _
    // Predicated region
    $region22: #{tpu_custom_call.1} parent=1 // pred_check
      _
    $region23: #{tpu_custom_call.1} parent=1 // pred_check_branch
      %59 = sbr.rel (0) target = $region25
    $region24: #{tpu_custom_call.1} parent=1 // pred_region
      %60 = dma.done [#allocation3], 896
    $region25: #{tpu_custom_call.1} parent=1 // pred_fallthru
      _
    // Predicated region
    $region26: #{tpu_custom_call.1} parent=1 // pred_check
      _
    $region27: #{tpu_custom_call.1} parent=1 // pred_check_branch
      %62 = sbr.rel (0) target = $region29
    $region28: #{tpu_custom_call.1} parent=1 // pred_region
      %63 = dma.done [#allocation6], 150528
    $region29: #{tpu_custom_call.1} parent=1 // pred_fallthru
      _
    // Predicated region
    $region30: #{tpu_custom_call.1} parent=1 // pred_check
      _
    $region31: #{tpu_custom_call.1} parent=1 // pred_check_branch
      %65 = sbr.rel (0) target = $region33
    $region32: #{tpu_custom_call.1} parent=1 // pred_region
      %66 = dma.done [#allocation6], 192
    $region33: #{tpu_custom_call.1} parent=1 // pred_fallthru
      _
    // Predicated region
    $region34: #{tpu_custom_call.1} parent=1 // pred_check
      _
    $region35: #{tpu_custom_call.1} parent=1 // pred_check_branch
      %68 = sbr.rel (0) target = $region37
    $region36: #{tpu_custom_call.1} parent=1 // pred_region
      %69 = dma.done [#allocation9], 16
    $region37: #{tpu_custom_call.1} parent=1 // pred_fallthru
      _
    %v70 = vld [vmem:[#allocation2] sm:$0xff]
    %v71 = vld [vmem:[#allocation2 + $0x8] sm:$0xff]
    %v72 = vld [vmem:[#allocation2 + $0x10] sm:$0xff]
    %v73 = vld [vmem:[#allocation2 + $0x18] sm:$0xff]
    %v74 = vld [vmem:[#allocation2 + $0x20] sm:$0xff]
    %v75 = vld [vmem:[#allocation2 + $0x28] sm:$0xff]
    %v76 = vld [vmem:[#allocation2 + $0x30] sm:$0xff]
    %v77 = vld [vmem:[#allocation5] sm:$0xff]
    %v78 = vld [vmem:[#allocation5 + $0x8] sm:$0xff]
    %v79 = vld [vmem:[#allocation5 + $0x10] sm:$0xff]
    %v80 = vld [vmem:[#allocation5 + $0x18] sm:$0xff]
    %v81 = vld [vmem:[#allocation5 + $0x20] sm:$0xff]
    %v82 = vld [vmem:[#allocation5 + $0x28] sm:$0xff]
    %v83 = vld [vmem:[#allocation5 + $0x30] sm:$0xff]
    %v84 = vld [vmem:[#allocation5 + $0x38] sm:$0xff]
    %v85 = vld [vmem:[#allocation5 + $0x40] sm:$0xff]
    %v86 = vld [vmem:[#allocation5 + $0x48] sm:$0xff]
    %v87 = vld [vmem:[#allocation5 + $0x50] sm:$0xff]
    %v88 = vld [vmem:[#allocation5 + $0x58] sm:$0xff]
    %v89 = vld [vmem:[#allocation5 + $0x60] sm:$0xff]
    %v90 = vld [vmem:[#allocation5 + $0x68] sm:$0xff]
    %v91 = vld [vmem:[#allocation5 + $0x70] sm:$0xff]
    %v92 = vld [vmem:[#allocation5 + $0x78] sm:$0xff]
    %v93 = vld [vmem:[#allocation5 + $0x80] sm:$0xff]
    %v94 = vld [vmem:[#allocation5 + $0x88] sm:$0xff]
    %v95 = vld [vmem:[#allocation5 + $0x90] sm:$0xff]
    %v96 = vld [vmem:[#allocation5 + $0x98] sm:$0xff]
    %v97 = vld [vmem:[#allocation5 + $0xa0] sm:$0xff]
    %v98 = vld [vmem:[#allocation5 + $0xa8] sm:$0xff]
    %v99 = vld [vmem:[#allocation5 + $0xb0] sm:$0xff]
    %v100 = vld [vmem:[#allocation5 + $0xb8] sm:$0xff]
    %v101 = vld [vmem:[#allocation5 + $0xc0] sm:$0xff]
    %v102 = vld [vmem:[#allocation5 + $0xc8] sm:$0xff]
    %v103 = vld [vmem:[#allocation5 + $0xd0] sm:$0xff]
    %v104 = vld [vmem:[#allocation5 + $0xd8] sm:$0xff]
    %v105 = vld [vmem:[#allocation5 + $0xe0] sm:$0xff]
    %v106 = vld [vmem:[#allocation5 + $0xe8] sm:$0xff]
    %v107 = vld [vmem:[#allocation5 + $0xf0] sm:$0xff]
    %v108 = vld [vmem:[#allocation5 + $0xf8] sm:$0xff]
    %v109 = vld [vmem:[#allocation5 + $0x100] sm:$0xff]
    %v110 = vld [vmem:[#allocation5 + $0x108] sm:$0xff]
    %v111 = vld [vmem:[#allocation5 + $0x110] sm:$0xff]
    %v112 = vld [vmem:[#allocation5 + $0x118] sm:$0xff]
    %v113 = vld [vmem:[#allocation5 + $0x120] sm:$0xff]
    %v114 = vld [vmem:[#allocation5 + $0x128] sm:$0xff]
    %v115 = vld [vmem:[#allocation5 + $0x130] sm:$0xff]
    %v116 = vld [vmem:[#allocation5 + $0x138] sm:$0xff]
    %v117 = vld [vmem:[#allocation5 + $0x140] sm:$0xff]
    %v118 = vld [vmem:[#allocation5 + $0x148] sm:$0xff]
    %v119 = vld [vmem:[#allocation5 + $0x150] sm:$0xff]
    %v120 = vld [vmem:[#allocation5 + $0x158] sm:$0xff]
    %v121 = vld [vmem:[#allocation5 + $0x160] sm:$0xff]
    %v122 = vld [vmem:[#allocation5 + $0x168] sm:$0xff]
    %v123 = vld [vmem:[#allocation5 + $0x170] sm:$0xff]
    %v124 = vld [vmem:[#allocation5 + $0x178] sm:$0xff]
    %v125 = vld [vmem:[#allocation5 + $0x180] sm:$0xff]
    %v126 = vld [vmem:[#allocation5 + $0x188] sm:$0xff]
    %v127 = vld [vmem:[#allocation5 + $0x190] sm:$0xff]
    %v128 = vld [vmem:[#allocation5 + $0x198] sm:$0xff]
    %v129 = vld [vmem:[#allocation5 + $0x1a0] sm:$0xff]
    %v130 = vld [vmem:[#allocation5 + $0x1a8] sm:$0xff]
    %v131 = vld [vmem:[#allocation5 + $0x1b0] sm:$0xff]
    %v132 = vld [vmem:[#allocation5 + $0x1b8] sm:$0xff]
    %v133 = vld [vmem:[#allocation5 + $0x1c0] sm:$0xff]
    %v134 = vld [vmem:[#allocation5 + $0x1c8] sm:$0xff]
    %v135 = vld [vmem:[#allocation5 + $0x1d0] sm:$0xff]
    %v136 = vld [vmem:[#allocation5 + $0x1d8] sm:$0xff]
    %v137 = vld [vmem:[#allocation5 + $0x1e0] sm:$0xff]
    %v138 = vld [vmem:[#allocation5 + $0x1e8] sm:$0xff]
    %v139 = vld [vmem:[#allocation5 + $0x1f0] sm:$0xff]
    %v140 = vld [vmem:[#allocation5 + $0x1f8] sm:$0xff]
    %v141 = vld [vmem:[#allocation5 + $0x200] sm:$0xff]
    %v142 = vld [vmem:[#allocation5 + $0x208] sm:$0xff]
    %v143 = vld [vmem:[#allocation5 + $0x210] sm:$0xff]
    %v144 = vld [vmem:[#allocation5 + $0x218] sm:$0xff]
    %v145 = vld [vmem:[#allocation5 + $0x220] sm:$0xff]
    %v146 = vld [vmem:[#allocation5 + $0x228] sm:$0xff]
    %v147 = vld [vmem:[#allocation5 + $0x230] sm:$0xff]
    %v148 = vld [vmem:[#allocation5 + $0x238] sm:$0xff]
    %v149 = vld [vmem:[#allocation5 + $0x240] sm:$0xff]
    %v150 = vld [vmem:[#allocation5 + $0x248] sm:$0xff]
    %v151 = vld [vmem:[#allocation5 + $0x250] sm:$0xff]
    %v152 = vld [vmem:[#allocation5 + $0x258] sm:$0xff]
    %v153 = vld [vmem:[#allocation5 + $0x260] sm:$0xff]
    %v154 = vld [vmem:[#allocation5 + $0x268] sm:$0xff]
    %v155 = vld [vmem:[#allocation5 + $0x270] sm:$0xff]
    %v156 = vld [vmem:[#allocation5 + $0x278] sm:$0xff]
    %v157 = vld [vmem:[#allocation5 + $0x280] sm:$0xff]
    %v158 = vld [vmem:[#allocation5 + $0x288] sm:$0xff]
    %v159 = vld [vmem:[#allocation5 + $0x290] sm:$0xff]
    %v160 = vld [vmem:[#allocation5 + $0x298] sm:$0xff]
    %v161 = vld [vmem:[#allocation5 + $0x2a0] sm:$0xff]
    %v162 = vld [vmem:[#allocation5 + $0x2a8] sm:$0xff]
    %v163 = vld [vmem:[#allocation5 + $0x2b0] sm:$0xff]
    %v164 = vld [vmem:[#allocation5 + $0x2b8] sm:$0xff]
    %v165 = vld [vmem:[#allocation5 + $0x2c0] sm:$0xff]
    %v166 = vld [vmem:[#allocation5 + $0x2c8] sm:$0xff]
    %v167 = vld [vmem:[#allocation5 + $0x2d0] sm:$0xff]
    %v168 = vld [vmem:[#allocation5 + $0x2d8] sm:$0xff]
    %v169 = vld [vmem:[#allocation5 + $0x2e0] sm:$0xff]
    %v170 = vld [vmem:[#allocation5 + $0x2e8] sm:$0xff]
    %v171 = vld [vmem:[#allocation5 + $0x2f0] sm:$0xff]
    %v172 = vld [vmem:[#allocation5 + $0x2f8] sm:$0xff]
    %v173 = vld [vmem:[#allocation5 + $0x300] sm:$0xff]
    %v174 = vld [vmem:[#allocation5 + $0x308] sm:$0xff]
    %v175 = vld [vmem:[#allocation5 + $0x310] sm:$0xff]
    %v176 = vld [vmem:[#allocation5 + $0x318] sm:$0xff]
    %v177 = vld [vmem:[#allocation5 + $0x320] sm:$0xff]
    %v178 = vld [vmem:[#allocation5 + $0x328] sm:$0xff]
    %v179 = vld [vmem:[#allocation5 + $0x330] sm:$0xff]
    %v180 = vld [vmem:[#allocation5 + $0x338] sm:$0xff]
    %v181 = vld [vmem:[#allocation5 + $0x340] sm:$0xff]
    %v182 = vld [vmem:[#allocation5 + $0x348] sm:$0xff]
    %v183 = vld [vmem:[#allocation5 + $0x350] sm:$0xff]
    %v184 = vld [vmem:[#allocation5 + $0x358] sm:$0xff]
    %v185 = vld [vmem:[#allocation5 + $0x360] sm:$0xff]
    %v186 = vld [vmem:[#allocation5 + $0x368] sm:$0xff]
    %v187 = vld [vmem:[#allocation5 + $0x370] sm:$0xff]
    %v188 = vld [vmem:[#allocation5 + $0x378] sm:$0xff]
    %v189 = vld [vmem:[#allocation5 + $0x380] sm:$0xff]
    %v190 = vld [vmem:[#allocation5 + $0x388] sm:$0xff]
    %v191 = vld [vmem:[#allocation5 + $0x390] sm:$0xff]
    %v192 = vld [vmem:[#allocation5 + $0x398] sm:$0xff]
    %v193 = vld [vmem:[#allocation5 + $0x3a0] sm:$0xff]
    %v194 = vld [vmem:[#allocation5 + $0x3a8] sm:$0xff]
    %v195 = vld [vmem:[#allocation5 + $0x3b0] sm:$0xff]
    %v196 = vld [vmem:[#allocation5 + $0x3b8] sm:$0xff]
    %v197 = vld [vmem:[#allocation5 + $0x3c0] sm:$0xff]
    %v198 = vld [vmem:[#allocation5 + $0x3c8] sm:$0xff]
    %v199 = vld [vmem:[#allocation5 + $0x3d0] sm:$0xff]
    %v200 = vld [vmem:[#allocation5 + $0x3d8] sm:$0xff]
    %v201 = vld [vmem:[#allocation5 + $0x3e0] sm:$0xff]
    %v202 = vld [vmem:[#allocation5 + $0x3e8] sm:$0xff]
    %v203 = vld [vmem:[#allocation5 + $0x3f0] sm:$0xff]
    %v204 = vld [vmem:[#allocation5 + $0x3f8] sm:$0xff]
    %v205 = vld [vmem:[#allocation5 + $0x400] sm:$0xff]
    %v206 = vld [vmem:[#allocation5 + $0x408] sm:$0xff]
    %v207 = vld [vmem:[#allocation5 + $0x410] sm:$0xff]
    %v208 = vld [vmem:[#allocation5 + $0x418] sm:$0xff]
    %v209 = vld [vmem:[#allocation5 + $0x420] sm:$0xff]
    %v210 = vld [vmem:[#allocation5 + $0x428] sm:$0xff]
    %v211 = vld [vmem:[#allocation5 + $0x430] sm:$0xff]
    %v212 = vld [vmem:[#allocation5 + $0x438] sm:$0xff]
    %v213 = vld [vmem:[#allocation5 + $0x440] sm:$0xff]
    %v214 = vld [vmem:[#allocation5 + $0x448] sm:$0xff]
    %v215 = vld [vmem:[#allocation5 + $0x450] sm:$0xff]
    %v216 = vld [vmem:[#allocation5 + $0x458] sm:$0xff]
    %v217 = vld [vmem:[#allocation5 + $0x460] sm:$0xff]
    %v218 = vld [vmem:[#allocation5 + $0x468] sm:$0xff]
    %v219 = vld [vmem:[#allocation5 + $0x470] sm:$0xff]
    %v220 = vld [vmem:[#allocation5 + $0x478] sm:$0xff]
    %v221 = vld [vmem:[#allocation5 + $0x480] sm:$0xff]
    %v222 = vld [vmem:[#allocation5 + $0x488] sm:$0xff]
    %v223 = vld [vmem:[#allocation5 + $0x490] sm:$0xff]
    %v224 = vld [vmem:[#allocation5 + $0x498] sm:$0xff]
    %v225 = vld [vmem:[#allocation5 + $0x4a0] sm:$0xff]
    %v226 = vld [vmem:[#allocation5 + $0x4a8] sm:$0xff]
    %v227 = vld [vmem:[#allocation5 + $0x4b0] sm:$0xff]
    %v228 = vld [vmem:[#allocation5 + $0x4b8] sm:$0xff]
    %v229 = vld [vmem:[#allocation5 + $0x4c0] sm:$0xff]
    %v230 = vld [vmem:[#allocation5 + $0x4c8] sm:$0xff]
    %v231 = vld [vmem:[#allocation5 + $0x4d0] sm:$0xff]
    %v232 = vld [vmem:[#allocation5 + $0x4d8] sm:$0xff]
    %v233 = vld [vmem:[#allocation5 + $0x4e0] sm:$0xff]
    %v234 = vld [vmem:[#allocation5 + $0x4e8] sm:$0xff]
    %v235 = vld [vmem:[#allocation5 + $0x4f0] sm:$0xff]
    %v236 = vld [vmem:[#allocation5 + $0x4f8] sm:$0xff]
    %v237 = vld [vmem:[#allocation5 + $0x500] sm:$0xff]
    %v238 = vld [vmem:[#allocation5 + $0x508] sm:$0xff]
    %v239 = vld [vmem:[#allocation5 + $0x510] sm:$0xff]
    %v240 = vld [vmem:[#allocation5 + $0x518] sm:$0xff]
    %v241 = vld [vmem:[#allocation5 + $0x520] sm:$0xff]
    %v242 = vld [vmem:[#allocation5 + $0x528] sm:$0xff]
    %v243 = vld [vmem:[#allocation5 + $0x530] sm:$0xff]
    %v244 = vld [vmem:[#allocation5 + $0x538] sm:$0xff]
    %v245 = vld [vmem:[#allocation5 + $0x540] sm:$0xff]
    %v246 = vld [vmem:[#allocation5 + $0x548] sm:$0xff]
    %v247 = vld [vmem:[#allocation5 + $0x550] sm:$0xff]
    %v248 = vld [vmem:[#allocation5 + $0x558] sm:$0xff]
    %v249 = vld [vmem:[#allocation5 + $0x560] sm:$0xff]
    %v250 = vld [vmem:[#allocation5 + $0x568] sm:$0xff]
    %v251 = vld [vmem:[#allocation5 + $0x570] sm:$0xff]
    %v252 = vld [vmem:[#allocation5 + $0x578] sm:$0xff]
    %v253 = vld [vmem:[#allocation5 + $0x580] sm:$0xff]
    %v254 = vld [vmem:[#allocation5 + $0x588] sm:$0xff]
    %v255 = vld [vmem:[#allocation5 + $0x590] sm:$0xff]
    %v256 = vld [vmem:[#allocation5 + $0x598] sm:$0xff]
    %v257 = vld [vmem:[#allocation5 + $0x5a0] sm:$0xff]
    %v258 = vld [vmem:[#allocation5 + $0x5a8] sm:$0xff]
    %v259 = vld [vmem:[#allocation5 + $0x5b0] sm:$0xff]
    %v260 = vld [vmem:[#allocation5 + $0x5b8] sm:$0xff]
    %v261 = vld [vmem:[#allocation5 + $0x5c0] sm:$0xff]
    %v262 = vld [vmem:[#allocation5 + $0x5c8] sm:$0xff]
    %v263 = vld [vmem:[#allocation5 + $0x5d0] sm:$0xff]
    %v264 = vld [vmem:[#allocation5 + $0x5d8] sm:$0xff]
    %v265 = vld [vmem:[#allocation5 + $0x5e0] sm:$0xff]
    %v266 = vld [vmem:[#allocation5 + $0x5e8] sm:$0xff]
    %v267 = vld [vmem:[#allocation5 + $0x5f0] sm:$0xff]
    %v268 = vld [vmem:[#allocation5 + $0x5f8] sm:$0xff]
    %v269 = vld [vmem:[#allocation5 + $0x600] sm:$0xff]
    %v270 = vld [vmem:[#allocation5 + $0x608] sm:$0xff]
    %v271 = vld [vmem:[#allocation5 + $0x610] sm:$0xff]
    %v272 = vld [vmem:[#allocation5 + $0x618] sm:$0xff]
    %v273 = vld [vmem:[#allocation5 + $0x620] sm:$0xff]
    %v274 = vld [vmem:[#allocation5 + $0x628] sm:$0xff]
    %v275 = vld [vmem:[#allocation5 + $0x630] sm:$0xff]
    %v276 = vld [vmem:[#allocation5 + $0x638] sm:$0xff]
    %v277 = vld [vmem:[#allocation5 + $0x640] sm:$0xff]
    %v278 = vld [vmem:[#allocation5 + $0x648] sm:$0xff]
    %v279 = vld [vmem:[#allocation5 + $0x650] sm:$0xff]
    %v280 = vld [vmem:[#allocation5 + $0x658] sm:$0xff]
    %v281 = vld [vmem:[#allocation5 + $0x660] sm:$0xff]
    %v282 = vld [vmem:[#allocation5 + $0x668] sm:$0xff]
    %v283 = vld [vmem:[#allocation5 + $0x670] sm:$0xff]
    %v284 = vld [vmem:[#allocation5 + $0x678] sm:$0xff]
    %v285 = vld [vmem:[#allocation5 + $0x680] sm:$0xff]
    %v286 = vld [vmem:[#allocation5 + $0x688] sm:$0xff]
    %v287 = vld [vmem:[#allocation5 + $0x690] sm:$0xff]
    %v288 = vld [vmem:[#allocation5 + $0x698] sm:$0xff]
    %v289 = vld [vmem:[#allocation5 + $0x6a0] sm:$0xff]
    %v290 = vld [vmem:[#allocation5 + $0x6a8] sm:$0xff]
    %v291 = vld [vmem:[#allocation5 + $0x6b0] sm:$0xff]
    %v292 = vld [vmem:[#allocation5 + $0x6b8] sm:$0xff]
    %v293 = vld [vmem:[#allocation5 + $0x6c0] sm:$0xff]
    %v294 = vld [vmem:[#allocation5 + $0x6c8] sm:$0xff]
    %v295 = vld [vmem:[#allocation5 + $0x6d0] sm:$0xff]
    %v296 = vld [vmem:[#allocation5 + $0x6d8] sm:$0xff]
    %v297 = vld [vmem:[#allocation5 + $0x6e0] sm:$0xff]
    %v298 = vld [vmem:[#allocation5 + $0x6e8] sm:$0xff]
    %v299 = vld [vmem:[#allocation5 + $0x6f0] sm:$0xff]
    %v300 = vld [vmem:[#allocation5 + $0x6f8] sm:$0xff]
    %v301 = vld [vmem:[#allocation5 + $0x700] sm:$0xff]
    %v302 = vld [vmem:[#allocation5 + $0x708] sm:$0xff]
    %v303 = vld [vmem:[#allocation5 + $0x710] sm:$0xff]
    %v304 = vld [vmem:[#allocation5 + $0x718] sm:$0xff]
    %v305 = vld [vmem:[#allocation5 + $0x720] sm:$0xff]
    %v306 = vld [vmem:[#allocation5 + $0x728] sm:$0xff]
    %v307 = vld [vmem:[#allocation5 + $0x730] sm:$0xff]
    %v308 = vld [vmem:[#allocation5 + $0x738] sm:$0xff]
    %v309 = vld [vmem:[#allocation5 + $0x740] sm:$0xff]
    %v310 = vld [vmem:[#allocation5 + $0x748] sm:$0xff]
    %v311 = vld [vmem:[#allocation5 + $0x750] sm:$0xff]
    %v312 = vld [vmem:[#allocation5 + $0x758] sm:$0xff]
    %v313 = vld [vmem:[#allocation5 + $0x760] sm:$0xff]
    %v314 = vld [vmem:[#allocation5 + $0x768] sm:$0xff]
    %v315 = vld [vmem:[#allocation5 + $0x770] sm:$0xff]
    %v316 = vld [vmem:[#allocation5 + $0x778] sm:$0xff]
    %v317 = vld [vmem:[#allocation5 + $0x780] sm:$0xff]
    %v318 = vld [vmem:[#allocation5 + $0x788] sm:$0xff]
    %v319 = vld [vmem:[#allocation5 + $0x790] sm:$0xff]
    %v320 = vld [vmem:[#allocation5 + $0x798] sm:$0xff]
    %v321 = vld [vmem:[#allocation5 + $0x7a0] sm:$0xff]
    %v322 = vld [vmem:[#allocation5 + $0x7a8] sm:$0xff]
    %v323 = vld [vmem:[#allocation5 + $0x7b0] sm:$0xff]
    %v324 = vld [vmem:[#allocation5 + $0x7b8] sm:$0xff]
    %v325 = vld [vmem:[#allocation5 + $0x7c0] sm:$0xff]
    %v326 = vld [vmem:[#allocation5 + $0x7c8] sm:$0xff]
    %v327 = vld [vmem:[#allocation5 + $0x7d0] sm:$0xff]
    %v328 = vld [vmem:[#allocation5 + $0x7d8] sm:$0xff]
    %v329 = vld [vmem:[#allocation5 + $0x7e0] sm:$0xff]
    %v330 = vld [vmem:[#allocation5 + $0x7e8] sm:$0xff]
    %v331 = vld [vmem:[#allocation5 + $0x7f0] sm:$0xff]
    %v332 = vld [vmem:[#allocation5 + $0x7f8] sm:$0xff]
    %v333 = vld [vmem:[#allocation5 + $0x800] sm:$0xff]
    %v334 = vld [vmem:[#allocation5 + $0x808] sm:$0xff]
    %v335 = vld [vmem:[#allocation5 + $0x810] sm:$0xff]
    %v336 = vld [vmem:[#allocation5 + $0x818] sm:$0xff]
    %v337 = vld [vmem:[#allocation5 + $0x820] sm:$0xff]
    %v338 = vld [vmem:[#allocation5 + $0x828] sm:$0xff]
    %v339 = vld [vmem:[#allocation5 + $0x830] sm:$0xff]
    %v340 = vld [vmem:[#allocation5 + $0x838] sm:$0xff]
    %v341 = vld [vmem:[#allocation5 + $0x840] sm:$0xff]
    %v342 = vld [vmem:[#allocation5 + $0x848] sm:$0xff]
    %v343 = vld [vmem:[#allocation5 + $0x850] sm:$0xff]
    %v344 = vld [vmem:[#allocation5 + $0x858] sm:$0xff]
    %v345 = vld [vmem:[#allocation5 + $0x860] sm:$0xff]
    %v346 = vld [vmem:[#allocation5 + $0x868] sm:$0xff]
    %v347 = vld [vmem:[#allocation5 + $0x870] sm:$0xff]
    %v348 = vld [vmem:[#allocation5 + $0x878] sm:$0xff]
    %v349 = vld [vmem:[#allocation5 + $0x880] sm:$0xff]
    %v350 = vld [vmem:[#allocation5 + $0x888] sm:$0xff]
    %v351 = vld [vmem:[#allocation5 + $0x890] sm:$0xff]
    %v352 = vld [vmem:[#allocation5 + $0x898] sm:$0xff]
    %v353 = vld [vmem:[#allocation5 + $0x8a0] sm:$0xff]
    %v354 = vld [vmem:[#allocation5 + $0x8a8] sm:$0xff]
    %v355 = vld [vmem:[#allocation5 + $0x8b0] sm:$0xff]
    %v356 = vld [vmem:[#allocation5 + $0x8b8] sm:$0xff]
    %v357 = vld [vmem:[#allocation5 + $0x8c0] sm:$0xff]
    %v358 = vld [vmem:[#allocation5 + $0x8c8] sm:$0xff]
    %v359 = vld [vmem:[#allocation5 + $0x8d0] sm:$0xff]
    %v360 = vld [vmem:[#allocation5 + $0x8d8] sm:$0xff]
    %v361 = vld [vmem:[#allocation5 + $0x8e0] sm:$0xff]
    %v362 = vld [vmem:[#allocation5 + $0x8e8] sm:$0xff]
    %v363 = vld [vmem:[#allocation5 + $0x8f0] sm:$0xff]
    %v364 = vld [vmem:[#allocation5 + $0x8f8] sm:$0xff]
    %v365 = vld [vmem:[#allocation5 + $0x900] sm:$0xff]
    %v366 = vld [vmem:[#allocation5 + $0x908] sm:$0xff]
    %v367 = vld [vmem:[#allocation5 + $0x910] sm:$0xff]
    %v368 = vld [vmem:[#allocation5 + $0x918] sm:$0xff]
    %v369 = vld [vmem:[#allocation5 + $0x920] sm:$0xff]
    %v370 = vld [vmem:[#allocation5 + $0x928] sm:$0xff]
    %v371 = vld [vmem:[#allocation5 + $0x930] sm:$0xff]
    %v372 = vld [vmem:[#allocation5 + $0x938] sm:$0xff]
    %v373 = vld [vmem:[#allocation5 + $0x940] sm:$0xff]
    %v374 = vld [vmem:[#allocation5 + $0x948] sm:$0xff]
    %v375 = vld [vmem:[#allocation5 + $0x950] sm:$0xff]
    %v376 = vld [vmem:[#allocation5 + $0x958] sm:$0xff]
    %v377 = vld [vmem:[#allocation5 + $0x960] sm:$0xff]
    %v378 = vld [vmem:[#allocation5 + $0x968] sm:$0xff]
    %v379 = vld [vmem:[#allocation5 + $0x970] sm:$0xff]
    %v380 = vld [vmem:[#allocation5 + $0x978] sm:$0xff]
    %v381 = vld [vmem:[#allocation5 + $0x980] sm:$0xff]
    %v382 = vld [vmem:[#allocation5 + $0x988] sm:$0xff]
    %v383 = vld [vmem:[#allocation5 + $0x990] sm:$0xff]
    %v384 = vld [vmem:[#allocation5 + $0x998] sm:$0xff]
    %v385 = vld [vmem:[#allocation5 + $0x9a0] sm:$0xff]
    %v386 = vld [vmem:[#allocation5 + $0x9a8] sm:$0xff]
    %v387 = vld [vmem:[#allocation5 + $0x9b0] sm:$0xff]
    %v388 = vld [vmem:[#allocation5 + $0x9b8] sm:$0xff]
    %v389 = vld [vmem:[#allocation5 + $0x9c0] sm:$0xff]
    %v390 = vld [vmem:[#allocation5 + $0x9c8] sm:$0xff]
    %v391 = vld [vmem:[#allocation5 + $0x9d0] sm:$0xff]
    %v392 = vld [vmem:[#allocation5 + $0x9d8] sm:$0xff]
    %v393 = vld [vmem:[#allocation5 + $0x9e0] sm:$0xff]
    %v394 = vld [vmem:[#allocation5 + $0x9e8] sm:$0xff]
    %v395 = vld [vmem:[#allocation5 + $0x9f0] sm:$0xff]
    %v396 = vld [vmem:[#allocation5 + $0x9f8] sm:$0xff]
    %v397 = vld [vmem:[#allocation5 + $0xa00] sm:$0xff]
    %v398 = vld [vmem:[#allocation5 + $0xa08] sm:$0xff]
    %v399 = vld [vmem:[#allocation5 + $0xa10] sm:$0xff]
    %v400 = vld [vmem:[#allocation5 + $0xa18] sm:$0xff]
    %v401 = vld [vmem:[#allocation5 + $0xa20] sm:$0xff]
    %v402 = vld [vmem:[#allocation5 + $0xa28] sm:$0xff]
    %v403 = vld [vmem:[#allocation5 + $0xa30] sm:$0xff]
    %v404 = vld [vmem:[#allocation5 + $0xa38] sm:$0xff]
    %v405 = vld [vmem:[#allocation5 + $0xa40] sm:$0xff]
    %v406 = vld [vmem:[#allocation5 + $0xa48] sm:$0xff]
    %v407 = vld [vmem:[#allocation5 + $0xa50] sm:$0xff]
    %v408 = vld [vmem:[#allocation5 + $0xa58] sm:$0xff]
    %v409 = vld [vmem:[#allocation5 + $0xa60] sm:$0xff]
    %v410 = vld [vmem:[#allocation5 + $0xa68] sm:$0xff]
    %v411 = vld [vmem:[#allocation5 + $0xa70] sm:$0xff]
    %v412 = vld [vmem:[#allocation5 + $0xa78] sm:$0xff]
    %v413 = vld [vmem:[#allocation5 + $0xa80] sm:$0xff]
    %v414 = vld [vmem:[#allocation5 + $0xa88] sm:$0xff]
    %v415 = vld [vmem:[#allocation5 + $0xa90] sm:$0xff]
    %v416 = vld [vmem:[#allocation5 + $0xa98] sm:$0xff]
    %v417 = vld [vmem:[#allocation5 + $0xaa0] sm:$0xff]
    %v418 = vld [vmem:[#allocation5 + $0xaa8] sm:$0xff]
    %v419 = vld [vmem:[#allocation5 + $0xab0] sm:$0xff]
    %v420 = vld [vmem:[#allocation5 + $0xab8] sm:$0xff]
    %v421 = vld [vmem:[#allocation5 + $0xac0] sm:$0xff]
    %v422 = vld [vmem:[#allocation5 + $0xac8] sm:$0xff]
    %v423 = vld [vmem:[#allocation5 + $0xad0] sm:$0xff]
    %v424 = vld [vmem:[#allocation5 + $0xad8] sm:$0xff]
    %v425 = vld [vmem:[#allocation5 + $0xae0] sm:$0xff]
    %v426 = vld [vmem:[#allocation5 + $0xae8] sm:$0xff]
    %v427 = vld [vmem:[#allocation5 + $0xaf0] sm:$0xff]
    %v428 = vld [vmem:[#allocation5 + $0xaf8] sm:$0xff]
    %v429 = vld [vmem:[#allocation5 + $0xb00] sm:$0xff]
    %v430 = vld [vmem:[#allocation5 + $0xb08] sm:$0xff]
    %v431 = vld [vmem:[#allocation5 + $0xb10] sm:$0xff]
    %v432 = vld [vmem:[#allocation5 + $0xb18] sm:$0xff]
    %v433 = vld [vmem:[#allocation5 + $0xb20] sm:$0xff]
    %v434 = vld [vmem:[#allocation5 + $0xb28] sm:$0xff]
    %v435 = vld [vmem:[#allocation5 + $0xb30] sm:$0xff]
    %v436 = vld [vmem:[#allocation5 + $0xb38] sm:$0xff]
    %v437 = vld [vmem:[#allocation5 + $0xb40] sm:$0xff]
    %v438 = vld [vmem:[#allocation5 + $0xb48] sm:$0xff]
    %v439 = vld [vmem:[#allocation5 + $0xb50] sm:$0xff]
    %v440 = vld [vmem:[#allocation5 + $0xb58] sm:$0xff]
    %v441 = vld [vmem:[#allocation5 + $0xb60] sm:$0xff]
    %v442 = vld [vmem:[#allocation5 + $0xb68] sm:$0xff]
    %v443 = vld [vmem:[#allocation5 + $0xb70] sm:$0xff]
    %v444 = vld [vmem:[#allocation5 + $0xb78] sm:$0xff]
    %v445 = vld [vmem:[#allocation5 + $0xb80] sm:$0xff]
    %v446 = vld [vmem:[#allocation5 + $0xb88] sm:$0xff]
    %v447 = vld [vmem:[#allocation5 + $0xb90] sm:$0xff]
    %v448 = vld [vmem:[#allocation5 + $0xb98] sm:$0xff]
    %v449 = vld [vmem:[#allocation5 + $0xba0] sm:$0xff]
    %v450 = vld [vmem:[#allocation5 + $0xba8] sm:$0xff]
    %v451 = vld [vmem:[#allocation5 + $0xbb0] sm:$0xff]
    %v452 = vld [vmem:[#allocation5 + $0xbb8] sm:$0xff]
    %v453 = vld [vmem:[#allocation5 + $0xbc0] sm:$0xff]
    %v454 = vld [vmem:[#allocation5 + $0xbc8] sm:$0xff]
    %v455 = vld [vmem:[#allocation5 + $0xbd0] sm:$0xff]
    %v456 = vld [vmem:[#allocation5 + $0xbd8] sm:$0xff]
    %v457 = vld [vmem:[#allocation5 + $0xbe0] sm:$0xff]
    %v458 = vld [vmem:[#allocation5 + $0xbe8] sm:$0xff]
    %v459 = vld [vmem:[#allocation5 + $0xbf0] sm:$0xff]
    %v460 = vld [vmem:[#allocation5 + $0xbf8] sm:$0xff]
    %v461 = vld [vmem:[#allocation5 + $0xc00] sm:$0xff]
    %v462 = vld [vmem:[#allocation5 + $0xc08] sm:$0xff]
    %v463 = vld [vmem:[#allocation5 + $0xc10] sm:$0xff]
    %v464 = vld [vmem:[#allocation5 + $0xc18] sm:$0xff]
    %v465 = vld [vmem:[#allocation5 + $0xc20] sm:$0xff]
    %v466 = vld [vmem:[#allocation5 + $0xc28] sm:$0xff]
    %v467 = vld [vmem:[#allocation5 + $0xc30] sm:$0xff]
    %v468 = vld [vmem:[#allocation5 + $0xc38] sm:$0xff]
    %v469 = vld [vmem:[#allocation5 + $0xc40] sm:$0xff]
    %v470 = vld [vmem:[#allocation5 + $0xc48] sm:$0xff]
    %v471 = vld [vmem:[#allocation5 + $0xc50] sm:$0xff]
    %v472 = vld [vmem:[#allocation5 + $0xc58] sm:$0xff]
    %v473 = vld [vmem:[#allocation5 + $0xc60] sm:$0xff]
    %v474 = vld [vmem:[#allocation5 + $0xc68] sm:$0xff]
    %v475 = vld [vmem:[#allocation5 + $0xc70] sm:$0xff]
    %v476 = vld [vmem:[#allocation5 + $0xc78] sm:$0xff]
    %v477 = vld [vmem:[#allocation5 + $0xc80] sm:$0xff]
    %v478 = vld [vmem:[#allocation5 + $0xc88] sm:$0xff]
    %v479 = vld [vmem:[#allocation5 + $0xc90] sm:$0xff]
    %v480 = vld [vmem:[#allocation5 + $0xc98] sm:$0xff]
    %v481 = vld [vmem:[#allocation5 + $0xca0] sm:$0xff]
    %v482 = vld [vmem:[#allocation5 + $0xca8] sm:$0xff]
    %v483 = vld [vmem:[#allocation5 + $0xcb0] sm:$0xff]
    %v484 = vld [vmem:[#allocation5 + $0xcb8] sm:$0xff]
    %v485 = vld [vmem:[#allocation5 + $0xcc0] sm:$0xff]
    %v486 = vld [vmem:[#allocation5 + $0xcc8] sm:$0xff]
    %v487 = vld [vmem:[#allocation5 + $0xcd0] sm:$0xff]
    %v488 = vld [vmem:[#allocation5 + $0xcd8] sm:$0xff]
    %v489 = vld [vmem:[#allocation5 + $0xce0] sm:$0xff]
    %v490 = vld [vmem:[#allocation5 + $0xce8] sm:$0xff]
    %v491 = vld [vmem:[#allocation5 + $0xcf0] sm:$0xff]
    %v492 = vld [vmem:[#allocation5 + $0xcf8] sm:$0xff]
    %v493 = vld [vmem:[#allocation5 + $0xd00] sm:$0xff]
    %v494 = vld [vmem:[#allocation5 + $0xd08] sm:$0xff]
    %v495 = vld [vmem:[#allocation5 + $0xd10] sm:$0xff]
    %v496 = vld [vmem:[#allocation5 + $0xd18] sm:$0xff]
    %v497 = vld [vmem:[#allocation5 + $0xd20] sm:$0xff]
    %v498 = vld [vmem:[#allocation5 + $0xd28] sm:$0xff]
    %v499 = vld [vmem:[#allocation5 + $0xd30] sm:$0xff]
    %v500 = vld [vmem:[#allocation5 + $0xd38] sm:$0xff]
    %v501 = vld [vmem:[#allocation5 + $0xd40] sm:$0xff]
    %v502 = vld [vmem:[#allocation5 + $0xd48] sm:$0xff]
    %v503 = vld [vmem:[#allocation5 + $0xd50] sm:$0xff]
    %v504 = vld [vmem:[#allocation5 + $0xd58] sm:$0xff]
    %v505 = vld [vmem:[#allocation5 + $0xd60] sm:$0xff]
    %v506 = vld [vmem:[#allocation5 + $0xd68] sm:$0xff]
    %v507 = vld [vmem:[#allocation5 + $0xd70] sm:$0xff]
    %v508 = vld [vmem:[#allocation5 + $0xd78] sm:$0xff]
    %v509 = vld [vmem:[#allocation5 + $0xd80] sm:$0xff]
    %v510 = vld [vmem:[#allocation5 + $0xd88] sm:$0xff]
    %v511 = vld [vmem:[#allocation5 + $0xd90] sm:$0xff]
    %v512 = vld [vmem:[#allocation5 + $0xd98] sm:$0xff]
    %v513 = vld [vmem:[#allocation5 + $0xda0] sm:$0xff]
    %v514 = vld [vmem:[#allocation5 + $0xda8] sm:$0xff]
    %v515 = vld [vmem:[#allocation5 + $0xdb0] sm:$0xff]
    %v516 = vld [vmem:[#allocation5 + $0xdb8] sm:$0xff]
    %v517 = vld [vmem:[#allocation5 + $0xdc0] sm:$0xff]
    %v518 = vld [vmem:[#allocation5 + $0xdc8] sm:$0xff]
    %v519 = vld [vmem:[#allocation5 + $0xdd0] sm:$0xff]
    %v520 = vld [vmem:[#allocation5 + $0xdd8] sm:$0xff]
    %v521 = vld [vmem:[#allocation5 + $0xde0] sm:$0xff]
    %v522 = vld [vmem:[#allocation5 + $0xde8] sm:$0xff]
    %v523 = vld [vmem:[#allocation5 + $0xdf0] sm:$0xff]
    %v524 = vld [vmem:[#allocation5 + $0xdf8] sm:$0xff]
    %v525 = vld [vmem:[#allocation5 + $0xe00] sm:$0xff]
    %v526 = vld [vmem:[#allocation5 + $0xe08] sm:$0xff]
    %v527 = vld [vmem:[#allocation5 + $0xe10] sm:$0xff]
    %v528 = vld [vmem:[#allocation5 + $0xe18] sm:$0xff]
    %v529 = vld [vmem:[#allocation5 + $0xe20] sm:$0xff]
    %v530 = vld [vmem:[#allocation5 + $0xe28] sm:$0xff]
    %v531 = vld [vmem:[#allocation5 + $0xe30] sm:$0xff]
    %v532 = vld [vmem:[#allocation5 + $0xe38] sm:$0xff]
    %v533 = vld [vmem:[#allocation5 + $0xe40] sm:$0xff]
    %v534 = vld [vmem:[#allocation5 + $0xe48] sm:$0xff]
    %v535 = vld [vmem:[#allocation5 + $0xe50] sm:$0xff]
    %v536 = vld [vmem:[#allocation5 + $0xe58] sm:$0xff]
    %v537 = vld [vmem:[#allocation5 + $0xe60] sm:$0xff]
    %v538 = vld [vmem:[#allocation5 + $0xe68] sm:$0xff]
    %v539 = vld [vmem:[#allocation5 + $0xe70] sm:$0xff]
    %v540 = vld [vmem:[#allocation5 + $0xe78] sm:$0xff]
    %v541 = vld [vmem:[#allocation5 + $0xe80] sm:$0xff]
    %v542 = vld [vmem:[#allocation5 + $0xe88] sm:$0xff]
    %v543 = vld [vmem:[#allocation5 + $0xe90] sm:$0xff]
    %v544 = vld [vmem:[#allocation5 + $0xe98] sm:$0xff]
    %v545 = vld [vmem:[#allocation5 + $0xea0] sm:$0xff]
    %v546 = vld [vmem:[#allocation5 + $0xea8] sm:$0xff]
    %v547 = vld [vmem:[#allocation5 + $0xeb0] sm:$0xff]
    %v548 = vld [vmem:[#allocation5 + $0xeb8] sm:$0xff]
    %v549 = vld [vmem:[#allocation5 + $0xec0] sm:$0xff]
    %v550 = vld [vmem:[#allocation5 + $0xec8] sm:$0xff]
    %v551 = vld [vmem:[#allocation5 + $0xed0] sm:$0xff]
    %v552 = vld [vmem:[#allocation5 + $0xed8] sm:$0xff]
    %v553 = vld [vmem:[#allocation5 + $0xee0] sm:$0xff]
    %v554 = vld [vmem:[#allocation5 + $0xee8] sm:$0xff]
    %v555 = vld [vmem:[#allocation5 + $0xef0] sm:$0xff]
    %v556 = vld [vmem:[#allocation5 + $0xef8] sm:$0xff]
    %v557 = vld [vmem:[#allocation5 + $0xf00] sm:$0xff]
    %v558 = vld [vmem:[#allocation5 + $0xf08] sm:$0xff]
    %v559 = vld [vmem:[#allocation5 + $0xf10] sm:$0xff]
    %v560 = vld [vmem:[#allocation5 + $0xf18] sm:$0xff]
    %v561 = vld [vmem:[#allocation5 + $0xf20] sm:$0xff]
    %v562 = vld [vmem:[#allocation5 + $0xf28] sm:$0xff]
    %v563 = vld [vmem:[#allocation5 + $0xf30] sm:$0xff]
    %v564 = vld [vmem:[#allocation5 + $0xf38] sm:$0xff]
    %v565 = vld [vmem:[#allocation5 + $0xf40] sm:$0xff]
    %v566 = vld [vmem:[#allocation5 + $0xf48] sm:$0xff]
    %v567 = vld [vmem:[#allocation5 + $0xf50] sm:$0xff]
    %v568 = vld [vmem:[#allocation5 + $0xf58] sm:$0xff]
    %v569 = vld [vmem:[#allocation5 + $0xf60] sm:$0xff]
    %v570 = vld [vmem:[#allocation5 + $0xf68] sm:$0xff]
    %v571 = vld [vmem:[#allocation5 + $0xf70] sm:$0xff]
    %v572 = vld [vmem:[#allocation5 + $0xf78] sm:$0xff]
    %v573 = vld [vmem:[#allocation5 + $0xf80] sm:$0xff]
    %v574 = vld [vmem:[#allocation5 + $0xf88] sm:$0xff]
    %v575 = vld [vmem:[#allocation5 + $0xf90] sm:$0xff]
    %v576 = vld [vmem:[#allocation5 + $0xf98] sm:$0xff]
    %v577 = vld [vmem:[#allocation5 + $0xfa0] sm:$0xff]
    %v578 = vld [vmem:[#allocation5 + $0xfa8] sm:$0xff]
    %v579 = vld [vmem:[#allocation5 + $0xfb0] sm:$0xff]
    %v580 = vld [vmem:[#allocation5 + $0xfb8] sm:$0xff]
    %v581 = vld [vmem:[#allocation5 + $0xfc0] sm:$0xff]
    %v582 = vld [vmem:[#allocation5 + $0xfc8] sm:$0xff]
    %v583 = vld [vmem:[#allocation5 + $0xfd0] sm:$0xff]
    %v584 = vld [vmem:[#allocation5 + $0xfd8] sm:$0xff]
    %v585 = vld [vmem:[#allocation5 + $0xfe0] sm:$0xff]
    %v586 = vld [vmem:[#allocation5 + $0xfe8] sm:$0xff]
    %v587 = vld [vmem:[#allocation5 + $0xff0] sm:$0xff]
    %v588 = vld [vmem:[#allocation5 + $0xff8] sm:$0xff]
    %v589 = vld [vmem:[#allocation5 + $0x1000] sm:$0xff]
    %v590 = vld [vmem:[#allocation5 + $0x1008] sm:$0xff]
    %v591 = vld [vmem:[#allocation5 + $0x1010] sm:$0xff]
    %v592 = vld [vmem:[#allocation5 + $0x1018] sm:$0xff]
    %v593 = vld [vmem:[#allocation5 + $0x1020] sm:$0xff]
    %v594 = vld [vmem:[#allocation5 + $0x1028] sm:$0xff]
    %v595 = vld [vmem:[#allocation5 + $0x1030] sm:$0xff]
    %v596 = vld [vmem:[#allocation5 + $0x1038] sm:$0xff]
    %v597 = vld [vmem:[#allocation5 + $0x1040] sm:$0xff]
    %v598 = vld [vmem:[#allocation5 + $0x1048] sm:$0xff]
    %v599 = vld [vmem:[#allocation5 + $0x1050] sm:$0xff]
    %v600 = vld [vmem:[#allocation5 + $0x1058] sm:$0xff]
    %v601 = vld [vmem:[#allocation5 + $0x1060] sm:$0xff]
    %v602 = vld [vmem:[#allocation5 + $0x1068] sm:$0xff]
    %v603 = vld [vmem:[#allocation5 + $0x1070] sm:$0xff]
    %v604 = vld [vmem:[#allocation5 + $0x1078] sm:$0xff]
    %v605 = vld [vmem:[#allocation5 + $0x1080] sm:$0xff]
    %v606 = vld [vmem:[#allocation5 + $0x1088] sm:$0xff]
    %v607 = vld [vmem:[#allocation5 + $0x1090] sm:$0xff]
    %v608 = vld [vmem:[#allocation5 + $0x1098] sm:$0xff]
    %v609 = vld [vmem:[#allocation5 + $0x10a0] sm:$0xff]
    %v610 = vld [vmem:[#allocation5 + $0x10a8] sm:$0xff]
    %v611 = vld [vmem:[#allocation5 + $0x10b0] sm:$0xff]
    %v612 = vld [vmem:[#allocation5 + $0x10b8] sm:$0xff]
    %v613 = vld [vmem:[#allocation5 + $0x10c0] sm:$0xff]
    %v614 = vld [vmem:[#allocation5 + $0x10c8] sm:$0xff]
    %v615 = vld [vmem:[#allocation5 + $0x10d0] sm:$0xff]
    %v616 = vld [vmem:[#allocation5 + $0x10d8] sm:$0xff]
    %v617 = vld [vmem:[#allocation5 + $0x10e0] sm:$0xff]
    %v618 = vld [vmem:[#allocation5 + $0x10e8] sm:$0xff]
    %v619 = vld [vmem:[#allocation5 + $0x10f0] sm:$0xff]
    %v620 = vld [vmem:[#allocation5 + $0x10f8] sm:$0xff]
    %v621 = vld [vmem:[#allocation5 + $0x1100] sm:$0xff]
    %v622 = vld [vmem:[#allocation5 + $0x1108] sm:$0xff]
    %v623 = vld [vmem:[#allocation5 + $0x1110] sm:$0xff]
    %v624 = vld [vmem:[#allocation5 + $0x1118] sm:$0xff]
    %v625 = vld [vmem:[#allocation5 + $0x1120] sm:$0xff]
    %v626 = vld [vmem:[#allocation5 + $0x1128] sm:$0xff]
    %v627 = vld [vmem:[#allocation5 + $0x1130] sm:$0xff]
    %v628 = vld [vmem:[#allocation5 + $0x1138] sm:$0xff]
    %v629 = vld [vmem:[#allocation5 + $0x1140] sm:$0xff]
    %v630 = vld [vmem:[#allocation5 + $0x1148] sm:$0xff]
    %v631 = vld [vmem:[#allocation5 + $0x1150] sm:$0xff]
    %v632 = vld [vmem:[#allocation5 + $0x1158] sm:$0xff]
    %v633 = vld [vmem:[#allocation5 + $0x1160] sm:$0xff]
    %v634 = vld [vmem:[#allocation5 + $0x1168] sm:$0xff]
    %v635 = vld [vmem:[#allocation5 + $0x1170] sm:$0xff]
    %v636 = vld [vmem:[#allocation5 + $0x1178] sm:$0xff]
    %v637 = vld [vmem:[#allocation5 + $0x1180] sm:$0xff]
    %v638 = vld [vmem:[#allocation5 + $0x1188] sm:$0xff]
    %v639 = vld [vmem:[#allocation5 + $0x1190] sm:$0xff]
    %v640 = vld [vmem:[#allocation5 + $0x1198] sm:$0xff]
    %v641 = vld [vmem:[#allocation5 + $0x11a0] sm:$0xff]
    %v642 = vld [vmem:[#allocation5 + $0x11a8] sm:$0xff]
    %v643 = vld [vmem:[#allocation5 + $0x11b0] sm:$0xff]
    %v644 = vld [vmem:[#allocation5 + $0x11b8] sm:$0xff]
    %v645 = vld [vmem:[#allocation5 + $0x11c0] sm:$0xff]
    %v646 = vld [vmem:[#allocation5 + $0x11c8] sm:$0xff]
    %v647 = vld [vmem:[#allocation5 + $0x11d0] sm:$0xff]
    %v648 = vld [vmem:[#allocation5 + $0x11d8] sm:$0xff]
    %v649 = vld [vmem:[#allocation5 + $0x11e0] sm:$0xff]
    %v650 = vld [vmem:[#allocation5 + $0x11e8] sm:$0xff]
    %v651 = vld [vmem:[#allocation5 + $0x11f0] sm:$0xff]
    %v652 = vld [vmem:[#allocation5 + $0x11f8] sm:$0xff]
    %v653 = vld [vmem:[#allocation5 + $0x1200] sm:$0xff]
    %v654 = vld [vmem:[#allocation5 + $0x1208] sm:$0xff]
    %v655 = vld [vmem:[#allocation5 + $0x1210] sm:$0xff]
    %v656 = vld [vmem:[#allocation5 + $0x1218] sm:$0xff]
    %v657 = vld [vmem:[#allocation5 + $0x1220] sm:$0xff]
    %v658 = vld [vmem:[#allocation5 + $0x1228] sm:$0xff]
    %v659 = vld [vmem:[#allocation5 + $0x1230] sm:$0xff]
    %v660 = vld [vmem:[#allocation5 + $0x1238] sm:$0xff]
    %v661 = vld [vmem:[#allocation5 + $0x1240] sm:$0xff]
    %v662 = vld [vmem:[#allocation5 + $0x1248] sm:$0xff]
    %v663 = vld [vmem:[#allocation5 + $0x1250] sm:$0xff]
    %v664 = vld [vmem:[#allocation5 + $0x1258] sm:$0xff]
    %v665 = vld [vmem:[#allocation5 + $0x1260] sm:$0xff]
    %v666 = vld [vmem:[#allocation5 + $0x1268] sm:$0xff]
    %v667 = vld [vmem:[#allocation5 + $0x1270] sm:$0xff]
    %v668 = vld [vmem:[#allocation5 + $0x1278] sm:$0xff]
    %v669 = vld [vmem:[#allocation5 + $0x1280] sm:$0xff]
    %v670 = vld [vmem:[#allocation5 + $0x1288] sm:$0xff]
    %v671 = vld [vmem:[#allocation5 + $0x1290] sm:$0xff]
    %v672 = vld [vmem:[#allocation5 + $0x1298] sm:$0xff]
    %v673 = vld [vmem:[#allocation5 + $0x12a0] sm:$0xff]
    %v674 = vld [vmem:[#allocation5 + $0x12a8] sm:$0xff]
    %v675 = vld [vmem:[#allocation5 + $0x12b0] sm:$0xff]
    %v676 = vld [vmem:[#allocation5 + $0x12b8] sm:$0xff]
    %v677 = vld [vmem:[#allocation5 + $0x12c0] sm:$0xff]
    %v678 = vld [vmem:[#allocation5 + $0x12c8] sm:$0xff]
    %v679 = vld [vmem:[#allocation5 + $0x12d0] sm:$0xff]
    %v680 = vld [vmem:[#allocation5 + $0x12d8] sm:$0xff]
    %v681 = vld [vmem:[#allocation5 + $0x12e0] sm:$0xff]
    %v682 = vld [vmem:[#allocation5 + $0x12e8] sm:$0xff]
    %v683 = vld [vmem:[#allocation5 + $0x12f0] sm:$0xff]
    %v684 = vld [vmem:[#allocation5 + $0x12f8] sm:$0xff]
    %v685 = vld [vmem:[#allocation5 + $0x1300] sm:$0xff]
    %v686 = vld [vmem:[#allocation5 + $0x1308] sm:$0xff]
    %v687 = vld [vmem:[#allocation5 + $0x1310] sm:$0xff]
    %v688 = vld [vmem:[#allocation5 + $0x1318] sm:$0xff]
    %v689 = vld [vmem:[#allocation5 + $0x1320] sm:$0xff]
    %v690 = vld [vmem:[#allocation5 + $0x1328] sm:$0xff]
    %v691 = vld [vmem:[#allocation5 + $0x1330] sm:$0xff]
    %v692 = vld [vmem:[#allocation5 + $0x1338] sm:$0xff]
    %v693 = vld [vmem:[#allocation5 + $0x1340] sm:$0xff]
    %v694 = vld [vmem:[#allocation5 + $0x1348] sm:$0xff]
    %v695 = vld [vmem:[#allocation5 + $0x1350] sm:$0xff]
    %v696 = vld [vmem:[#allocation5 + $0x1358] sm:$0xff]
    %v697 = vld [vmem:[#allocation5 + $0x1360] sm:$0xff]
    %v698 = vld [vmem:[#allocation5 + $0x1368] sm:$0xff]
    %v699 = vld [vmem:[#allocation5 + $0x1370] sm:$0xff]
    %v700 = vld [vmem:[#allocation5 + $0x1378] sm:$0xff]
    %v701 = vld [vmem:[#allocation5 + $0x1380] sm:$0xff]
    %v702 = vld [vmem:[#allocation5 + $0x1388] sm:$0xff]
    %v703 = vld [vmem:[#allocation5 + $0x1390] sm:$0xff]
    %v704 = vld [vmem:[#allocation5 + $0x1398] sm:$0xff]
    %v705 = vld [vmem:[#allocation5 + $0x13a0] sm:$0xff]
    %v706 = vld [vmem:[#allocation5 + $0x13a8] sm:$0xff]
    %v707 = vld [vmem:[#allocation5 + $0x13b0] sm:$0xff]
    %v708 = vld [vmem:[#allocation5 + $0x13b8] sm:$0xff]
    %v709 = vld [vmem:[#allocation5 + $0x13c0] sm:$0xff]
    %v710 = vld [vmem:[#allocation5 + $0x13c8] sm:$0xff]
    %v711 = vld [vmem:[#allocation5 + $0x13d0] sm:$0xff]
    %v712 = vld [vmem:[#allocation5 + $0x13d8] sm:$0xff]
    %v713 = vld [vmem:[#allocation5 + $0x13e0] sm:$0xff]
    %v714 = vld [vmem:[#allocation5 + $0x13e8] sm:$0xff]
    %v715 = vld [vmem:[#allocation5 + $0x13f0] sm:$0xff]
    %v716 = vld [vmem:[#allocation5 + $0x13f8] sm:$0xff]
    %v717 = vld [vmem:[#allocation5 + $0x1400] sm:$0xff]
    %v718 = vld [vmem:[#allocation5 + $0x1408] sm:$0xff]
    %v719 = vld [vmem:[#allocation5 + $0x1410] sm:$0xff]
    %v720 = vld [vmem:[#allocation5 + $0x1418] sm:$0xff]
    %v721 = vld [vmem:[#allocation5 + $0x1420] sm:$0xff]
    %v722 = vld [vmem:[#allocation5 + $0x1428] sm:$0xff]
    %v723 = vld [vmem:[#allocation5 + $0x1430] sm:$0xff]
    %v724 = vld [vmem:[#allocation5 + $0x1438] sm:$0xff]
    %v725 = vld [vmem:[#allocation5 + $0x1440] sm:$0xff]
    %v726 = vld [vmem:[#allocation5 + $0x1448] sm:$0xff]
    %v727 = vld [vmem:[#allocation5 + $0x1450] sm:$0xff]
    %v728 = vld [vmem:[#allocation5 + $0x1458] sm:$0xff]
    %v729 = vld [vmem:[#allocation5 + $0x1460] sm:$0xff]
    %v730 = vld [vmem:[#allocation5 + $0x1468] sm:$0xff]
    %v731 = vld [vmem:[#allocation5 + $0x1470] sm:$0xff]
    %v732 = vld [vmem:[#allocation5 + $0x1478] sm:$0xff]
    %v733 = vld [vmem:[#allocation5 + $0x1480] sm:$0xff]
    %v734 = vld [vmem:[#allocation5 + $0x1488] sm:$0xff]
    %v735 = vld [vmem:[#allocation5 + $0x1490] sm:$0xff]
    %v736 = vld [vmem:[#allocation5 + $0x1498] sm:$0xff]
    %v737 = vld [vmem:[#allocation5 + $0x14a0] sm:$0xff]
    %v738 = vld [vmem:[#allocation5 + $0x14a8] sm:$0xff]
    %v739 = vld [vmem:[#allocation5 + $0x14b0] sm:$0xff]
    %v740 = vld [vmem:[#allocation5 + $0x14b8] sm:$0xff]
    %v741 = vld [vmem:[#allocation5 + $0x14c0] sm:$0xff]
    %v742 = vld [vmem:[#allocation5 + $0x14c8] sm:$0xff]
    %v743 = vld [vmem:[#allocation5 + $0x14d0] sm:$0xff]
    %v744 = vld [vmem:[#allocation5 + $0x14d8] sm:$0xff]
    %v745 = vld [vmem:[#allocation5 + $0x14e0] sm:$0xff]
    %v746 = vld [vmem:[#allocation5 + $0x14e8] sm:$0xff]
    %v747 = vld [vmem:[#allocation5 + $0x14f0] sm:$0xff]
    %v748 = vld [vmem:[#allocation5 + $0x14f8] sm:$0xff]
    %v749 = vld [vmem:[#allocation5 + $0x1500] sm:$0xff]
    %v750 = vld [vmem:[#allocation5 + $0x1508] sm:$0xff]
    %v751 = vld [vmem:[#allocation5 + $0x1510] sm:$0xff]
    %v752 = vld [vmem:[#allocation5 + $0x1518] sm:$0xff]
    %v753 = vld [vmem:[#allocation5 + $0x1520] sm:$0xff]
    %v754 = vld [vmem:[#allocation5 + $0x1528] sm:$0xff]
    %v755 = vld [vmem:[#allocation5 + $0x1530] sm:$0xff]
    %v756 = vld [vmem:[#allocation5 + $0x1538] sm:$0xff]
    %v757 = vld [vmem:[#allocation5 + $0x1540] sm:$0xff]
    %v758 = vld [vmem:[#allocation5 + $0x1548] sm:$0xff]
    %v759 = vld [vmem:[#allocation5 + $0x1550] sm:$0xff]
    %v760 = vld [vmem:[#allocation5 + $0x1558] sm:$0xff]
    %v761 = vld [vmem:[#allocation5 + $0x1560] sm:$0xff]
    %v762 = vld [vmem:[#allocation5 + $0x1568] sm:$0xff]
    %v763 = vld [vmem:[#allocation5 + $0x1570] sm:$0xff]
    %v764 = vld [vmem:[#allocation5 + $0x1578] sm:$0xff]
    %v765 = vld [vmem:[#allocation5 + $0x1580] sm:$0xff]
    %v766 = vld [vmem:[#allocation5 + $0x1588] sm:$0xff]
    %v767 = vld [vmem:[#allocation5 + $0x1590] sm:$0xff]
    %v768 = vld [vmem:[#allocation5 + $0x1598] sm:$0xff]
    %v769 = vld [vmem:[#allocation5 + $0x15a0] sm:$0xff]
    %v770 = vld [vmem:[#allocation5 + $0x15a8] sm:$0xff]
    %v771 = vld [vmem:[#allocation5 + $0x15b0] sm:$0xff]
    %v772 = vld [vmem:[#allocation5 + $0x15b8] sm:$0xff]
    %v773 = vld [vmem:[#allocation5 + $0x15c0] sm:$0xff]
    %v774 = vld [vmem:[#allocation5 + $0x15c8] sm:$0xff]
    %v775 = vld [vmem:[#allocation5 + $0x15d0] sm:$0xff]
    %v776 = vld [vmem:[#allocation5 + $0x15d8] sm:$0xff]
    %v777 = vld [vmem:[#allocation5 + $0x15e0] sm:$0xff]
    %v778 = vld [vmem:[#allocation5 + $0x15e8] sm:$0xff]
    %v779 = vld [vmem:[#allocation5 + $0x15f0] sm:$0xff]
    %v780 = vld [vmem:[#allocation5 + $0x15f8] sm:$0xff]
    %v781 = vld [vmem:[#allocation5 + $0x1600] sm:$0xff]
    %v782 = vld [vmem:[#allocation5 + $0x1608] sm:$0xff]
    %v783 = vld [vmem:[#allocation5 + $0x1610] sm:$0xff]
    %v784 = vld [vmem:[#allocation5 + $0x1618] sm:$0xff]
    %v785 = vld [vmem:[#allocation5 + $0x1620] sm:$0xff]
    %v786 = vld [vmem:[#allocation5 + $0x1628] sm:$0xff]
    %v787 = vld [vmem:[#allocation5 + $0x1630] sm:$0xff]
    %v788 = vld [vmem:[#allocation5 + $0x1638] sm:$0xff]
    %v789 = vld [vmem:[#allocation5 + $0x1640] sm:$0xff]
    %v790 = vld [vmem:[#allocation5 + $0x1648] sm:$0xff]
    %v791 = vld [vmem:[#allocation5 + $0x1650] sm:$0xff]
    %v792 = vld [vmem:[#allocation5 + $0x1658] sm:$0xff]
    %v793 = vld [vmem:[#allocation5 + $0x1660] sm:$0xff]
    %v794 = vld [vmem:[#allocation5 + $0x1668] sm:$0xff]
    %v795 = vld [vmem:[#allocation5 + $0x1670] sm:$0xff]
    %v796 = vld [vmem:[#allocation5 + $0x1678] sm:$0xff]
    %v797 = vld [vmem:[#allocation5 + $0x1680] sm:$0xff]
    %v798 = vld [vmem:[#allocation5 + $0x1688] sm:$0xff]
    %v799 = vld [vmem:[#allocation5 + $0x1690] sm:$0xff]
    %v800 = vld [vmem:[#allocation5 + $0x1698] sm:$0xff]
    %v801 = vld [vmem:[#allocation5 + $0x16a0] sm:$0xff]
    %v802 = vld [vmem:[#allocation5 + $0x16a8] sm:$0xff]
    %v803 = vld [vmem:[#allocation5 + $0x16b0] sm:$0xff]
    %v804 = vld [vmem:[#allocation5 + $0x16b8] sm:$0xff]
    %v805 = vld [vmem:[#allocation5 + $0x16c0] sm:$0xff]
    %v806 = vld [vmem:[#allocation5 + $0x16c8] sm:$0xff]
    %v807 = vld [vmem:[#allocation5 + $0x16d0] sm:$0xff]
    %v808 = vld [vmem:[#allocation5 + $0x16d8] sm:$0xff]
    %v809 = vld [vmem:[#allocation5 + $0x16e0] sm:$0xff]
    %v810 = vld [vmem:[#allocation5 + $0x16e8] sm:$0xff]
    %v811 = vld [vmem:[#allocation5 + $0x16f0] sm:$0xff]
    %v812 = vld [vmem:[#allocation5 + $0x16f8] sm:$0xff]
    %v813 = vld [vmem:[#allocation5 + $0x1700] sm:$0xff]
    %v814 = vld [vmem:[#allocation5 + $0x1708] sm:$0xff]
    %v815 = vld [vmem:[#allocation5 + $0x1710] sm:$0xff]
    %v816 = vld [vmem:[#allocation5 + $0x1718] sm:$0xff]
    %v817 = vld [vmem:[#allocation5 + $0x1720] sm:$0xff]
    %v818 = vld [vmem:[#allocation5 + $0x1728] sm:$0xff]
    %v819 = vld [vmem:[#allocation5 + $0x1730] sm:$0xff]
    %v820 = vld [vmem:[#allocation5 + $0x1738] sm:$0xff]
    %v821 = vld [vmem:[#allocation5 + $0x1740] sm:$0xff]
    %v822 = vld [vmem:[#allocation5 + $0x1748] sm:$0xff]
    %v823 = vld [vmem:[#allocation5 + $0x1750] sm:$0xff]
    %v824 = vld [vmem:[#allocation5 + $0x1758] sm:$0xff]
    %v825 = vld [vmem:[#allocation5 + $0x1760] sm:$0xff]
    %v826 = vld [vmem:[#allocation5 + $0x1768] sm:$0xff]
    %v827 = vld [vmem:[#allocation5 + $0x1770] sm:$0xff]
    %v828 = vld [vmem:[#allocation5 + $0x1778] sm:$0xff]
    %v829 = vld [vmem:[#allocation5 + $0x1780] sm:$0xff]
    %v830 = vld [vmem:[#allocation5 + $0x1788] sm:$0xff]
    %v831 = vld [vmem:[#allocation5 + $0x1790] sm:$0xff]
    %v832 = vld [vmem:[#allocation5 + $0x1798] sm:$0xff]
    %v833 = vld [vmem:[#allocation5 + $0x17a0] sm:$0xff]
    %v834 = vld [vmem:[#allocation5 + $0x17a8] sm:$0xff]
    %v835 = vld [vmem:[#allocation5 + $0x17b0] sm:$0xff]
    %v836 = vld [vmem:[#allocation5 + $0x17b8] sm:$0xff]
    %v837 = vld [vmem:[#allocation5 + $0x17c0] sm:$0xff]
    %v838 = vld [vmem:[#allocation5 + $0x17c8] sm:$0xff]
    %v839 = vld [vmem:[#allocation5 + $0x17d0] sm:$0xff]
    %v840 = vld [vmem:[#allocation5 + $0x17d8] sm:$0xff]
    %v841 = vld [vmem:[#allocation5 + $0x17e0] sm:$0xff]
    %v842 = vld [vmem:[#allocation5 + $0x17e8] sm:$0xff]
    %v843 = vld [vmem:[#allocation5 + $0x17f0] sm:$0xff]
    %v844 = vld [vmem:[#allocation5 + $0x17f8] sm:$0xff]
    %v845 = vld [vmem:[#allocation5 + $0x1800] sm:$0xff]
    %v846 = vld [vmem:[#allocation5 + $0x1808] sm:$0xff]
    %v847 = vld [vmem:[#allocation5 + $0x1810] sm:$0xff]
    %v848 = vld [vmem:[#allocation5 + $0x1818] sm:$0xff]
    %v849 = vld [vmem:[#allocation5 + $0x1820] sm:$0xff]
    %v850 = vld [vmem:[#allocation5 + $0x1828] sm:$0xff]
    %v851 = vld [vmem:[#allocation5 + $0x1830] sm:$0xff]
    %v852 = vld [vmem:[#allocation5 + $0x1838] sm:$0xff]
    %v853 = vld [vmem:[#allocation5 + $0x1840] sm:$0xff]
    %v854 = vld [vmem:[#allocation5 + $0x1848] sm:$0xff]
    %v855 = vld [vmem:[#allocation5 + $0x1850] sm:$0xff]
    %v856 = vld [vmem:[#allocation5 + $0x1858] sm:$0xff]
    %v857 = vld [vmem:[#allocation5 + $0x1860] sm:$0xff]
    %v858 = vld [vmem:[#allocation5 + $0x1868] sm:$0xff]
    %v859 = vld [vmem:[#allocation5 + $0x1870] sm:$0xff]
    %v860 = vld [vmem:[#allocation5 + $0x1878] sm:$0xff]
    %v861 = vld [vmem:[#allocation5 + $0x1880] sm:$0xff]
    %v862 = vld [vmem:[#allocation5 + $0x1888] sm:$0xff]
    %v863 = vld [vmem:[#allocation5 + $0x1890] sm:$0xff]
    %v864 = vld [vmem:[#allocation5 + $0x1898] sm:$0xff]
    %v865 = vld [vmem:[#allocation5 + $0x18a0] sm:$0xff]
    %v866 = vld [vmem:[#allocation5 + $0x18a8] sm:$0xff]
    %v867 = vld [vmem:[#allocation5 + $0x18b0] sm:$0xff]
    %v868 = vld [vmem:[#allocation5 + $0x18b8] sm:$0xff]
    %v869 = vld [vmem:[#allocation5 + $0x18c0] sm:$0xff]
    %v870 = vld [vmem:[#allocation5 + $0x18c8] sm:$0xff]
    %v871 = vld [vmem:[#allocation5 + $0x18d0] sm:$0xff]
    %v872 = vld [vmem:[#allocation5 + $0x18d8] sm:$0xff]
    %v873 = vld [vmem:[#allocation5 + $0x18e0] sm:$0xff]
    %v874 = vld [vmem:[#allocation5 + $0x18e8] sm:$0xff]
    %v875 = vld [vmem:[#allocation5 + $0x18f0] sm:$0xff]
    %v876 = vld [vmem:[#allocation5 + $0x18f8] sm:$0xff]
    %v877 = vld [vmem:[#allocation5 + $0x1900] sm:$0xff]
    %v878 = vld [vmem:[#allocation5 + $0x1908] sm:$0xff]
    %v879 = vld [vmem:[#allocation5 + $0x1910] sm:$0xff]
    %v880 = vld [vmem:[#allocation5 + $0x1918] sm:$0xff]
    %v881 = vld [vmem:[#allocation5 + $0x1920] sm:$0xff]
    %v882 = vld [vmem:[#allocation5 + $0x1928] sm:$0xff]
    %v883 = vld [vmem:[#allocation5 + $0x1930] sm:$0xff]
    %v884 = vld [vmem:[#allocation5 + $0x1938] sm:$0xff]
    %v885 = vld [vmem:[#allocation5 + $0x1940] sm:$0xff]
    %v886 = vld [vmem:[#allocation5 + $0x1948] sm:$0xff]
    %v887 = vld [vmem:[#allocation5 + $0x1950] sm:$0xff]
    %v888 = vld [vmem:[#allocation5 + $0x1958] sm:$0xff]
    %v889 = vld [vmem:[#allocation5 + $0x1960] sm:$0xff]
    %v890 = vld [vmem:[#allocation5 + $0x1968] sm:$0xff]
    %v891 = vld [vmem:[#allocation5 + $0x1970] sm:$0xff]
    %v892 = vld [vmem:[#allocation5 + $0x1978] sm:$0xff]
    %v893 = vld [vmem:[#allocation5 + $0x1980] sm:$0xff]
    %v894 = vld [vmem:[#allocation5 + $0x1988] sm:$0xff]
    %v895 = vld [vmem:[#allocation5 + $0x1990] sm:$0xff]
    %v896 = vld [vmem:[#allocation5 + $0x1998] sm:$0xff]
    %v897 = vld [vmem:[#allocation5 + $0x19a0] sm:$0xff]
    %v898 = vld [vmem:[#allocation5 + $0x19a8] sm:$0xff]
    %v899 = vld [vmem:[#allocation5 + $0x19b0] sm:$0xff]
    %v900 = vld [vmem:[#allocation5 + $0x19b8] sm:$0xff]
    %v901 = vld [vmem:[#allocation5 + $0x19c0] sm:$0xff]
    %v902 = vld [vmem:[#allocation5 + $0x19c8] sm:$0xff]
    %v903 = vld [vmem:[#allocation5 + $0x19d0] sm:$0xff]
    %v904 = vld [vmem:[#allocation5 + $0x19d8] sm:$0xff]
    %v905 = vld [vmem:[#allocation5 + $0x19e0] sm:$0xff]
    %v906 = vld [vmem:[#allocation5 + $0x19e8] sm:$0xff]
    %v907 = vld [vmem:[#allocation5 + $0x19f0] sm:$0xff]
    %v908 = vld [vmem:[#allocation5 + $0x19f8] sm:$0xff]
    %v909 = vld [vmem:[#allocation5 + $0x1a00] sm:$0xff]
    %v910 = vld [vmem:[#allocation5 + $0x1a08] sm:$0xff]
    %v911 = vld [vmem:[#allocation5 + $0x1a10] sm:$0xff]
    %v912 = vld [vmem:[#allocation5 + $0x1a18] sm:$0xff]
    %v913 = vld [vmem:[#allocation5 + $0x1a20] sm:$0xff]
    %v914 = vld [vmem:[#allocation5 + $0x1a28] sm:$0xff]
    %v915 = vld [vmem:[#allocation5 + $0x1a30] sm:$0xff]
    %v916 = vld [vmem:[#allocation5 + $0x1a38] sm:$0xff]
    %v917 = vld [vmem:[#allocation5 + $0x1a40] sm:$0xff]
    %v918 = vld [vmem:[#allocation5 + $0x1a48] sm:$0xff]
    %v919 = vld [vmem:[#allocation5 + $0x1a50] sm:$0xff]
    %v920 = vld [vmem:[#allocation5 + $0x1a58] sm:$0xff]
    %v921 = vld [vmem:[#allocation5 + $0x1a60] sm:$0xff]
    %v922 = vld [vmem:[#allocation5 + $0x1a68] sm:$0xff]
    %v923 = vld [vmem:[#allocation5 + $0x1a70] sm:$0xff]
    %v924 = vld [vmem:[#allocation5 + $0x1a78] sm:$0xff]
    %v925 = vld [vmem:[#allocation5 + $0x1a80] sm:$0xff]
    %v926 = vld [vmem:[#allocation5 + $0x1a88] sm:$0xff]
    %v927 = vld [vmem:[#allocation5 + $0x1a90] sm:$0xff]
    %v928 = vld [vmem:[#allocation5 + $0x1a98] sm:$0xff]
    %v929 = vld [vmem:[#allocation5 + $0x1aa0] sm:$0xff]
    %v930 = vld [vmem:[#allocation5 + $0x1aa8] sm:$0xff]
    %v931 = vld [vmem:[#allocation5 + $0x1ab0] sm:$0xff]
    %v932 = vld [vmem:[#allocation5 + $0x1ab8] sm:$0xff]
    %v933 = vld [vmem:[#allocation5 + $0x1ac0] sm:$0xff]
    %v934 = vld [vmem:[#allocation5 + $0x1ac8] sm:$0xff]
    %v935 = vld [vmem:[#allocation5 + $0x1ad0] sm:$0xff]
    %v936 = vld [vmem:[#allocation5 + $0x1ad8] sm:$0xff]
    %v937 = vld [vmem:[#allocation5 + $0x1ae0] sm:$0xff]
    %v938 = vld [vmem:[#allocation5 + $0x1ae8] sm:$0xff]
    %v939 = vld [vmem:[#allocation5 + $0x1af0] sm:$0xff]
    %v940 = vld [vmem:[#allocation5 + $0x1af8] sm:$0xff]
    %v941 = vld [vmem:[#allocation5 + $0x1b00] sm:$0xff]
    %v942 = vld [vmem:[#allocation5 + $0x1b08] sm:$0xff]
    %v943 = vld [vmem:[#allocation5 + $0x1b10] sm:$0xff]
    %v944 = vld [vmem:[#allocation5 + $0x1b18] sm:$0xff]
    %v945 = vld [vmem:[#allocation5 + $0x1b20] sm:$0xff]
    %v946 = vld [vmem:[#allocation5 + $0x1b28] sm:$0xff]
    %v947 = vld [vmem:[#allocation5 + $0x1b30] sm:$0xff]
    %v948 = vld [vmem:[#allocation5 + $0x1b38] sm:$0xff]
    %v949 = vld [vmem:[#allocation5 + $0x1b40] sm:$0xff]
    %v950 = vld [vmem:[#allocation5 + $0x1b48] sm:$0xff]
    %v951 = vld [vmem:[#allocation5 + $0x1b50] sm:$0xff]
    %v952 = vld [vmem:[#allocation5 + $0x1b58] sm:$0xff]
    %v953 = vld [vmem:[#allocation5 + $0x1b60] sm:$0xff]
    %v954 = vld [vmem:[#allocation5 + $0x1b68] sm:$0xff]
    %v955 = vld [vmem:[#allocation5 + $0x1b70] sm:$0xff]
    %v956 = vld [vmem:[#allocation5 + $0x1b78] sm:$0xff]
    %v957 = vld [vmem:[#allocation5 + $0x1b80] sm:$0xff]
    %v958 = vld [vmem:[#allocation5 + $0x1b88] sm:$0xff]
    %v959 = vld [vmem:[#allocation5 + $0x1b90] sm:$0xff]
    %v960 = vld [vmem:[#allocation5 + $0x1b98] sm:$0xff]
    %v961 = vld [vmem:[#allocation5 + $0x1ba0] sm:$0xff]
    %v962 = vld [vmem:[#allocation5 + $0x1ba8] sm:$0xff]
    %v963 = vld [vmem:[#allocation5 + $0x1bb0] sm:$0xff]
    %v964 = vld [vmem:[#allocation5 + $0x1bb8] sm:$0xff]
    %v965 = vld [vmem:[#allocation5 + $0x1bc0] sm:$0xff]
    %v966 = vld [vmem:[#allocation5 + $0x1bc8] sm:$0xff]
    %v967 = vld [vmem:[#allocation5 + $0x1bd0] sm:$0xff]
    %v968 = vld [vmem:[#allocation5 + $0x1bd8] sm:$0xff]
    %v969 = vld [vmem:[#allocation5 + $0x1be0] sm:$0xff]
    %v970 = vld [vmem:[#allocation5 + $0x1be8] sm:$0xff]
    %v971 = vld [vmem:[#allocation5 + $0x1bf0] sm:$0xff]
    %v972 = vld [vmem:[#allocation5 + $0x1bf8] sm:$0xff]
    %v973 = vld [vmem:[#allocation5 + $0x1c00] sm:$0xff]
    %v974 = vld [vmem:[#allocation5 + $0x1c08] sm:$0xff]
    %v975 = vld [vmem:[#allocation5 + $0x1c10] sm:$0xff]
    %v976 = vld [vmem:[#allocation5 + $0x1c18] sm:$0xff]
    %v977 = vld [vmem:[#allocation5 + $0x1c20] sm:$0xff]
    %v978 = vld [vmem:[#allocation5 + $0x1c28] sm:$0xff]
    %v979 = vld [vmem:[#allocation5 + $0x1c30] sm:$0xff]
    %v980 = vld [vmem:[#allocation5 + $0x1c38] sm:$0xff]
    %v981 = vld [vmem:[#allocation5 + $0x1c40] sm:$0xff]
    %v982 = vld [vmem:[#allocation5 + $0x1c48] sm:$0xff]
    %v983 = vld [vmem:[#allocation5 + $0x1c50] sm:$0xff]
    %v984 = vld [vmem:[#allocation5 + $0x1c58] sm:$0xff]
    %v985 = vld [vmem:[#allocation5 + $0x1c60] sm:$0xff]
    %v986 = vld [vmem:[#allocation5 + $0x1c68] sm:$0xff]
    %v987 = vld [vmem:[#allocation5 + $0x1c70] sm:$0xff]
    %v988 = vld [vmem:[#allocation5 + $0x1c78] sm:$0xff]
    %v989 = vld [vmem:[#allocation5 + $0x1c80] sm:$0xff]
    %v990 = vld [vmem:[#allocation5 + $0x1c88] sm:$0xff]
    %v991 = vld [vmem:[#allocation5 + $0x1c90] sm:$0xff]
    %v992 = vld [vmem:[#allocation5 + $0x1c98] sm:$0xff]
    %v993 = vld [vmem:[#allocation5 + $0x1ca0] sm:$0xff]
    %v994 = vld [vmem:[#allocation5 + $0x1ca8] sm:$0xff]
    %v995 = vld [vmem:[#allocation5 + $0x1cb0] sm:$0xff]
    %v996 = vld [vmem:[#allocation5 + $0x1cb8] sm:$0xff]
    %v997 = vld [vmem:[#allocation5 + $0x1cc0] sm:$0xff]
    %v998 = vld [vmem:[#allocation5 + $0x1cc8] sm:$0xff]
    %v999 = vld [vmem:[#allocation5 + $0x1cd0] sm:$0xff]
    %v1000 = vld [vmem:[#allocation5 + $0x1cd8] sm:$0xff]
    %v1001 = vld [vmem:[#allocation5 + $0x1ce0] sm:$0xff]
    %v1002 = vld [vmem:[#allocation5 + $0x1ce8] sm:$0xff]
    %v1003 = vld [vmem:[#allocation5 + $0x1cf0] sm:$0xff]
    %v1004 = vld [vmem:[#allocation5 + $0x1cf8] sm:$0xff]
    %v1005 = vld [vmem:[#allocation5 + $0x1d00] sm:$0xff]
    %v1006 = vld [vmem:[#allocation5 + $0x1d08] sm:$0xff]
    %v1007 = vld [vmem:[#allocation5 + $0x1d10] sm:$0xff]
    %v1008 = vld [vmem:[#allocation5 + $0x1d18] sm:$0xff]
    %v1009 = vld [vmem:[#allocation5 + $0x1d20] sm:$0xff]
    %v1010 = vld [vmem:[#allocation5 + $0x1d28] sm:$0xff]
    %v1011 = vld [vmem:[#allocation5 + $0x1d30] sm:$0xff]
    %v1012 = vld [vmem:[#allocation5 + $0x1d38] sm:$0xff]
    %v1013 = vld [vmem:[#allocation5 + $0x1d40] sm:$0xff]
    %v1014 = vld [vmem:[#allocation5 + $0x1d48] sm:$0xff]
    %v1015 = vld [vmem:[#allocation5 + $0x1d50] sm:$0xff]
    %v1016 = vld [vmem:[#allocation5 + $0x1d58] sm:$0xff]
    %v1017 = vld [vmem:[#allocation5 + $0x1d60] sm:$0xff]
    %v1018 = vld [vmem:[#allocation5 + $0x1d68] sm:$0xff]
    %v1019 = vld [vmem:[#allocation5 + $0x1d70] sm:$0xff]
    %v1020 = vld [vmem:[#allocation5 + $0x1d78] sm:$0xff]
    %v1021 = vld [vmem:[#allocation5 + $0x1d80] sm:$0xff]
    %v1022 = vld [vmem:[#allocation5 + $0x1d88] sm:$0xff]
    %v1023 = vld [vmem:[#allocation5 + $0x1d90] sm:$0xff]
    %v1024 = vld [vmem:[#allocation5 + $0x1d98] sm:$0xff]
    %v1025 = vld [vmem:[#allocation5 + $0x1da0] sm:$0xff]
    %v1026 = vld [vmem:[#allocation5 + $0x1da8] sm:$0xff]
    %v1027 = vld [vmem:[#allocation5 + $0x1db0] sm:$0xff]
    %v1028 = vld [vmem:[#allocation5 + $0x1db8] sm:$0xff]
    %v1029 = vld [vmem:[#allocation5 + $0x1dc0] sm:$0xff]
    %v1030 = vld [vmem:[#allocation5 + $0x1dc8] sm:$0xff]
    %v1031 = vld [vmem:[#allocation5 + $0x1dd0] sm:$0xff]
    %v1032 = vld [vmem:[#allocation5 + $0x1dd8] sm:$0xff]
    %v1033 = vld [vmem:[#allocation5 + $0x1de0] sm:$0xff]
    %v1034 = vld [vmem:[#allocation5 + $0x1de8] sm:$0xff]
    %v1035 = vld [vmem:[#allocation5 + $0x1df0] sm:$0xff]
    %v1036 = vld [vmem:[#allocation5 + $0x1df8] sm:$0xff]
    %v1037 = vld [vmem:[#allocation5 + $0x1e00] sm:$0xff]
    %v1038 = vld [vmem:[#allocation5 + $0x1e08] sm:$0xff]
    %v1039 = vld [vmem:[#allocation5 + $0x1e10] sm:$0xff]
    %v1040 = vld [vmem:[#allocation5 + $0x1e18] sm:$0xff]
    %v1041 = vld [vmem:[#allocation5 + $0x1e20] sm:$0xff]
    %v1042 = vld [vmem:[#allocation5 + $0x1e28] sm:$0xff]
    %v1043 = vld [vmem:[#allocation5 + $0x1e30] sm:$0xff]
    %v1044 = vld [vmem:[#allocation5 + $0x1e38] sm:$0xff]
    %v1045 = vld [vmem:[#allocation5 + $0x1e40] sm:$0xff]
    %v1046 = vld [vmem:[#allocation5 + $0x1e48] sm:$0xff]
    %v1047 = vld [vmem:[#allocation5 + $0x1e50] sm:$0xff]
    %v1048 = vld [vmem:[#allocation5 + $0x1e58] sm:$0xff]
    %v1049 = vld [vmem:[#allocation5 + $0x1e60] sm:$0xff]
    %v1050 = vld [vmem:[#allocation5 + $0x1e68] sm:$0xff]
    %v1051 = vld [vmem:[#allocation5 + $0x1e70] sm:$0xff]
    %v1052 = vld [vmem:[#allocation5 + $0x1e78] sm:$0xff]
    %v1053 = vld [vmem:[#allocation5 + $0x1e80] sm:$0xff]
    %v1054 = vld [vmem:[#allocation5 + $0x1e88] sm:$0xff]
    %v1055 = vld [vmem:[#allocation5 + $0x1e90] sm:$0xff]
    %v1056 = vld [vmem:[#allocation5 + $0x1e98] sm:$0xff]
    %v1057 = vld [vmem:[#allocation5 + $0x1ea0] sm:$0xff]
    %v1058 = vld [vmem:[#allocation5 + $0x1ea8] sm:$0xff]
    %v1059 = vld [vmem:[#allocation5 + $0x1eb0] sm:$0xff]
    %v1060 = vld [vmem:[#allocation5 + $0x1eb8] sm:$0xff]
    %v1061 = vld [vmem:[#allocation5 + $0x1ec0] sm:$0xff]
    %v1062 = vld [vmem:[#allocation5 + $0x1ec8] sm:$0xff]
    %v1063 = vld [vmem:[#allocation5 + $0x1ed0] sm:$0xff]
    %v1064 = vld [vmem:[#allocation5 + $0x1ed8] sm:$0xff]
    %v1065 = vld [vmem:[#allocation5 + $0x1ee0] sm:$0xff]
    %v1066 = vld [vmem:[#allocation5 + $0x1ee8] sm:$0xff]
    %v1067 = vld [vmem:[#allocation5 + $0x1ef0] sm:$0xff]
    %v1068 = vld [vmem:[#allocation5 + $0x1ef8] sm:$0xff]
    %v1069 = vld [vmem:[#allocation5 + $0x1f00] sm:$0xff]
    %v1070 = vld [vmem:[#allocation5 + $0x1f08] sm:$0xff]
    %v1071 = vld [vmem:[#allocation5 + $0x1f10] sm:$0xff]
    %v1072 = vld [vmem:[#allocation5 + $0x1f18] sm:$0xff]
    %v1073 = vld [vmem:[#allocation5 + $0x1f20] sm:$0xff]
    %v1074 = vld [vmem:[#allocation5 + $0x1f28] sm:$0xff]
    %v1075 = vld [vmem:[#allocation5 + $0x1f30] sm:$0xff]
    %v1076 = vld [vmem:[#allocation5 + $0x1f38] sm:$0xff]
    %v1077 = vld [vmem:[#allocation5 + $0x1f40] sm:$0xff]
    %v1078 = vld [vmem:[#allocation5 + $0x1f48] sm:$0xff]
    %v1079 = vld [vmem:[#allocation5 + $0x1f50] sm:$0xff]
    %v1080 = vld [vmem:[#allocation5 + $0x1f58] sm:$0xff]
    %v1081 = vld [vmem:[#allocation5 + $0x1f60] sm:$0xff]
    %v1082 = vld [vmem:[#allocation5 + $0x1f68] sm:$0xff]
    %v1083 = vld [vmem:[#allocation5 + $0x1f70] sm:$0xff]
    %v1084 = vld [vmem:[#allocation5 + $0x1f78] sm:$0xff]
    %v1085 = vld [vmem:[#allocation5 + $0x1f80] sm:$0xff]
    %v1086 = vld [vmem:[#allocation5 + $0x1f88] sm:$0xff]
    %v1087 = vld [vmem:[#allocation5 + $0x1f90] sm:$0xff]
    %v1088 = vld [vmem:[#allocation5 + $0x1f98] sm:$0xff]
    %v1089 = vld [vmem:[#allocation5 + $0x1fa0] sm:$0xff]
    %v1090 = vld [vmem:[#allocation5 + $0x1fa8] sm:$0xff]
    %v1091 = vld [vmem:[#allocation5 + $0x1fb0] sm:$0xff]
    %v1092 = vld [vmem:[#allocation5 + $0x1fb8] sm:$0xff]
    %v1093 = vld [vmem:[#allocation5 + $0x1fc0] sm:$0xff]
    %v1094 = vld [vmem:[#allocation5 + $0x1fc8] sm:$0xff]
    %v1095 = vld [vmem:[#allocation5 + $0x1fd0] sm:$0xff]
    %v1096 = vld [vmem:[#allocation5 + $0x1fd8] sm:$0xff]
    %v1097 = vld [vmem:[#allocation5 + $0x1fe0] sm:$0xff]
    %v1098 = vld [vmem:[#allocation5 + $0x1fe8] sm:$0xff]
    %v1099 = vld [vmem:[#allocation5 + $0x1ff0] sm:$0xff]
    %v1100 = vld [vmem:[#allocation5 + $0x1ff8] sm:$0xff]
    %v1101 = vld [vmem:[#allocation5 + $0x2000] sm:$0xff]
    %v1102 = vld [vmem:[#allocation5 + $0x2008] sm:$0xff]
    %v1103 = vld [vmem:[#allocation5 + $0x2010] sm:$0xff]
    %v1104 = vld [vmem:[#allocation5 + $0x2018] sm:$0xff]
    %v1105 = vld [vmem:[#allocation5 + $0x2020] sm:$0xff]
    %v1106 = vld [vmem:[#allocation5 + $0x2028] sm:$0xff]
    %v1107 = vld [vmem:[#allocation5 + $0x2030] sm:$0xff]
    %v1108 = vld [vmem:[#allocation5 + $0x2038] sm:$0xff]
    %v1109 = vld [vmem:[#allocation5 + $0x2040] sm:$0xff]
    %v1110 = vld [vmem:[#allocation5 + $0x2048] sm:$0xff]
    %v1111 = vld [vmem:[#allocation5 + $0x2050] sm:$0xff]
    %v1112 = vld [vmem:[#allocation5 + $0x2058] sm:$0xff]
    %v1113 = vld [vmem:[#allocation5 + $0x2060] sm:$0xff]
    %v1114 = vld [vmem:[#allocation5 + $0x2068] sm:$0xff]
    %v1115 = vld [vmem:[#allocation5 + $0x2070] sm:$0xff]
    %v1116 = vld [vmem:[#allocation5 + $0x2078] sm:$0xff]
    %v1117 = vld [vmem:[#allocation5 + $0x2080] sm:$0xff]
    %v1118 = vld [vmem:[#allocation5 + $0x2088] sm:$0xff]
    %v1119 = vld [vmem:[#allocation5 + $0x2090] sm:$0xff]
    %v1120 = vld [vmem:[#allocation5 + $0x2098] sm:$0xff]
    %v1121 = vld [vmem:[#allocation5 + $0x20a0] sm:$0xff]
    %v1122 = vld [vmem:[#allocation5 + $0x20a8] sm:$0xff]
    %v1123 = vld [vmem:[#allocation5 + $0x20b0] sm:$0xff]
    %v1124 = vld [vmem:[#allocation5 + $0x20b8] sm:$0xff]
    %v1125 = vld [vmem:[#allocation5 + $0x20c0] sm:$0xff]
    %v1126 = vld [vmem:[#allocation5 + $0x20c8] sm:$0xff]
    %v1127 = vld [vmem:[#allocation5 + $0x20d0] sm:$0xff]
    %v1128 = vld [vmem:[#allocation5 + $0x20d8] sm:$0xff]
    %v1129 = vld [vmem:[#allocation5 + $0x20e0] sm:$0xff]
    %v1130 = vld [vmem:[#allocation5 + $0x20e8] sm:$0xff]
    %v1131 = vld [vmem:[#allocation5 + $0x20f0] sm:$0xff]
    %v1132 = vld [vmem:[#allocation5 + $0x20f8] sm:$0xff]
    %v1133 = vld [vmem:[#allocation5 + $0x2100] sm:$0xff]
    %v1134 = vld [vmem:[#allocation5 + $0x2108] sm:$0xff]
    %v1135 = vld [vmem:[#allocation5 + $0x2110] sm:$0xff]
    %v1136 = vld [vmem:[#allocation5 + $0x2118] sm:$0xff]
    %v1137 = vld [vmem:[#allocation5 + $0x2120] sm:$0xff]
    %v1138 = vld [vmem:[#allocation5 + $0x2128] sm:$0xff]
    %v1139 = vld [vmem:[#allocation5 + $0x2130] sm:$0xff]
    %v1140 = vld [vmem:[#allocation5 + $0x2138] sm:$0xff]
    %v1141 = vld [vmem:[#allocation5 + $0x2140] sm:$0xff]
    %v1142 = vld [vmem:[#allocation5 + $0x2148] sm:$0xff]
    %v1143 = vld [vmem:[#allocation5 + $0x2150] sm:$0xff]
    %v1144 = vld [vmem:[#allocation5 + $0x2158] sm:$0xff]
    %v1145 = vld [vmem:[#allocation5 + $0x2160] sm:$0xff]
    %v1146 = vld [vmem:[#allocation5 + $0x2168] sm:$0xff]
    %v1147 = vld [vmem:[#allocation5 + $0x2170] sm:$0xff]
    %v1148 = vld [vmem:[#allocation5 + $0x2178] sm:$0xff]
    %v1149 = vld [vmem:[#allocation5 + $0x2180] sm:$0xff]
    %v1150 = vld [vmem:[#allocation5 + $0x2188] sm:$0xff]
    %v1151 = vld [vmem:[#allocation5 + $0x2190] sm:$0xff]
    %v1152 = vld [vmem:[#allocation5 + $0x2198] sm:$0xff]
    %v1153 = vld [vmem:[#allocation5 + $0x21a0] sm:$0xff]
    %v1154 = vld [vmem:[#allocation5 + $0x21a8] sm:$0xff]
    %v1155 = vld [vmem:[#allocation5 + $0x21b0] sm:$0xff]
    %v1156 = vld [vmem:[#allocation5 + $0x21b8] sm:$0xff]
    %v1157 = vld [vmem:[#allocation5 + $0x21c0] sm:$0xff]
    %v1158 = vld [vmem:[#allocation5 + $0x21c8] sm:$0xff]
    %v1159 = vld [vmem:[#allocation5 + $0x21d0] sm:$0xff]
    %v1160 = vld [vmem:[#allocation5 + $0x21d8] sm:$0xff]
    %v1161 = vld [vmem:[#allocation5 + $0x21e0] sm:$0xff]
    %v1162 = vld [vmem:[#allocation5 + $0x21e8] sm:$0xff]
    %v1163 = vld [vmem:[#allocation5 + $0x21f0] sm:$0xff]
    %v1164 = vld [vmem:[#allocation5 + $0x21f8] sm:$0xff]
    %v1165 = vld [vmem:[#allocation5 + $0x2200] sm:$0xff]
    %v1166 = vld [vmem:[#allocation5 + $0x2208] sm:$0xff]
    %v1167 = vld [vmem:[#allocation5 + $0x2210] sm:$0xff]
    %v1168 = vld [vmem:[#allocation5 + $0x2218] sm:$0xff]
    %v1169 = vld [vmem:[#allocation5 + $0x2220] sm:$0xff]
    %v1170 = vld [vmem:[#allocation5 + $0x2228] sm:$0xff]
    %v1171 = vld [vmem:[#allocation5 + $0x2230] sm:$0xff]
    %v1172 = vld [vmem:[#allocation5 + $0x2238] sm:$0xff]
    %v1173 = vld [vmem:[#allocation5 + $0x2240] sm:$0xff]
    %v1174 = vld [vmem:[#allocation5 + $0x2248] sm:$0xff]
    %v1175 = vld [vmem:[#allocation5 + $0x2250] sm:$0xff]
    %v1176 = vld [vmem:[#allocation5 + $0x2258] sm:$0xff]
    %v1177 = vld [vmem:[#allocation5 + $0x2260] sm:$0xff]
    %v1178 = vld [vmem:[#allocation5 + $0x2268] sm:$0xff]
    %v1179 = vld [vmem:[#allocation5 + $0x2270] sm:$0xff]
    %v1180 = vld [vmem:[#allocation5 + $0x2278] sm:$0xff]
    %v1181 = vld [vmem:[#allocation5 + $0x2280] sm:$0xff]
    %v1182 = vld [vmem:[#allocation5 + $0x2288] sm:$0xff]
    %v1183 = vld [vmem:[#allocation5 + $0x2290] sm:$0xff]
    %v1184 = vld [vmem:[#allocation5 + $0x2298] sm:$0xff]
    %v1185 = vld [vmem:[#allocation5 + $0x22a0] sm:$0xff]
    %v1186 = vld [vmem:[#allocation5 + $0x22a8] sm:$0xff]
    %v1187 = vld [vmem:[#allocation5 + $0x22b0] sm:$0xff]
    %v1188 = vld [vmem:[#allocation5 + $0x22b8] sm:$0xff]
    %v1189 = vld [vmem:[#allocation5 + $0x22c0] sm:$0xff]
    %v1190 = vld [vmem:[#allocation5 + $0x22c8] sm:$0xff]
    %v1191 = vld [vmem:[#allocation5 + $0x22d0] sm:$0xff]
    %v1192 = vld [vmem:[#allocation5 + $0x22d8] sm:$0xff]
    %v1193 = vld [vmem:[#allocation5 + $0x22e0] sm:$0xff]
    %v1194 = vld [vmem:[#allocation5 + $0x22e8] sm:$0xff]
    %v1195 = vld [vmem:[#allocation5 + $0x22f0] sm:$0xff]
    %v1196 = vld [vmem:[#allocation5 + $0x22f8] sm:$0xff]
    %v1197 = vld [vmem:[#allocation5 + $0x2300] sm:$0xff]
    %v1198 = vld [vmem:[#allocation5 + $0x2308] sm:$0xff]
    %v1199 = vld [vmem:[#allocation5 + $0x2310] sm:$0xff]
    %v1200 = vld [vmem:[#allocation5 + $0x2318] sm:$0xff]
    %v1201 = vld [vmem:[#allocation5 + $0x2320] sm:$0xff]
    %v1202 = vld [vmem:[#allocation5 + $0x2328] sm:$0xff]
    %v1203 = vld [vmem:[#allocation5 + $0x2330] sm:$0xff]
    %v1204 = vld [vmem:[#allocation5 + $0x2338] sm:$0xff]
    %v1205 = vld [vmem:[#allocation5 + $0x2340] sm:$0xff]
    %v1206 = vld [vmem:[#allocation5 + $0x2348] sm:$0xff]
    %v1207 = vld [vmem:[#allocation5 + $0x2350] sm:$0xff]
    %v1208 = vld [vmem:[#allocation5 + $0x2358] sm:$0xff]
    %v1209 = vld [vmem:[#allocation5 + $0x2360] sm:$0xff]
    %v1210 = vld [vmem:[#allocation5 + $0x2368] sm:$0xff]
    %v1211 = vld [vmem:[#allocation5 + $0x2370] sm:$0xff]
    %v1212 = vld [vmem:[#allocation5 + $0x2378] sm:$0xff]
    %v1213 = vld [vmem:[#allocation5 + $0x2380] sm:$0xff]
    %v1214 = vld [vmem:[#allocation5 + $0x2388] sm:$0xff]
    %v1215 = vld [vmem:[#allocation5 + $0x2390] sm:$0xff]
    %v1216 = vld [vmem:[#allocation5 + $0x2398] sm:$0xff]
    %v1217 = vld [vmem:[#allocation5 + $0x23a0] sm:$0xff]
    %v1218 = vld [vmem:[#allocation5 + $0x23a8] sm:$0xff]
    %v1219 = vld [vmem:[#allocation5 + $0x23b0] sm:$0xff]
    %v1220 = vld [vmem:[#allocation5 + $0x23b8] sm:$0xff]
    %v1221 = vld [vmem:[#allocation5 + $0x23c0] sm:$0xff]
    %v1222 = vld [vmem:[#allocation5 + $0x23c8] sm:$0xff]
    %v1223 = vld [vmem:[#allocation5 + $0x23d0] sm:$0xff]
    %v1224 = vld [vmem:[#allocation5 + $0x23d8] sm:$0xff]
    %v1225 = vld [vmem:[#allocation5 + $0x23e0] sm:$0xff]
    %v1226 = vld [vmem:[#allocation5 + $0x23e8] sm:$0xff]
    %v1227 = vld [vmem:[#allocation5 + $0x23f0] sm:$0xff]
    %v1228 = vld [vmem:[#allocation5 + $0x23f8] sm:$0xff]
    %v1229 = vld [vmem:[#allocation5 + $0x2400] sm:$0xff]
    %v1230 = vld [vmem:[#allocation5 + $0x2408] sm:$0xff]
    %v1231 = vld [vmem:[#allocation5 + $0x2410] sm:$0xff]
    %v1232 = vld [vmem:[#allocation5 + $0x2418] sm:$0xff]
    %v1233 = vld [vmem:[#allocation5 + $0x2420] sm:$0xff]
    %v1234 = vld [vmem:[#allocation5 + $0x2428] sm:$0xff]
    %v1235 = vld [vmem:[#allocation5 + $0x2430] sm:$0xff]
    %v1236 = vld [vmem:[#allocation5 + $0x2438] sm:$0xff]
    %v1237 = vld [vmem:[#allocation5 + $0x2440] sm:$0xff]
    %v1238 = vld [vmem:[#allocation5 + $0x2448] sm:$0xff]
    %v1239 = vld [vmem:[#allocation5 + $0x2450] sm:$0xff]
    %v1240 = vld [vmem:[#allocation5 + $0x2458] sm:$0xff]
    %v1241 = vld [vmem:[#allocation5 + $0x2460] sm:$0xff]
    %v1242 = vld [vmem:[#allocation5 + $0x2468] sm:$0xff]
    %v1243 = vld [vmem:[#allocation5 + $0x2470] sm:$0xff]
    %v1244 = vld [vmem:[#allocation5 + $0x2478] sm:$0xff]
    %v1245 = vld [vmem:[#allocation5 + $0x2480] sm:$0xff]
    %v1246 = vld [vmem:[#allocation5 + $0x2488] sm:$0xff]
    %v1247 = vld [vmem:[#allocation5 + $0x2490] sm:$0xff]
    %v1248 = vld [vmem:[#allocation5 + $0x2498] sm:$0xff]
    %v1249 = vld [vmem:[#allocation5 + $0x24a0] sm:$0xff]
    %v1250 = vld [vmem:[#allocation5 + $0x24a8] sm:$0xff]
    %v1251 = vld [vmem:[#allocation5 + $0x24b0] sm:$0xff]
    %v1252 = vld [vmem:[#allocation5 + $0x24b8] sm:$0xff]
    %v1253 = vld [vmem:[#allocation7] sm:$0xff]
    %v1254 = vld [vmem:[#allocation7 + $0x8] sm:$0xf]
    %v1257 = vlaneseq
    %v1258 = vshrl.u32 %v1257, 7
    %v1259 = vsub.s32 0, %v1258
    %v1260 = vrot.slane %v1253, %v1259
    %v1261 = vlaneseq
    %v1262 = vshrl.u32 %v1261, 7
    %v1263 = vsub.s32 1, %v1262
    %v1264 = vrot.slane %v1253, %v1263
    %v1265 = vlaneseq
    %v1266 = vshrl.u32 %v1265, 7
    %v1267 = vsub.s32 2, %v1266
    %v1268 = vrot.slane %v1253, %v1267
    %v1269 = vlaneseq
    %v1270 = vshrl.u32 %v1269, 7
    %v1271 = vsub.s32 3, %v1270
    %v1272 = vrot.slane %v1253, %v1271
    %v1273 = vlaneseq
    %v1274 = vshrl.u32 %v1273, 7
    %v1275 = vsub.s32 4, %v1274
    %v1276 = vrot.slane %v1253, %v1275
    %v1277 = vlaneseq
    %v1278 = vshrl.u32 %v1277, 7
    %v1279 = vsub.s32 5, %v1278
    %v1280 = vrot.slane %v1253, %v1279
    %v1281 = vlaneseq
    %v1282 = vshrl.u32 %v1281, 7
    %v1283 = vsub.s32 6, %v1282
    %v1284 = vrot.slane %v1253, %v1283
    %v1285 = vlaneseq
    %v1286 = vshrl.u32 %v1285, 7
    %v1287 = vsub.s32 7, %v1286
    %v1288 = vrot.slane %v1253, %v1287
    %v1289 = vlaneseq
    %v1290 = vshrl.u32 %v1289, 7
    %v1291 = vsub.s32 0, %v1290
    %v1292 = vrot.slane %v1254, %v1291
    %v1293 = vlaneseq
    %v1294 = vshrl.u32 %v1293, 7
    %v1295 = vsub.s32 1, %v1294
    %v1296 = vrot.slane %v1254, %v1295
    %v1297 = vlaneseq
    %v1298 = vshrl.u32 %v1297, 7
    %v1299 = vsub.s32 2, %v1298
    %v1300 = vrot.slane %v1254, %v1299
    %v1301 = vlaneseq
    %v1302 = vshrl.u32 %v1301, 7
    %v1303 = vsub.s32 3, %v1302
    %v1304 = vrot.slane %v1254, %v1303
    %vm1317 = vcmask 130048
    %v1319 = vsel %vm1317, %v76, 0
    %1321 = vmatprep.subr.mxu0 %v78
    %1322 = vmatpush1.msra.mxu0 %v77
    %1323 = vmatprep.subr.mxu0 %v90
    %1324 = vmatpush1.msra.mxu0 %v89
    %1325 = vmatprep.subr.mxu0 %v102
    %1326 = vmatpush1.msra.mxu0 %v101
    %1327 = vmatprep.subr.mxu0 %v114
    %1328 = vmatpush1.msra.mxu0 %v113
    %1329 = vmatprep.subr.mxu0 %v126
    %1330 = vmatpush1.msra.mxu0 %v125
    %1331 = vmatprep.subr.mxu0 %v138
    %1332 = vmatpush1.msra.mxu0 %v137
    %1333 = vmatprep.subr.mxu0 %v150
    %1334 = vmatpush1.msra.mxu0 %v149
    %1335 = vmatprep.subr.mxu0 %v162
    %1336 = vmatpush1.msra.mxu0 %v161
    %1337 = vmatprep.subr.mxu0 %v174
    %1338 = vmatpush1.msra.mxu0 %v173
    %1339 = vmatprep.subr.mxu0 %v186
    %1340 = vmatpush1.msra.mxu0 %v185
    %1341 = vmatprep.subr.mxu0 %v198
    %1342 = vmatpush1.msra.mxu0 %v197
    %1343 = vmatprep.subr.mxu0 %v210
    %1344 = vmatpush1.msra.mxu0 %v209
    %1345 = vmatprep.subr.mxu0 %v222
    %1346 = vmatpush1.msra.mxu0 %v221
    %1347 = vmatprep.subr.mxu0 %v234
    %1348 = vmatpush1.msra.mxu0 %v233
    %1349 = vmatprep.subr.mxu0 %v246
    %1350 = vmatpush1.msra.mxu0 %v245
    %1351 = vmatprep.subr.mxu0 %v258
    %1352 = vmatpush1.msra.mxu0 %v257
    %1353 = vmatprep.subr.mxu0 %v270
    %1354 = vmatpush1.msra.mxu0 %v269
    %1355 = vmatprep.subr.mxu0 %v282
    %1356 = vmatpush1.msra.mxu0 %v281
    %1357 = vmatprep.subr.mxu0 %v294
    %1358 = vmatpush1.msra.mxu0 %v293
    %1359 = vmatprep.subr.mxu0 %v306
    %1360 = vmatpush1.msra.mxu0 %v305
    %1361 = vmatprep.subr.mxu0 %v318
    %1362 = vmatpush1.msra.mxu0 %v317
    %1363 = vmatprep.subr.mxu0 %v330
    %1364 = vmatpush1.msra.mxu0 %v329
    %1365 = vmatprep.subr.mxu0 %v342
    %1366 = vmatpush1.msra.mxu0 %v341
    %1367 = vmatprep.subr.mxu0 %v354
    %1368 = vmatpush1.msra.mxu0 %v353
    %1369 = vmatprep.subr.mxu0 %v366
    %1370 = vmatpush1.msra.mxu0 %v365
    %1371 = vmatprep.subr.mxu0 %v378
    %1372 = vmatpush1.msra.mxu0 %v377
    %1373 = vmatprep.subr.mxu0 %v390
    %1374 = vmatpush1.msra.mxu0 %v389
    %1375 = vmatprep.subr.mxu0 %v402
    %1376 = vmatpush1.msra.mxu0 %v401
    %1377 = vmatprep.subr.mxu0 %v414
    %1378 = vmatpush1.msra.mxu0 %v413
    %1379 = vmatprep.subr.mxu0 %v426
    %1380 = vmatpush1.msra.mxu0 %v425
    %1381 = vmatprep.subr.mxu0 %v438
    %1382 = vmatpush1.msra.mxu0 %v437
    %1383 = vmatprep.subr.mxu0 %v450
    %1384 = vmatpush1.msra.mxu0 %v449
    %1385 = vmatprep.mubr.f32.mxu0 %v71
    %1386 = vmatmul.mubr.f32.gmra.mrb[0].mxu0 %v70
    %v1387 = vpop.f32.mrb[0].mxu0
    %v1388 = vadd.f32 %v1260, %v1387
    %v1389 = vpop.f32.mrb[0].mxu0
    %v1390 = vadd.f32 %v1264, %v1389
    %1391 = vdwg.mxu0
    %1392 = vmatprep.subr.mxu0 %v462
    %1393 = vmatpush1.msra.mxu0 %v461
    %1394 = vmatprep.subr.mxu0 %v474
    %1395 = vmatpush1.msra.mxu0 %v473
    %1396 = vmatprep.subr.mxu0 %v486
    %1397 = vmatpush1.msra.mxu0 %v485
    %1398 = vmatprep.subr.mxu0 %v498
    %1399 = vmatpush1.msra.mxu0 %v497
    %1400 = vmatprep.subr.mxu0 %v510
    %1401 = vmatpush1.msra.mxu0 %v509
    %1402 = vmatprep.subr.mxu0 %v522
    %1403 = vmatpush1.msra.mxu0 %v521
    %1404 = vmatprep.subr.mxu0 %v534
    %1405 = vmatpush1.msra.mxu0 %v533
    %1406 = vmatprep.subr.mxu0 %v546
    %1407 = vmatpush1.msra.mxu0 %v545
    %1408 = vmatprep.subr.mxu0 %v558
    %1409 = vmatpush1.msra.mxu0 %v557
    %1410 = vmatprep.subr.mxu0 %v570
    %1411 = vmatpush1.msra.mxu0 %v569
    %1412 = vmatprep.subr.mxu0 %v582
    %1413 = vmatpush1.msra.mxu0 %v581
    %1414 = vmatprep.subr.mxu0 %v594
    %1415 = vmatpush1.msra.mxu0 %v593
    %1416 = vmatprep.subr.mxu0 %v606
    %1417 = vmatpush1.msra.mxu0 %v605
    %1418 = vmatprep.subr.mxu0 %v618
    %1419 = vmatpush1.msra.mxu0 %v617
    %1420 = vmatprep.subr.mxu0 %v630
    %1421 = vmatpush1.msra.mxu0 %v629
    %1422 = vmatprep.subr.mxu0 %v642
    %1423 = vmatpush1.msra.mxu0 %v641
    %1424 = vmatprep.subr.mxu0 %v654
    %1425 = vmatpush1.msra.mxu0 %v653
    %1426 = vmatprep.subr.mxu0 %v666
    %1427 = vmatpush1.msra.mxu0 %v665
    %1428 = vmatprep.subr.mxu0 %v678
    %1429 = vmatpush1.msra.mxu0 %v677
    %1430 = vmatprep.subr.mxu0 %v690
    %1431 = vmatpush1.msra.mxu0 %v689
    %1432 = vmatprep.subr.mxu0 %v702
    %1433 = vmatpush1.msra.mxu0 %v701
    %1434 = vmatprep.subr.mxu0 %v714
    %1435 = vmatpush1.msra.mxu0 %v713
    %1436 = vmatprep.subr.mxu0 %v726
    %1437 = vmatpush1.msra.mxu0 %v725
    %1438 = vmatprep.subr.mxu0 %v738
    %1439 = vmatpush1.msra.mxu0 %v737
    %1440 = vmatprep.subr.mxu0 %v750
    %1441 = vmatpush1.msra.mxu0 %v749
    %1442 = vmatprep.subr.mxu0 %v762
    %1443 = vmatpush1.msra.mxu0 %v761
    %1444 = vmatprep.subr.mxu0 %v774
    %1445 = vmatpush1.msra.mxu0 %v773
    %1446 = vmatprep.subr.mxu0 %v786
    %1447 = vmatpush1.msra.mxu0 %v785
    %1448 = vmatprep.subr.mxu0 %v798
    %1449 = vmatpush1.msra.mxu0 %v797
    %1450 = vmatprep.subr.mxu0 %v810
    %1451 = vmatpush1.msra.mxu0 %v809
    %1452 = vmatprep.subr.mxu0 %v822
    %1453 = vmatpush1.msra.mxu0 %v821
    %1454 = vmatprep.subr.mxu0 %v834
    %1455 = vmatpush1.msra.mxu0 %v833
    %1456 = vmatprep.mubr.f32.mxu0 %v73
    %1457 = vmatmul.mubr.f32.gmra.mrb[0].mxu0 %v72
    %v1458 = vpop.f32.mrb[0].mxu0
    %v1459 = vadd.f32 %v1388, %v1458
    %v1460 = vpop.f32.mrb[0].mxu0
    %v1461 = vadd.f32 %v1390, %v1460
    %1462 = vdwg.mxu0
    %1463 = vmatprep.subr.mxu0 %v846
    %1464 = vmatpush1.msra.mxu0 %v845
    %1465 = vmatprep.subr.mxu0 %v858
    %1466 = vmatpush1.msra.mxu0 %v857
    %1467 = vmatprep.subr.mxu0 %v870
    %1468 = vmatpush1.msra.mxu0 %v869
    %1469 = vmatprep.subr.mxu0 %v882
    %1470 = vmatpush1.msra.mxu0 %v881
    %1471 = vmatprep.subr.mxu0 %v894
    %1472 = vmatpush1.msra.mxu0 %v893
    %1473 = vmatprep.subr.mxu0 %v906
    %1474 = vmatpush1.msra.mxu0 %v905
    %1475 = vmatprep.subr.mxu0 %v918
    %1476 = vmatpush1.msra.mxu0 %v917
    %1477 = vmatprep.subr.mxu0 %v930
    %1478 = vmatpush1.msra.mxu0 %v929
    %1479 = vmatprep.subr.mxu0 %v942
    %1480 = vmatpush1.msra.mxu0 %v941
    %1481 = vmatprep.subr.mxu0 %v954
    %1482 = vmatpush1.msra.mxu0 %v953
    %1483 = vmatprep.subr.mxu0 %v966
    %1484 = vmatpush1.msra.mxu0 %v965
    %1485 = vmatprep.subr.mxu0 %v978
    %1486 = vmatpush1.msra.mxu0 %v977
    %1487 = vmatprep.subr.mxu0 %v990
    %1488 = vmatpush1.msra.mxu0 %v989
    %1489 = vmatprep.subr.mxu0 %v1002
    %1490 = vmatpush1.msra.mxu0 %v1001
    %1491 = vmatprep.subr.mxu0 %v1014
    %1492 = vmatpush1.msra.mxu0 %v1013
    %1493 = vmatprep.subr.mxu0 %v1026
    %1494 = vmatpush1.msra.mxu0 %v1025
    %1495 = vmatprep.subr.mxu0 %v1038
    %1496 = vmatpush1.msra.mxu0 %v1037
    %1497 = vmatprep.subr.mxu0 %v1050
    %1498 = vmatpush1.msra.mxu0 %v1049
    %1499 = vmatprep.subr.mxu0 %v1062
    %1500 = vmatpush1.msra.mxu0 %v1061
    %1501 = vmatprep.subr.mxu0 %v1074
    %1502 = vmatpush1.msra.mxu0 %v1073
    %1503 = vmatprep.subr.mxu0 %v1086
    %1504 = vmatpush1.msra.mxu0 %v1085
    %1505 = vmatprep.subr.mxu0 %v1098
    %1506 = vmatpush1.msra.mxu0 %v1097
    %1507 = vmatprep.subr.mxu0 %v1110
    %1508 = vmatpush1.msra.mxu0 %v1109
    %1509 = vmatprep.subr.mxu0 %v1122
    %1510 = vmatpush1.msra.mxu0 %v1121
    %1511 = vmatprep.subr.mxu0 %v1134
    %1512 = vmatpush1.msra.mxu0 %v1133
    %1513 = vmatprep.subr.mxu0 %v1146
    %1514 = vmatpush1.msra.mxu0 %v1145
    %1515 = vmatprep.subr.mxu0 %v1158
    %1516 = vmatpush1.msra.mxu0 %v1157
    %1517 = vmatprep.subr.mxu0 %v1170
    %1518 = vmatpush1.msra.mxu0 %v1169
    %1519 = vmatprep.subr.mxu0 %v1182
    %1520 = vmatpush1.msra.mxu0 %v1181
    %1521 = vmatprep.subr.mxu0 %v1194
    %1522 = vmatpush1.msra.mxu0 %v1193
    %1523 = vmatprep.subr.mxu0 %v1206
    %1524 = vmatpush1.msra.mxu0 %v1205
    %1525 = vmatprep.subr.mxu0 %v1218
    %1526 = vmatpush1.msra.mxu0 %v1217
    %1527 = vmatprep.mubr.f32.mxu0 %v75
    %1528 = vmatmul.mubr.f32.gmra.mrb[0].mxu0 %v74
    %v1529 = vpop.f32.mrb[0].mxu0
    %v1530 = vadd.f32 %v1459, %v1529
    %v1531 = vpop.f32.mrb[0].mxu0
    %v1532 = vadd.f32 %v1461, %v1531
    %1533 = vdwg.mxu0
    %1534 = vmatprep.subr.mxu0 %v1230
    %1535 = vmatpush1.msra.mxu0 %v1229
    %1536 = vmatprep.subr.mxu0 %v1242
    %1537 = vmatpush1.msra.mxu0 %v1241
    %1538 = vmatprep.subr.mxu0 0.0
    %1539 = vmatpush1.msra.mxu0 0.0
    %1540 = vmatprep.subr.mxu0 0.0
    %1541 = vmatpush1.msra.mxu0 0.0
    %1542 = vmatprep.subr.mxu0 0.0
    %1543 = vmatpush1.msra.mxu0 0.0
    %1544 = vmatprep.subr.mxu0 0.0
    %1545 = vmatpush1.msra.mxu0 0.0
    %1546 = vmatprep.subr.mxu0 0.0
    %1547 = vmatpush1.msra.mxu0 0.0
    %1548 = vmatprep.subr.mxu0 0.0
    %1549 = vmatpush1.msra.mxu0 0.0
    %1550 = vmatprep.subr.mxu0 0.0
    %1551 = vmatpush1.msra.mxu0 0.0
    %1552 = vmatprep.subr.mxu0 0.0
    %1553 = vmatpush1.msra.mxu0 0.0
    %1554 = vmatprep.subr.mxu0 0.0
    %1555 = vmatpush1.msra.mxu0 0.0
    %1556 = vmatprep.subr.mxu0 0.0
    %1557 = vmatpush1.msra.mxu0 0.0
    %1558 = vmatprep.subr.mxu0 0.0
    %1559 = vmatpush1.msra.mxu0 0.0
    %1560 = vmatprep.subr.mxu0 0.0
    %1561 = vmatpush1.msra.mxu0 0.0
    %1562 = vmatprep.subr.mxu0 0.0
    %1563 = vmatpush1.msra.mxu0 0.0
    %1564 = vmatprep.subr.mxu0 0.0
    %1565 = vmatpush1.msra.mxu0 0.0
    %1566 = vmatprep.subr.mxu0 0.0
    %1567 = vmatpush1.msra.mxu0 0.0
    %1568 = vmatprep.subr.mxu0 0.0
    %1569 = vmatpush1.msra.mxu0 0.0
    %1570 = vmatprep.subr.mxu0 0.0
    %1571 = vmatpush1.msra.mxu0 0.0
    %1572 = vmatprep.subr.mxu0 0.0
    %1573 = vmatpush1.msra.mxu0 0.0
    %1574 = vmatprep.subr.mxu0 0.0
    %1575 = vmatpush1.msra.mxu0 0.0
    %1576 = vmatprep.subr.mxu0 0.0
    %1577 = vmatpush1.msra.mxu0 0.0
    %1578 = vmatprep.subr.mxu0 0.0
    %1579 = vmatpush1.msra.mxu0 0.0
    %1580 = vmatprep.subr.mxu0 0.0
    %1581 = vmatpush1.msra.mxu0 0.0
    %1582 = vmatprep.subr.mxu0 0.0
    %1583 = vmatpush1.msra.mxu0 0.0
    %1584 = vmatprep.subr.mxu0 0.0
    %1585 = vmatpush1.msra.mxu0 0.0
    %1586 = vmatprep.subr.mxu0 0.0
    %1587 = vmatpush1.msra.mxu0 0.0
    %1588 = vmatprep.subr.mxu0 0.0
    %1589 = vmatpush1.msra.mxu0 0.0
    %1590 = vmatprep.subr.mxu0 0.0
    %1591 = vmatpush1.msra.mxu0 0.0
    %1592 = vmatprep.subr.mxu0 0.0
    %1593 = vmatpush1.msra.mxu0 0.0
    %1594 = vmatprep.subr.mxu0 0.0
    %1595 = vmatpush1.msra.mxu0 0.0
    %1596 = vmatprep.subr.mxu0 0.0
    %1597 = vmatpush1.msra.mxu0 0.0
    %1598 = vmatprep.mubr.f32.mxu0 0.0
    %1599 = vmatmul.mubr.f32.gmra.mrb[0].mxu0 %v1319
    %v1600 = vpop.f32.mrb[0].mxu0
    %v1601 = vadd.f32 %v1530, %v1600
    %v1602 = vpop.f32.mrb[0].mxu0
    %v1603 = vadd.f32 %v1532, %v1602
    %1604 = vdwg.mxu0
    %1605 = vmatprep.subr.mxu0 %v80
    %1606 = vmatpush1.msra.mxu0 %v79
    %1607 = vmatprep.subr.mxu0 %v92
    %1608 = vmatpush1.msra.mxu0 %v91
    %1609 = vmatprep.subr.mxu0 %v104
    %1610 = vmatpush1.msra.mxu0 %v103
    %1611 = vmatprep.subr.mxu0 %v116
    %1612 = vmatpush1.msra.mxu0 %v115
    %1613 = vmatprep.subr.mxu0 %v128
    %1614 = vmatpush1.msra.mxu0 %v127
    %1615 = vmatprep.subr.mxu0 %v140
    %1616 = vmatpush1.msra.mxu0 %v139
    %1617 = vmatprep.subr.mxu0 %v152
    %1618 = vmatpush1.msra.mxu0 %v151
    %1619 = vmatprep.subr.mxu0 %v164
    %1620 = vmatpush1.msra.mxu0 %v163
    %1621 = vmatprep.subr.mxu0 %v176
    %1622 = vmatpush1.msra.mxu0 %v175
    %1623 = vmatprep.subr.mxu0 %v188
    %1624 = vmatpush1.msra.mxu0 %v187
    %1625 = vmatprep.subr.mxu0 %v200
    %1626 = vmatpush1.msra.mxu0 %v199
    %1627 = vmatprep.subr.mxu0 %v212
    %1628 = vmatpush1.msra.mxu0 %v211
    %1629 = vmatprep.subr.mxu0 %v224
    %1630 = vmatpush1.msra.mxu0 %v223
    %1631 = vmatprep.subr.mxu0 %v236
    %1632 = vmatpush1.msra.mxu0 %v235
    %1633 = vmatprep.subr.mxu0 %v248
    %1634 = vmatpush1.msra.mxu0 %v247
    %1635 = vmatprep.subr.mxu0 %v260
    %1636 = vmatpush1.msra.mxu0 %v259
    %1637 = vmatprep.subr.mxu0 %v272
    %1638 = vmatpush1.msra.mxu0 %v271
    %1639 = vmatprep.subr.mxu0 %v284
    %1640 = vmatpush1.msra.mxu0 %v283
    %1641 = vmatprep.subr.mxu0 %v296
    %1642 = vmatpush1.msra.mxu0 %v295
    %1643 = vmatprep.subr.mxu0 %v308
    %1644 = vmatpush1.msra.mxu0 %v307
    %1645 = vmatprep.subr.mxu0 %v320
    %1646 = vmatpush1.msra.mxu0 %v319
    %1647 = vmatprep.subr.mxu0 %v332
    %1648 = vmatpush1.msra.mxu0 %v331
    %1649 = vmatprep.subr.mxu0 %v344
    %1650 = vmatpush1.msra.mxu0 %v343
    %1651 = vmatprep.subr.mxu0 %v356
    %1652 = vmatpush1.msra.mxu0 %v355
    %1653 = vmatprep.subr.mxu0 %v368
    %1654 = vmatpush1.msra.mxu0 %v367
    %1655 = vmatprep.subr.mxu0 %v380
    %1656 = vmatpush1.msra.mxu0 %v379
    %1657 = vmatprep.subr.mxu0 %v392
    %1658 = vmatpush1.msra.mxu0 %v391
    %1659 = vmatprep.subr.mxu0 %v404
    %1660 = vmatpush1.msra.mxu0 %v403
    %1661 = vmatprep.subr.mxu0 %v416
    %1662 = vmatpush1.msra.mxu0 %v415
    %1663 = vmatprep.subr.mxu0 %v428
    %1664 = vmatpush1.msra.mxu0 %v427
    %1665 = vmatprep.subr.mxu0 %v440
    %1666 = vmatpush1.msra.mxu0 %v439
    %1667 = vmatprep.subr.mxu0 %v452
    %1668 = vmatpush1.msra.mxu0 %v451
    %1669 = vmatprep.mubr.f32.mxu0 %v71
    %1670 = vmatmul.mubr.f32.gmra.mrb[0].mxu0 %v70
    %v1671 = vpop.f32.mrb[0].mxu0
    %v1672 = vadd.f32 %v1268, %v1671
    %v1673 = vpop.f32.mrb[0].mxu0
    %v1674 = vadd.f32 %v1272, %v1673
    %1675 = vdwg.mxu0
    %1676 = vmatprep.subr.mxu0 %v464
    %1677 = vmatpush1.msra.mxu0 %v463
    %1678 = vmatprep.subr.mxu0 %v476
    %1679 = vmatpush1.msra.mxu0 %v475
    %1680 = vmatprep.subr.mxu0 %v488
    %1681 = vmatpush1.msra.mxu0 %v487
    %1682 = vmatprep.subr.mxu0 %v500
    %1683 = vmatpush1.msra.mxu0 %v499
    %1684 = vmatprep.subr.mxu0 %v512
    %1685 = vmatpush1.msra.mxu0 %v511
    %1686 = vmatprep.subr.mxu0 %v524
    %1687 = vmatpush1.msra.mxu0 %v523
    %1688 = vmatprep.subr.mxu0 %v536
    %1689 = vmatpush1.msra.mxu0 %v535
    %1690 = vmatprep.subr.mxu0 %v548
    %1691 = vmatpush1.msra.mxu0 %v547
    %1692 = vmatprep.subr.mxu0 %v560
    %1693 = vmatpush1.msra.mxu0 %v559
    %1694 = vmatprep.subr.mxu0 %v572
    %1695 = vmatpush1.msra.mxu0 %v571
    %1696 = vmatprep.subr.mxu0 %v584
    %1697 = vmatpush1.msra.mxu0 %v583
    %1698 = vmatprep.subr.mxu0 %v596
    %1699 = vmatpush1.msra.mxu0 %v595
    %1700 = vmatprep.subr.mxu0 %v608
    %1701 = vmatpush1.msra.mxu0 %v607
    %1702 = vmatprep.subr.mxu0 %v620
    %1703 = vmatpush1.msra.mxu0 %v619
    %1704 = vmatprep.subr.mxu0 %v632
    %1705 = vmatpush1.msra.mxu0 %v631
    %1706 = vmatprep.subr.mxu0 %v644
    %1707 = vmatpush1.msra.mxu0 %v643
    %1708 = vmatprep.subr.mxu0 %v656
    %1709 = vmatpush1.msra.mxu0 %v655
    %1710 = vmatprep.subr.mxu0 %v668
    %1711 = vmatpush1.msra.mxu0 %v667
    %1712 = vmatprep.subr.mxu0 %v680
    %1713 = vmatpush1.msra.mxu0 %v679
    %1714 = vmatprep.subr.mxu0 %v692
    %1715 = vmatpush1.msra.mxu0 %v691
    %1716 = vmatprep.subr.mxu0 %v704
    %1717 = vmatpush1.msra.mxu0 %v703
    %1718 = vmatprep.subr.mxu0 %v716
    %1719 = vmatpush1.msra.mxu0 %v715
    %1720 = vmatprep.subr.mxu0 %v728
    %1721 = vmatpush1.msra.mxu0 %v727
    %1722 = vmatprep.subr.mxu0 %v740
    %1723 = vmatpush1.msra.mxu0 %v739
    %1724 = vmatprep.subr.mxu0 %v752
    %1725 = vmatpush1.msra.mxu0 %v751
    %1726 = vmatprep.subr.mxu0 %v764
    %1727 = vmatpush1.msra.mxu0 %v763
    %1728 = vmatprep.subr.mxu0 %v776
    %1729 = vmatpush1.msra.mxu0 %v775
    %1730 = vmatprep.subr.mxu0 %v788
    %1731 = vmatpush1.msra.mxu0 %v787
    %1732 = vmatprep.subr.mxu0 %v800
    %1733 = vmatpush1.msra.mxu0 %v799
    %1734 = vmatprep.subr.mxu0 %v812
    %1735 = vmatpush1.msra.mxu0 %v811
    %1736 = vmatprep.subr.mxu0 %v824
    %1737 = vmatpush1.msra.mxu0 %v823
    %1738 = vmatprep.subr.mxu0 %v836
    %1739 = vmatpush1.msra.mxu0 %v835
    %1740 = vmatprep.mubr.f32.mxu0 %v73
    %1741 = vmatmul.mubr.f32.gmra.mrb[0].mxu0 %v72
    %v1742 = vpop.f32.mrb[0].mxu0
    %v1743 = vadd.f32 %v1672, %v1742
    %v1744 = vpop.f32.mrb[0].mxu0
    %v1745 = vadd.f32 %v1674, %v1744
    %1746 = vdwg.mxu0
    %1747 = vmatprep.subr.mxu0 %v848
    %1748 = vmatpush1.msra.mxu0 %v847
    %1749 = vmatprep.subr.mxu0 %v860
    %1750 = vmatpush1.msra.mxu0 %v859
    %1751 = vmatprep.subr.mxu0 %v872
    %1752 = vmatpush1.msra.mxu0 %v871
    %1753 = vmatprep.subr.mxu0 %v884
    %1754 = vmatpush1.msra.mxu0 %v883
    %1755 = vmatprep.subr.mxu0 %v896
    %1756 = vmatpush1.msra.mxu0 %v895
    %1757 = vmatprep.subr.mxu0 %v908
    %1758 = vmatpush1.msra.mxu0 %v907
    %1759 = vmatprep.subr.mxu0 %v920
    %1760 = vmatpush1.msra.mxu0 %v919
    %1761 = vmatprep.subr.mxu0 %v932
    %1762 = vmatpush1.msra.mxu0 %v931
    %1763 = vmatprep.subr.mxu0 %v944
    %1764 = vmatpush1.msra.mxu0 %v943
    %1765 = vmatprep.subr.mxu0 %v956
    %1766 = vmatpush1.msra.mxu0 %v955
    %1767 = vmatprep.subr.mxu0 %v968
    %1768 = vmatpush1.msra.mxu0 %v967
    %1769 = vmatprep.subr.mxu0 %v980
    %1770 = vmatpush1.msra.mxu0 %v979
    %1771 = vmatprep.subr.mxu0 %v992
    %1772 = vmatpush1.msra.mxu0 %v991
    %1773 = vmatprep.subr.mxu0 %v1004
    %1774 = vmatpush1.msra.mxu0 %v1003
    %1775 = vmatprep.subr.mxu0 %v1016
    %1776 = vmatpush1.msra.mxu0 %v1015
    %1777 = vmatprep.subr.mxu0 %v1028
    %1778 = vmatpush1.msra.mxu0 %v1027
    %1779 = vmatprep.subr.mxu0 %v1040
    %1780 = vmatpush1.msra.mxu0 %v1039
    %1781 = vmatprep.subr.mxu0 %v1052
    %1782 = vmatpush1.msra.mxu0 %v1051
    %1783 = vmatprep.subr.mxu0 %v1064
    %1784 = vmatpush1.msra.mxu0 %v1063
    %1785 = vmatprep.subr.mxu0 %v1076
    %1786 = vmatpush1.msra.mxu0 %v1075
    %1787 = vmatprep.subr.mxu0 %v1088
    %1788 = vmatpush1.msra.mxu0 %v1087
    %1789 = vmatprep.subr.mxu0 %v1100
    %1790 = vmatpush1.msra.mxu0 %v1099
    %1791 = vmatprep.subr.mxu0 %v1112
    %1792 = vmatpush1.msra.mxu0 %v1111
    %1793 = vmatprep.subr.mxu0 %v1124
    %1794 = vmatpush1.msra.mxu0 %v1123
    %1795 = vmatprep.subr.mxu0 %v1136
    %1796 = vmatpush1.msra.mxu0 %v1135
    %1797 = vmatprep.subr.mxu0 %v1148
    %1798 = vmatpush1.msra.mxu0 %v1147
    %1799 = vmatprep.subr.mxu0 %v1160
    %1800 = vmatpush1.msra.mxu0 %v1159
    %1801 = vmatprep.subr.mxu0 %v1172
    %1802 = vmatpush1.msra.mxu0 %v1171
    %1803 = vmatprep.subr.mxu0 %v1184
    %1804 = vmatpush1.msra.mxu0 %v1183
    %1805 = vmatprep.subr.mxu0 %v1196
    %1806 = vmatpush1.msra.mxu0 %v1195
    %1807 = vmatprep.subr.mxu0 %v1208
    %1808 = vmatpush1.msra.mxu0 %v1207
    %1809 = vmatprep.subr.mxu0 %v1220
    %1810 = vmatpush1.msra.mxu0 %v1219
    %1811 = vmatprep.mubr.f32.mxu0 %v75
    %1812 = vmatmul.mubr.f32.gmra.mrb[0].mxu0 %v74
    %v1813 = vpop.f32.mrb[0].mxu0
    %v1814 = vadd.f32 %v1743, %v1813
    %v1815 = vpop.f32.mrb[0].mxu0
    %v1816 = vadd.f32 %v1745, %v1815
    %1817 = vdwg.mxu0
    %1818 = vmatprep.subr.mxu0 %v1232
    %1819 = vmatpush1.msra.mxu0 %v1231
    %1820 = vmatprep.subr.mxu0 %v1244
    %1821 = vmatpush1.msra.mxu0 %v1243
    %1822 = vmatprep.subr.mxu0 0.0
    %1823 = vmatpush1.msra.mxu0 0.0
    %1824 = vmatprep.subr.mxu0 0.0
    %1825 = vmatpush1.msra.mxu0 0.0
    %1826 = vmatprep.subr.mxu0 0.0
    %1827 = vmatpush1.msra.mxu0 0.0
    %1828 = vmatprep.subr.mxu0 0.0
    %1829 = vmatpush1.msra.mxu0 0.0
    %1830 = vmatprep.subr.mxu0 0.0
    %1831 = vmatpush1.msra.mxu0 0.0
    %1832 = vmatprep.subr.mxu0 0.0
    %1833 = vmatpush1.msra.mxu0 0.0
    %1834 = vmatprep.subr.mxu0 0.0
    %1835 = vmatpush1.msra.mxu0 0.0
    %1836 = vmatprep.subr.mxu0 0.0
    %1837 = vmatpush1.msra.mxu0 0.0
    %1838 = vmatprep.subr.mxu0 0.0
    %1839 = vmatpush1.msra.mxu0 0.0
    %1840 = vmatprep.subr.mxu0 0.0
    %1841 = vmatpush1.msra.mxu0 0.0
    %1842 = vmatprep.subr.mxu0 0.0
    %1843 = vmatpush1.msra.mxu0 0.0
    %1844 = vmatprep.subr.mxu0 0.0
    %1845 = vmatpush1.msra.mxu0 0.0
    %1846 = vmatprep.subr.mxu0 0.0
    %1847 = vmatpush1.msra.mxu0 0.0
    %1848 = vmatprep.subr.mxu0 0.0
    %1849 = vmatpush1.msra.mxu0 0.0
    %1850 = vmatprep.subr.mxu0 0.0
    %1851 = vmatpush1.msra.mxu0 0.0
    %1852 = vmatprep.subr.mxu0 0.0
    %1853 = vmatpush1.msra.mxu0 0.0
    %1854 = vmatprep.subr.mxu0 0.0
    %1855 = vmatpush1.msra.mxu0 0.0
    %1856 = vmatprep.subr.mxu0 0.0
    %1857 = vmatpush1.msra.mxu0 0.0
    %1858 = vmatprep.subr.mxu0 0.0
    %1859 = vmatpush1.msra.mxu0 0.0
    %1860 = vmatprep.subr.mxu0 0.0
    %1861 = vmatpush1.msra.mxu0 0.0
    %1862 = vmatprep.subr.mxu0 0.0
    %1863 = vmatpush1.msra.mxu0 0.0
    %1864 = vmatprep.subr.mxu0 0.0
    %1865 = vmatpush1.msra.mxu0 0.0
    %1866 = vmatprep.subr.mxu0 0.0
    %1867 = vmatpush1.msra.mxu0 0.0
    %1868 = vmatprep.subr.mxu0 0.0
    %1869 = vmatpush1.msra.mxu0 0.0
    %1870 = vmatprep.subr.mxu0 0.0
    %1871 = vmatpush1.msra.mxu0 0.0
    %1872 = vmatprep.subr.mxu0 0.0
    %1873 = vmatpush1.msra.mxu0 0.0
    %1874 = vmatprep.subr.mxu0 0.0
    %1875 = vmatpush1.msra.mxu0 0.0
    %1876 = vmatprep.subr.mxu0 0.0
    %1877 = vmatpush1.msra.mxu0 0.0
    %1878 = vmatprep.subr.mxu0 0.0
    %1879 = vmatpush1.msra.mxu0 0.0
    %1880 = vmatprep.subr.mxu0 0.0
    %1881 = vmatpush1.msra.mxu0 0.0
    %1882 = vmatprep.mubr.f32.mxu0 0.0
    %1883 = vmatmul.mubr.f32.gmra.mrb[0].mxu0 %v1319
    %v1884 = vpop.f32.mrb[0].mxu0
    %v1885 = vadd.f32 %v1814, %v1884
    %v1886 = vpop.f32.mrb[0].mxu0
    %v1887 = vadd.f32 %v1816, %v1886
    %1888 = vdwg.mxu0
    %1889 = vmatprep.subr.mxu0 %v82
    %1890 = vmatpush1.msra.mxu0 %v81
    %1891 = vmatprep.subr.mxu0 %v94
    %1892 = vmatpush1.msra.mxu0 %v93
    %1893 = vmatprep.subr.mxu0 %v106
    %1894 = vmatpush1.msra.mxu0 %v105
    %1895 = vmatprep.subr.mxu0 %v118
    %1896 = vmatpush1.msra.mxu0 %v117
    %1897 = vmatprep.subr.mxu0 %v130
    %1898 = vmatpush1.msra.mxu0 %v129
    %1899 = vmatprep.subr.mxu0 %v142
    %1900 = vmatpush1.msra.mxu0 %v141
    %1901 = vmatprep.subr.mxu0 %v154
    %1902 = vmatpush1.msra.mxu0 %v153
    %1903 = vmatprep.subr.mxu0 %v166
    %1904 = vmatpush1.msra.mxu0 %v165
    %1905 = vmatprep.subr.mxu0 %v178
    %1906 = vmatpush1.msra.mxu0 %v177
    %1907 = vmatprep.subr.mxu0 %v190
    %1908 = vmatpush1.msra.mxu0 %v189
    %1909 = vmatprep.subr.mxu0 %v202
    %1910 = vmatpush1.msra.mxu0 %v201
    %1911 = vmatprep.subr.mxu0 %v214
    %1912 = vmatpush1.msra.mxu0 %v213
    %1913 = vmatprep.subr.mxu0 %v226
    %1914 = vmatpush1.msra.mxu0 %v225
    %1915 = vmatprep.subr.mxu0 %v238
    %1916 = vmatpush1.msra.mxu0 %v237
    %1917 = vmatprep.subr.mxu0 %v250
    %1918 = vmatpush1.msra.mxu0 %v249
    %1919 = vmatprep.subr.mxu0 %v262
    %1920 = vmatpush1.msra.mxu0 %v261
    %1921 = vmatprep.subr.mxu0 %v274
    %1922 = vmatpush1.msra.mxu0 %v273
    %1923 = vmatprep.subr.mxu0 %v286
    %1924 = vmatpush1.msra.mxu0 %v285
    %1925 = vmatprep.subr.mxu0 %v298
    %1926 = vmatpush1.msra.mxu0 %v297
    %1927 = vmatprep.subr.mxu0 %v310
    %1928 = vmatpush1.msra.mxu0 %v309
    %1929 = vmatprep.subr.mxu0 %v322
    %1930 = vmatpush1.msra.mxu0 %v321
    %1931 = vmatprep.subr.mxu0 %v334
    %1932 = vmatpush1.msra.mxu0 %v333
    %1933 = vmatprep.subr.mxu0 %v346
    %1934 = vmatpush1.msra.mxu0 %v345
    %1935 = vmatprep.subr.mxu0 %v358
    %1936 = vmatpush1.msra.mxu0 %v357
    %1937 = vmatprep.subr.mxu0 %v370
    %1938 = vmatpush1.msra.mxu0 %v369
    %1939 = vmatprep.subr.mxu0 %v382
    %1940 = vmatpush1.msra.mxu0 %v381
    %1941 = vmatprep.subr.mxu0 %v394
    %1942 = vmatpush1.msra.mxu0 %v393
    %1943 = vmatprep.subr.mxu0 %v406
    %1944 = vmatpush1.msra.mxu0 %v405
    %1945 = vmatprep.subr.mxu0 %v418
    %1946 = vmatpush1.msra.mxu0 %v417
    %1947 = vmatprep.subr.mxu0 %v430
    %1948 = vmatpush1.msra.mxu0 %v429
    %1949 = vmatprep.subr.mxu0 %v442
    %1950 = vmatpush1.msra.mxu0 %v441
    %1951 = vmatprep.subr.mxu0 %v454
    %1952 = vmatpush1.msra.mxu0 %v453
    %1953 = vmatprep.mubr.f32.mxu0 %v71
    %1954 = vmatmul.mubr.f32.gmra.mrb[0].mxu0 %v70
    %v1955 = vpop.f32.mrb[0].mxu0
    %v1956 = vadd.f32 %v1276, %v1955
    %v1957 = vpop.f32.mrb[0].mxu0
    %v1958 = vadd.f32 %v1280, %v1957
    %1959 = vdwg.mxu0
    %1960 = vmatprep.subr.mxu0 %v466
    %1961 = vmatpush1.msra.mxu0 %v465
    %1962 = vmatprep.subr.mxu0 %v478
    %1963 = vmatpush1.msra.mxu0 %v477
    %1964 = vmatprep.subr.mxu0 %v490
    %1965 = vmatpush1.msra.mxu0 %v489
    %1966 = vmatprep.subr.mxu0 %v502
    %1967 = vmatpush1.msra.mxu0 %v501
    %1968 = vmatprep.subr.mxu0 %v514
    %1969 = vmatpush1.msra.mxu0 %v513
    %1970 = vmatprep.subr.mxu0 %v526
    %1971 = vmatpush1.msra.mxu0 %v525
    %1972 = vmatprep.subr.mxu0 %v538
    %1973 = vmatpush1.msra.mxu0 %v537
    %1974 = vmatprep.subr.mxu0 %v550
    %1975 = vmatpush1.msra.mxu0 %v549
    %1976 = vmatprep.subr.mxu0 %v562
    %1977 = vmatpush1.msra.mxu0 %v561
    %1978 = vmatprep.subr.mxu0 %v574
    %1979 = vmatpush1.msra.mxu0 %v573
    %1980 = vmatprep.subr.mxu0 %v586
    %1981 = vmatpush1.msra.mxu0 %v585
    %1982 = vmatprep.subr.mxu0 %v598
    %1983 = vmatpush1.msra.mxu0 %v597
    %1984 = vmatprep.subr.mxu0 %v610
    %1985 = vmatpush1.msra.mxu0 %v609
    %1986 = vmatprep.subr.mxu0 %v622
    %1987 = vmatpush1.msra.mxu0 %v621
    %1988 = vmatprep.subr.mxu0 %v634
    %1989 = vmatpush1.msra.mxu0 %v633
    %1990 = vmatprep.subr.mxu0 %v646
    %1991 = vmatpush1.msra.mxu0 %v645
    %1992 = vmatprep.subr.mxu0 %v658
    %1993 = vmatpush1.msra.mxu0 %v657
    %1994 = vmatprep.subr.mxu0 %v670
    %1995 = vmatpush1.msra.mxu0 %v669
    %1996 = vmatprep.subr.mxu0 %v682
    %1997 = vmatpush1.msra.mxu0 %v681
    %1998 = vmatprep.subr.mxu0 %v694
    %1999 = vmatpush1.msra.mxu0 %v693
    %2000 = vmatprep.subr.mxu0 %v706
    %2001 = vmatpush1.msra.mxu0 %v705
    %2002 = vmatprep.subr.mxu0 %v718
    %2003 = vmatpush1.msra.mxu0 %v717
    %2004 = vmatprep.subr.mxu0 %v730
    %2005 = vmatpush1.msra.mxu0 %v729
    %2006 = vmatprep.subr.mxu0 %v742
    %2007 = vmatpush1.msra.mxu0 %v741
    %2008 = vmatprep.subr.mxu0 %v754
    %2009 = vmatpush1.msra.mxu0 %v753
    %2010 = vmatprep.subr.mxu0 %v766
    %2011 = vmatpush1.msra.mxu0 %v765
    %2012 = vmatprep.subr.mxu0 %v778
    %2013 = vmatpush1.msra.mxu0 %v777
    %2014 = vmatprep.subr.mxu0 %v790
    %2015 = vmatpush1.msra.mxu0 %v789
    %2016 = vmatprep.subr.mxu0 %v802
    %2017 = vmatpush1.msra.mxu0 %v801
    %2018 = vmatprep.subr.mxu0 %v814
    %2019 = vmatpush1.msra.mxu0 %v813
    %2020 = vmatprep.subr.mxu0 %v826
    %2021 = vmatpush1.msra.mxu0 %v825
    %2022 = vmatprep.subr.mxu0 %v838
    %2023 = vmatpush1.msra.mxu0 %v837
    %2024 = vmatprep.mubr.f32.mxu0 %v73
    %2025 = vmatmul.mubr.f32.gmra.mrb[0].mxu0 %v72
    %v2026 = vpop.f32.mrb[0].mxu0
    %v2027 = vadd.f32 %v1956, %v2026
    %v2028 = vpop.f32.mrb[0].mxu0
    %v2029 = vadd.f32 %v1958, %v2028
    %2030 = vdwg.mxu0
    %2031 = vmatprep.subr.mxu0 %v850
    %2032 = vmatpush1.msra.mxu0 %v849
    %2033 = vmatprep.subr.mxu0 %v862
    %2034 = vmatpush1.msra.mxu0 %v861
    %2035 = vmatprep.subr.mxu0 %v874
    %2036 = vmatpush1.msra.mxu0 %v873
    %2037 = vmatprep.subr.mxu0 %v886
    %2038 = vmatpush1.msra.mxu0 %v885
    %2039 = vmatprep.subr.mxu0 %v898
    %2040 = vmatpush1.msra.mxu0 %v897
    %2041 = vmatprep.subr.mxu0 %v910
    %2042 = vmatpush1.msra.mxu0 %v909
    %2043 = vmatprep.subr.mxu0 %v922
    %2044 = vmatpush1.msra.mxu0 %v921
    %2045 = vmatprep.subr.mxu0 %v934
    %2046 = vmatpush1.msra.mxu0 %v933
    %2047 = vmatprep.subr.mxu0 %v946
    %2048 = vmatpush1.msra.mxu0 %v945
    %2049 = vmatprep.subr.mxu0 %v958
    %2050 = vmatpush1.msra.mxu0 %v957
    %2051 = vmatprep.subr.mxu0 %v970
    %2052 = vmatpush1.msra.mxu0 %v969
    %2053 = vmatprep.subr.mxu0 %v982
    %2054 = vmatpush1.msra.mxu0 %v981
    %2055 = vmatprep.subr.mxu0 %v994
    %2056 = vmatpush1.msra.mxu0 %v993
    %2057 = vmatprep.subr.mxu0 %v1006
    %2058 = vmatpush1.msra.mxu0 %v1005
    %2059 = vmatprep.subr.mxu0 %v1018
    %2060 = vmatpush1.msra.mxu0 %v1017
    %2061 = vmatprep.subr.mxu0 %v1030
    %2062 = vmatpush1.msra.mxu0 %v1029
    %2063 = vmatprep.subr.mxu0 %v1042
    %2064 = vmatpush1.msra.mxu0 %v1041
    %2065 = vmatprep.subr.mxu0 %v1054
    %2066 = vmatpush1.msra.mxu0 %v1053
    %2067 = vmatprep.subr.mxu0 %v1066
    %2068 = vmatpush1.msra.mxu0 %v1065
    %2069 = vmatprep.subr.mxu0 %v1078
    %2070 = vmatpush1.msra.mxu0 %v1077
    %2071 = vmatprep.subr.mxu0 %v1090
    %2072 = vmatpush1.msra.mxu0 %v1089
    %2073 = vmatprep.subr.mxu0 %v1102
    %2074 = vmatpush1.msra.mxu0 %v1101
    %2075 = vmatprep.subr.mxu0 %v1114
    %2076 = vmatpush1.msra.mxu0 %v1113
    %2077 = vmatprep.subr.mxu0 %v1126
    %2078 = vmatpush1.msra.mxu0 %v1125
    %2079 = vmatprep.subr.mxu0 %v1138
    %2080 = vmatpush1.msra.mxu0 %v1137
    %2081 = vmatprep.subr.mxu0 %v1150
    %2082 = vmatpush1.msra.mxu0 %v1149
    %2083 = vmatprep.subr.mxu0 %v1162
    %2084 = vmatpush1.msra.mxu0 %v1161
    %2085 = vmatprep.subr.mxu0 %v1174
    %2086 = vmatpush1.msra.mxu0 %v1173
    %2087 = vmatprep.subr.mxu0 %v1186
    %2088 = vmatpush1.msra.mxu0 %v1185
    %2089 = vmatprep.subr.mxu0 %v1198
    %2090 = vmatpush1.msra.mxu0 %v1197
    %2091 = vmatprep.subr.mxu0 %v1210
    %2092 = vmatpush1.msra.mxu0 %v1209
    %2093 = vmatprep.subr.mxu0 %v1222
    %2094 = vmatpush1.msra.mxu0 %v1221
    %2095 = vmatprep.mubr.f32.mxu0 %v75
    %2096 = vmatmul.mubr.f32.gmra.mrb[0].mxu0 %v74
    %v2097 = vpop.f32.mrb[0].mxu0
    %v2098 = vadd.f32 %v2027, %v2097
    %v2099 = vpop.f32.mrb[0].mxu0
    %v2100 = vadd.f32 %v2029, %v2099
    %2101 = vdwg.mxu0
    %2102 = vmatprep.subr.mxu0 %v1234
    %2103 = vmatpush1.msra.mxu0 %v1233
    %2104 = vmatprep.subr.mxu0 %v1246
    %2105 = vmatpush1.msra.mxu0 %v1245
    %2106 = vmatprep.subr.mxu0 0.0
    %2107 = vmatpush1.msra.mxu0 0.0
    %2108 = vmatprep.subr.mxu0 0.0
    %2109 = vmatpush1.msra.mxu0 0.0
    %2110 = vmatprep.subr.mxu0 0.0
    %2111 = vmatpush1.msra.mxu0 0.0
    %2112 = vmatprep.subr.mxu0 0.0
    %2113 = vmatpush1.msra.mxu0 0.0
    %2114 = vmatprep.subr.mxu0 0.0
    %2115 = vmatpush1.msra.mxu0 0.0
    %2116 = vmatprep.subr.mxu0 0.0
    %2117 = vmatpush1.msra.mxu0 0.0
    %2118 = vmatprep.subr.mxu0 0.0
    %2119 = vmatpush1.msra.mxu0 0.0
    %2120 = vmatprep.subr.mxu0 0.0
    %2121 = vmatpush1.msra.mxu0 0.0
    %2122 = vmatprep.subr.mxu0 0.0
    %2123 = vmatpush1.msra.mxu0 0.0
    %2124 = vmatprep.subr.mxu0 0.0
    %2125 = vmatpush1.msra.mxu0 0.0
    %2126 = vmatprep.subr.mxu0 0.0
    %2127 = vmatpush1.msra.mxu0 0.0
    %2128 = vmatprep.subr.mxu0 0.0
    %2129 = vmatpush1.msra.mxu0 0.0
    %2130 = vmatprep.subr.mxu0 0.0
    %2131 = vmatpush1.msra.mxu0 0.0
    %2132 = vmatprep.subr.mxu0 0.0
    %2133 = vmatpush1.msra.mxu0 0.0
    %2134 = vmatprep.subr.mxu0 0.0
    %2135 = vmatpush1.msra.mxu0 0.0
    %2136 = vmatprep.subr.mxu0 0.0
    %2137 = vmatpush1.msra.mxu0 0.0
    %2138 = vmatprep.subr.mxu0 0.0
    %2139 = vmatpush1.msra.mxu0 0.0
    %2140 = vmatprep.subr.mxu0 0.0
    %2141 = vmatpush1.msra.mxu0 0.0
    %2142 = vmatprep.subr.mxu0 0.0
    %2143 = vmatpush1.msra.mxu0 0.0
    %2144 = vmatprep.subr.mxu0 0.0
    %2145 = vmatpush1.msra.mxu0 0.0
    %2146 = vmatprep.subr.mxu0 0.0
    %2147 = vmatpush1.msra.mxu0 0.0
    %2148 = vmatprep.subr.mxu0 0.0
    %2149 = vmatpush1.msra.mxu0 0.0
    %2150 = vmatprep.subr.mxu0 0.0
    %2151 = vmatpush1.msra.mxu0 0.0
    %2152 = vmatprep.subr.mxu0 0.0
    %2153 = vmatpush1.msra.mxu0 0.0
    %2154 = vmatprep.subr.mxu0 0.0
    %2155 = vmatpush1.msra.mxu0 0.0
    %2156 = vmatprep.subr.mxu0 0.0
    %2157 = vmatpush1.msra.mxu0 0.0
    %2158 = vmatprep.subr.mxu0 0.0
    %2159 = vmatpush1.msra.mxu0 0.0
    %2160 = vmatprep.subr.mxu0 0.0
    %2161 = vmatpush1.msra.mxu0 0.0
    %2162 = vmatprep.subr.mxu0 0.0
    %2163 = vmatpush1.msra.mxu0 0.0
    %2164 = vmatprep.subr.mxu0 0.0
    %2165 = vmatpush1.msra.mxu0 0.0
    %2166 = vmatprep.mubr.f32.mxu0 0.0
    %2167 = vmatmul.mubr.f32.gmra.mrb[0].mxu0 %v1319
    %v2168 = vpop.f32.mrb[0].mxu0
    %v2169 = vadd.f32 %v2098, %v2168
    %v2170 = vpop.f32.mrb[0].mxu0
    %v2171 = vadd.f32 %v2100, %v2170
    %2172 = vdwg.mxu0
    %2173 = vmatprep.subr.mxu0 %v84
    %2174 = vmatpush1.msra.mxu0 %v83
    %2175 = vmatprep.subr.mxu0 %v96
    %2176 = vmatpush1.msra.mxu0 %v95
    %2177 = vmatprep.subr.mxu0 %v108
    %2178 = vmatpush1.msra.mxu0 %v107
    %2179 = vmatprep.subr.mxu0 %v120
    %2180 = vmatpush1.msra.mxu0 %v119
    %2181 = vmatprep.subr.mxu0 %v132
    %2182 = vmatpush1.msra.mxu0 %v131
    %2183 = vmatprep.subr.mxu0 %v144
    %2184 = vmatpush1.msra.mxu0 %v143
    %2185 = vmatprep.subr.mxu0 %v156
    %2186 = vmatpush1.msra.mxu0 %v155
    %2187 = vmatprep.subr.mxu0 %v168
    %2188 = vmatpush1.msra.mxu0 %v167
    %2189 = vmatprep.subr.mxu0 %v180
    %2190 = vmatpush1.msra.mxu0 %v179
    %2191 = vmatprep.subr.mxu0 %v192
    %2192 = vmatpush1.msra.mxu0 %v191
    %2193 = vmatprep.subr.mxu0 %v204
    %2194 = vmatpush1.msra.mxu0 %v203
    %2195 = vmatprep.subr.mxu0 %v216
    %2196 = vmatpush1.msra.mxu0 %v215
    %2197 = vmatprep.subr.mxu0 %v228
    %2198 = vmatpush1.msra.mxu0 %v227
    %2199 = vmatprep.subr.mxu0 %v240
    %2200 = vmatpush1.msra.mxu0 %v239
    %2201 = vmatprep.subr.mxu0 %v252
    %2202 = vmatpush1.msra.mxu0 %v251
    %2203 = vmatprep.subr.mxu0 %v264
    %2204 = vmatpush1.msra.mxu0 %v263
    %2205 = vmatprep.subr.mxu0 %v276
    %2206 = vmatpush1.msra.mxu0 %v275
    %2207 = vmatprep.subr.mxu0 %v288
    %2208 = vmatpush1.msra.mxu0 %v287
    %2209 = vmatprep.subr.mxu0 %v300
    %2210 = vmatpush1.msra.mxu0 %v299
    %2211 = vmatprep.subr.mxu0 %v312
    %2212 = vmatpush1.msra.mxu0 %v311
    %2213 = vmatprep.subr.mxu0 %v324
    %2214 = vmatpush1.msra.mxu0 %v323
    %2215 = vmatprep.subr.mxu0 %v336
    %2216 = vmatpush1.msra.mxu0 %v335
    %2217 = vmatprep.subr.mxu0 %v348
    %2218 = vmatpush1.msra.mxu0 %v347
    %2219 = vmatprep.subr.mxu0 %v360
    %2220 = vmatpush1.msra.mxu0 %v359
    %2221 = vmatprep.subr.mxu0 %v372
    %2222 = vmatpush1.msra.mxu0 %v371
    %2223 = vmatprep.subr.mxu0 %v384
    %2224 = vmatpush1.msra.mxu0 %v383
    %2225 = vmatprep.subr.mxu0 %v396
    %2226 = vmatpush1.msra.mxu0 %v395
    %2227 = vmatprep.subr.mxu0 %v408
    %2228 = vmatpush1.msra.mxu0 %v407
    %2229 = vmatprep.subr.mxu0 %v420
    %2230 = vmatpush1.msra.mxu0 %v419
    %2231 = vmatprep.subr.mxu0 %v432
    %2232 = vmatpush1.msra.mxu0 %v431
    %2233 = vmatprep.subr.mxu0 %v444
    %2234 = vmatpush1.msra.mxu0 %v443
    %2235 = vmatprep.subr.mxu0 %v456
    %2236 = vmatpush1.msra.mxu0 %v455
    %2237 = vmatprep.mubr.f32.mxu0 %v71
    %2238 = vmatmul.mubr.f32.gmra.mrb[0].mxu0 %v70
    %v2239 = vpop.f32.mrb[0].mxu0
    %v2240 = vadd.f32 %v1284, %v2239
    %v2241 = vpop.f32.mrb[0].mxu0
    %v2242 = vadd.f32 %v1288, %v2241
    %2243 = vdwg.mxu0
    %2244 = vmatprep.subr.mxu0 %v468
    %2245 = vmatpush1.msra.mxu0 %v467
    %2246 = vmatprep.subr.mxu0 %v480
    %2247 = vmatpush1.msra.mxu0 %v479
    %2248 = vmatprep.subr.mxu0 %v492
    %2249 = vmatpush1.msra.mxu0 %v491
    %2250 = vmatprep.subr.mxu0 %v504
    %2251 = vmatpush1.msra.mxu0 %v503
    %2252 = vmatprep.subr.mxu0 %v516
    %2253 = vmatpush1.msra.mxu0 %v515
    %2254 = vmatprep.subr.mxu0 %v528
    %2255 = vmatpush1.msra.mxu0 %v527
    %2256 = vmatprep.subr.mxu0 %v540
    %2257 = vmatpush1.msra.mxu0 %v539
    %2258 = vmatprep.subr.mxu0 %v552
    %2259 = vmatpush1.msra.mxu0 %v551
    %2260 = vmatprep.subr.mxu0 %v564
    %2261 = vmatpush1.msra.mxu0 %v563
    %2262 = vmatprep.subr.mxu0 %v576
    %2263 = vmatpush1.msra.mxu0 %v575
    %2264 = vmatprep.subr.mxu0 %v588
    %2265 = vmatpush1.msra.mxu0 %v587
    %2266 = vmatprep.subr.mxu0 %v600
    %2267 = vmatpush1.msra.mxu0 %v599
    %2268 = vmatprep.subr.mxu0 %v612
    %2269 = vmatpush1.msra.mxu0 %v611
    %2270 = vmatprep.subr.mxu0 %v624
    %2271 = vmatpush1.msra.mxu0 %v623
    %2272 = vmatprep.subr.mxu0 %v636
    %2273 = vmatpush1.msra.mxu0 %v635
    %2274 = vmatprep.subr.mxu0 %v648
    %2275 = vmatpush1.msra.mxu0 %v647
    %2276 = vmatprep.subr.mxu0 %v660
    %2277 = vmatpush1.msra.mxu0 %v659
    %2278 = vmatprep.subr.mxu0 %v672
    %2279 = vmatpush1.msra.mxu0 %v671
    %2280 = vmatprep.subr.mxu0 %v684
    %2281 = vmatpush1.msra.mxu0 %v683
    %2282 = vmatprep.subr.mxu0 %v696
    %2283 = vmatpush1.msra.mxu0 %v695
    %2284 = vmatprep.subr.mxu0 %v708
    %2285 = vmatpush1.msra.mxu0 %v707
    %2286 = vmatprep.subr.mxu0 %v720
    %2287 = vmatpush1.msra.mxu0 %v719
    %2288 = vmatprep.subr.mxu0 %v732
    %2289 = vmatpush1.msra.mxu0 %v731
    %2290 = vmatprep.subr.mxu0 %v744
    %2291 = vmatpush1.msra.mxu0 %v743
    %2292 = vmatprep.subr.mxu0 %v756
    %2293 = vmatpush1.msra.mxu0 %v755
    %2294 = vmatprep.subr.mxu0 %v768
    %2295 = vmatpush1.msra.mxu0 %v767
    %2296 = vmatprep.subr.mxu0 %v780
    %2297 = vmatpush1.msra.mxu0 %v779
    %2298 = vmatprep.subr.mxu0 %v792
    %2299 = vmatpush1.msra.mxu0 %v791
    %2300 = vmatprep.subr.mxu0 %v804
    %2301 = vmatpush1.msra.mxu0 %v803
    %2302 = vmatprep.subr.mxu0 %v816
    %2303 = vmatpush1.msra.mxu0 %v815
    %2304 = vmatprep.subr.mxu0 %v828
    %2305 = vmatpush1.msra.mxu0 %v827
    %2306 = vmatprep.subr.mxu0 %v840
    %2307 = vmatpush1.msra.mxu0 %v839
    %2308 = vmatprep.mubr.f32.mxu0 %v73
    %2309 = vmatmul.mubr.f32.gmra.mrb[0].mxu0 %v72
    %v2310 = vpop.f32.mrb[0].mxu0
    %v2311 = vadd.f32 %v2240, %v2310
    %v2312 = vpop.f32.mrb[0].mxu0
    %v2313 = vadd.f32 %v2242, %v2312
    %2314 = vdwg.mxu0
    %2315 = vmatprep.subr.mxu0 %v852
    %2316 = vmatpush1.msra.mxu0 %v851
    %2317 = vmatprep.subr.mxu0 %v864
    %2318 = vmatpush1.msra.mxu0 %v863
    %2319 = vmatprep.subr.mxu0 %v876
    %2320 = vmatpush1.msra.mxu0 %v875
    %2321 = vmatprep.subr.mxu0 %v888
    %2322 = vmatpush1.msra.mxu0 %v887
    %2323 = vmatprep.subr.mxu0 %v900
    %2324 = vmatpush1.msra.mxu0 %v899
    %2325 = vmatprep.subr.mxu0 %v912
    %2326 = vmatpush1.msra.mxu0 %v911
    %2327 = vmatprep.subr.mxu0 %v924
    %2328 = vmatpush1.msra.mxu0 %v923
    %2329 = vmatprep.subr.mxu0 %v936
    %2330 = vmatpush1.msra.mxu0 %v935
    %2331 = vmatprep.subr.mxu0 %v948
    %2332 = vmatpush1.msra.mxu0 %v947
    %2333 = vmatprep.subr.mxu0 %v960
    %2334 = vmatpush1.msra.mxu0 %v959
    %2335 = vmatprep.subr.mxu0 %v972
    %2336 = vmatpush1.msra.mxu0 %v971
    %2337 = vmatprep.subr.mxu0 %v984
    %2338 = vmatpush1.msra.mxu0 %v983
    %2339 = vmatprep.subr.mxu0 %v996
    %2340 = vmatpush1.msra.mxu0 %v995
    %2341 = vmatprep.subr.mxu0 %v1008
    %2342 = vmatpush1.msra.mxu0 %v1007
    %2343 = vmatprep.subr.mxu0 %v1020
    %2344 = vmatpush1.msra.mxu0 %v1019
    %2345 = vmatprep.subr.mxu0 %v1032
    %2346 = vmatpush1.msra.mxu0 %v1031
    %2347 = vmatprep.subr.mxu0 %v1044
    %2348 = vmatpush1.msra.mxu0 %v1043
    %2349 = vmatprep.subr.mxu0 %v1056
    %2350 = vmatpush1.msra.mxu0 %v1055
    %2351 = vmatprep.subr.mxu0 %v1068
    %2352 = vmatpush1.msra.mxu0 %v1067
    %2353 = vmatprep.subr.mxu0 %v1080
    %2354 = vmatpush1.msra.mxu0 %v1079
    %2355 = vmatprep.subr.mxu0 %v1092
    %2356 = vmatpush1.msra.mxu0 %v1091
    %2357 = vmatprep.subr.mxu0 %v1104
    %2358 = vmatpush1.msra.mxu0 %v1103
    %2359 = vmatprep.subr.mxu0 %v1116
    %2360 = vmatpush1.msra.mxu0 %v1115
    %2361 = vmatprep.subr.mxu0 %v1128
    %2362 = vmatpush1.msra.mxu0 %v1127
    %2363 = vmatprep.subr.mxu0 %v1140
    %2364 = vmatpush1.msra.mxu0 %v1139
    %2365 = vmatprep.subr.mxu0 %v1152
    %2366 = vmatpush1.msra.mxu0 %v1151
    %2367 = vmatprep.subr.mxu0 %v1164
    %2368 = vmatpush1.msra.mxu0 %v1163
    %2369 = vmatprep.subr.mxu0 %v1176
    %2370 = vmatpush1.msra.mxu0 %v1175
    %2371 = vmatprep.subr.mxu0 %v1188
    %2372 = vmatpush1.msra.mxu0 %v1187
    %2373 = vmatprep.subr.mxu0 %v1200
    %2374 = vmatpush1.msra.mxu0 %v1199
    %2375 = vmatprep.subr.mxu0 %v1212
    %2376 = vmatpush1.msra.mxu0 %v1211
    %2377 = vmatprep.subr.mxu0 %v1224
    %2378 = vmatpush1.msra.mxu0 %v1223
    %2379 = vmatprep.mubr.f32.mxu0 %v75
    %2380 = vmatmul.mubr.f32.gmra.mrb[0].mxu0 %v74
    %v2381 = vpop.f32.mrb[0].mxu0
    %v2382 = vadd.f32 %v2311, %v2381
    %v2383 = vpop.f32.mrb[0].mxu0
    %v2384 = vadd.f32 %v2313, %v2383
    %2385 = vdwg.mxu0
    %2386 = vmatprep.subr.mxu0 %v1236
    %2387 = vmatpush1.msra.mxu0 %v1235
    %2388 = vmatprep.subr.mxu0 %v1248
    %2389 = vmatpush1.msra.mxu0 %v1247
    %2390 = vmatprep.subr.mxu0 0.0
    %2391 = vmatpush1.msra.mxu0 0.0
    %2392 = vmatprep.subr.mxu0 0.0
    %2393 = vmatpush1.msra.mxu0 0.0
    %2394 = vmatprep.subr.mxu0 0.0
    %2395 = vmatpush1.msra.mxu0 0.0
    %2396 = vmatprep.subr.mxu0 0.0
    %2397 = vmatpush1.msra.mxu0 0.0
    %2398 = vmatprep.subr.mxu0 0.0
    %2399 = vmatpush1.msra.mxu0 0.0
    %2400 = vmatprep.subr.mxu0 0.0
    %2401 = vmatpush1.msra.mxu0 0.0
    %2402 = vmatprep.subr.mxu0 0.0
    %2403 = vmatpush1.msra.mxu0 0.0
    %2404 = vmatprep.subr.mxu0 0.0
    %2405 = vmatpush1.msra.mxu0 0.0
    %2406 = vmatprep.subr.mxu0 0.0
    %2407 = vmatpush1.msra.mxu0 0.0
    %2408 = vmatprep.subr.mxu0 0.0
    %2409 = vmatpush1.msra.mxu0 0.0
    %2410 = vmatprep.subr.mxu0 0.0
    %2411 = vmatpush1.msra.mxu0 0.0
    %2412 = vmatprep.subr.mxu0 0.0
    %2413 = vmatpush1.msra.mxu0 0.0
    %2414 = vmatprep.subr.mxu0 0.0
    %2415 = vmatpush1.msra.mxu0 0.0
    %2416 = vmatprep.subr.mxu0 0.0
    %2417 = vmatpush1.msra.mxu0 0.0
    %2418 = vmatprep.subr.mxu0 0.0
    %2419 = vmatpush1.msra.mxu0 0.0
    %2420 = vmatprep.subr.mxu0 0.0
    %2421 = vmatpush1.msra.mxu0 0.0
    %2422 = vmatprep.subr.mxu0 0.0
    %2423 = vmatpush1.msra.mxu0 0.0
    %2424 = vmatprep.subr.mxu0 0.0
    %2425 = vmatpush1.msra.mxu0 0.0
    %2426 = vmatprep.subr.mxu0 0.0
    %2427 = vmatpush1.msra.mxu0 0.0
    %2428 = vmatprep.subr.mxu0 0.0
    %2429 = vmatpush1.msra.mxu0 0.0
    %2430 = vmatprep.subr.mxu0 0.0
    %2431 = vmatpush1.msra.mxu0 0.0
    %2432 = vmatprep.subr.mxu0 0.0
    %2433 = vmatpush1.msra.mxu0 0.0
    %2434 = vmatprep.subr.mxu0 0.0
    %2435 = vmatpush1.msra.mxu0 0.0
    %2436 = vmatprep.subr.mxu0 0.0
    %2437 = vmatpush1.msra.mxu0 0.0
    %2438 = vmatprep.subr.mxu0 0.0
    %2439 = vmatpush1.msra.mxu0 0.0
    %2440 = vmatprep.subr.mxu0 0.0
    %2441 = vmatpush1.msra.mxu0 0.0
    %2442 = vmatprep.subr.mxu0 0.0
    %2443 = vmatpush1.msra.mxu0 0.0
    %2444 = vmatprep.subr.mxu0 0.0
    %2445 = vmatpush1.msra.mxu0 0.0
    %2446 = vmatprep.subr.mxu0 0.0
    %2447 = vmatpush1.msra.mxu0 0.0
    %2448 = vmatprep.subr.mxu0 0.0
    %2449 = vmatpush1.msra.mxu0 0.0
    %2450 = vmatprep.mubr.f32.mxu0 0.0
    %2451 = vmatmul.mubr.f32.gmra.mrb[0].mxu0 %v1319
    %v2452 = vpop.f32.mrb[0].mxu0
    %v2453 = vadd.f32 %v2382, %v2452
    %v2454 = vpop.f32.mrb[0].mxu0
    %v2455 = vadd.f32 %v2384, %v2454
    %2456 = vdwg.mxu0
    %2457 = vmatprep.subr.mxu0 %v86
    %2458 = vmatpush1.msra.mxu0 %v85
    %2459 = vmatprep.subr.mxu0 %v98
    %2460 = vmatpush1.msra.mxu0 %v97
    %2461 = vmatprep.subr.mxu0 %v110
    %2462 = vmatpush1.msra.mxu0 %v109
    %2463 = vmatprep.subr.mxu0 %v122
    %2464 = vmatpush1.msra.mxu0 %v121
    %2465 = vmatprep.subr.mxu0 %v134
    %2466 = vmatpush1.msra.mxu0 %v133
    %2467 = vmatprep.subr.mxu0 %v146
    %2468 = vmatpush1.msra.mxu0 %v145
    %2469 = vmatprep.subr.mxu0 %v158
    %2470 = vmatpush1.msra.mxu0 %v157
    %2471 = vmatprep.subr.mxu0 %v170
    %2472 = vmatpush1.msra.mxu0 %v169
    %2473 = vmatprep.subr.mxu0 %v182
    %2474 = vmatpush1.msra.mxu0 %v181
    %2475 = vmatprep.subr.mxu0 %v194
    %2476 = vmatpush1.msra.mxu0 %v193
    %2477 = vmatprep.subr.mxu0 %v206
    %2478 = vmatpush1.msra.mxu0 %v205
    %2479 = vmatprep.subr.mxu0 %v218
    %2480 = vmatpush1.msra.mxu0 %v217
    %2481 = vmatprep.subr.mxu0 %v230
    %2482 = vmatpush1.msra.mxu0 %v229
    %2483 = vmatprep.subr.mxu0 %v242
    %2484 = vmatpush1.msra.mxu0 %v241
    %2485 = vmatprep.subr.mxu0 %v254
    %2486 = vmatpush1.msra.mxu0 %v253
    %2487 = vmatprep.subr.mxu0 %v266
    %2488 = vmatpush1.msra.mxu0 %v265
    %2489 = vmatprep.subr.mxu0 %v278
    %2490 = vmatpush1.msra.mxu0 %v277
    %2491 = vmatprep.subr.mxu0 %v290
    %2492 = vmatpush1.msra.mxu0 %v289
    %2493 = vmatprep.subr.mxu0 %v302
    %2494 = vmatpush1.msra.mxu0 %v301
    %2495 = vmatprep.subr.mxu0 %v314
    %2496 = vmatpush1.msra.mxu0 %v313
    %2497 = vmatprep.subr.mxu0 %v326
    %2498 = vmatpush1.msra.mxu0 %v325
    %2499 = vmatprep.subr.mxu0 %v338
    %2500 = vmatpush1.msra.mxu0 %v337
    %2501 = vmatprep.subr.mxu0 %v350
    %2502 = vmatpush1.msra.mxu0 %v349
    %2503 = vmatprep.subr.mxu0 %v362
    %2504 = vmatpush1.msra.mxu0 %v361
    %2505 = vmatprep.subr.mxu0 %v374
    %2506 = vmatpush1.msra.mxu0 %v373
    %2507 = vmatprep.subr.mxu0 %v386
    %2508 = vmatpush1.msra.mxu0 %v385
    %2509 = vmatprep.subr.mxu0 %v398
    %2510 = vmatpush1.msra.mxu0 %v397
    %2511 = vmatprep.subr.mxu0 %v410
    %2512 = vmatpush1.msra.mxu0 %v409
    %2513 = vmatprep.subr.mxu0 %v422
    %2514 = vmatpush1.msra.mxu0 %v421
    %2515 = vmatprep.subr.mxu0 %v434
    %2516 = vmatpush1.msra.mxu0 %v433
    %2517 = vmatprep.subr.mxu0 %v446
    %2518 = vmatpush1.msra.mxu0 %v445
    %2519 = vmatprep.subr.mxu0 %v458
    %2520 = vmatpush1.msra.mxu0 %v457
    %2521 = vmatprep.mubr.f32.mxu0 %v71
    %2522 = vmatmul.mubr.f32.gmra.mrb[0].mxu0 %v70
    %v2523 = vpop.f32.mrb[0].mxu0
    %v2524 = vadd.f32 %v1292, %v2523
    %v2525 = vpop.f32.mrb[0].mxu0
    %v2526 = vadd.f32 %v1296, %v2525
    %2527 = vdwg.mxu0
    %2528 = vmatprep.subr.mxu0 %v470
    %2529 = vmatpush1.msra.mxu0 %v469
    %2530 = vmatprep.subr.mxu0 %v482
    %2531 = vmatpush1.msra.mxu0 %v481
    %2532 = vmatprep.subr.mxu0 %v494
    %2533 = vmatpush1.msra.mxu0 %v493
    %2534 = vmatprep.subr.mxu0 %v506
    %2535 = vmatpush1.msra.mxu0 %v505
    %2536 = vmatprep.subr.mxu0 %v518
    %2537 = vmatpush1.msra.mxu0 %v517
    %2538 = vmatprep.subr.mxu0 %v530
    %2539 = vmatpush1.msra.mxu0 %v529
    %2540 = vmatprep.subr.mxu0 %v542
    %2541 = vmatpush1.msra.mxu0 %v541
    %2542 = vmatprep.subr.mxu0 %v554
    %2543 = vmatpush1.msra.mxu0 %v553
    %2544 = vmatprep.subr.mxu0 %v566
    %2545 = vmatpush1.msra.mxu0 %v565
    %2546 = vmatprep.subr.mxu0 %v578
    %2547 = vmatpush1.msra.mxu0 %v577
    %2548 = vmatprep.subr.mxu0 %v590
    %2549 = vmatpush1.msra.mxu0 %v589
    %2550 = vmatprep.subr.mxu0 %v602
    %2551 = vmatpush1.msra.mxu0 %v601
    %2552 = vmatprep.subr.mxu0 %v614
    %2553 = vmatpush1.msra.mxu0 %v613
    %2554 = vmatprep.subr.mxu0 %v626
    %2555 = vmatpush1.msra.mxu0 %v625
    %2556 = vmatprep.subr.mxu0 %v638
    %2557 = vmatpush1.msra.mxu0 %v637
    %2558 = vmatprep.subr.mxu0 %v650
    %2559 = vmatpush1.msra.mxu0 %v649
    %2560 = vmatprep.subr.mxu0 %v662
    %2561 = vmatpush1.msra.mxu0 %v661
    %2562 = vmatprep.subr.mxu0 %v674
    %2563 = vmatpush1.msra.mxu0 %v673
    %2564 = vmatprep.subr.mxu0 %v686
    %2565 = vmatpush1.msra.mxu0 %v685
    %2566 = vmatprep.subr.mxu0 %v698
    %2567 = vmatpush1.msra.mxu0 %v697
    %2568 = vmatprep.subr.mxu0 %v710
    %2569 = vmatpush1.msra.mxu0 %v709
    %2570 = vmatprep.subr.mxu0 %v722
    %2571 = vmatpush1.msra.mxu0 %v721
    %2572 = vmatprep.subr.mxu0 %v734
    %2573 = vmatpush1.msra.mxu0 %v733
    %2574 = vmatprep.subr.mxu0 %v746
    %2575 = vmatpush1.msra.mxu0 %v745
    %2576 = vmatprep.subr.mxu0 %v758
    %2577 = vmatpush1.msra.mxu0 %v757
    %2578 = vmatprep.subr.mxu0 %v770
    %2579 = vmatpush1.msra.mxu0 %v769
    %2580 = vmatprep.subr.mxu0 %v782
    %2581 = vmatpush1.msra.mxu0 %v781
    %2582 = vmatprep.subr.mxu0 %v794
    %2583 = vmatpush1.msra.mxu0 %v793
    %2584 = vmatprep.subr.mxu0 %v806
    %2585 = vmatpush1.msra.mxu0 %v805
    %2586 = vmatprep.subr.mxu0 %v818
    %2587 = vmatpush1.msra.mxu0 %v817
    %2588 = vmatprep.subr.mxu0 %v830
    %2589 = vmatpush1.msra.mxu0 %v829
    %2590 = vmatprep.subr.mxu0 %v842
    %2591 = vmatpush1.msra.mxu0 %v841
    %2592 = vmatprep.mubr.f32.mxu0 %v73
    %2593 = vmatmul.mubr.f32.gmra.mrb[0].mxu0 %v72
    %v2594 = vpop.f32.mrb[0].mxu0
    %v2595 = vadd.f32 %v2524, %v2594
    %v2596 = vpop.f32.mrb[0].mxu0
    %v2597 = vadd.f32 %v2526, %v2596
    %2598 = vdwg.mxu0
    %2599 = vmatprep.subr.mxu0 %v854
    %2600 = vmatpush1.msra.mxu0 %v853
    %2601 = vmatprep.subr.mxu0 %v866
    %2602 = vmatpush1.msra.mxu0 %v865
    %2603 = vmatprep.subr.mxu0 %v878
    %2604 = vmatpush1.msra.mxu0 %v877
    %2605 = vmatprep.subr.mxu0 %v890
    %2606 = vmatpush1.msra.mxu0 %v889
    %2607 = vmatprep.subr.mxu0 %v902
    %2608 = vmatpush1.msra.mxu0 %v901
    %2609 = vmatprep.subr.mxu0 %v914
    %2610 = vmatpush1.msra.mxu0 %v913
    %2611 = vmatprep.subr.mxu0 %v926
    %2612 = vmatpush1.msra.mxu0 %v925
    %2613 = vmatprep.subr.mxu0 %v938
    %2614 = vmatpush1.msra.mxu0 %v937
    %2615 = vmatprep.subr.mxu0 %v950
    %2616 = vmatpush1.msra.mxu0 %v949
    %2617 = vmatprep.subr.mxu0 %v962
    %2618 = vmatpush1.msra.mxu0 %v961
    %2619 = vmatprep.subr.mxu0 %v974
    %2620 = vmatpush1.msra.mxu0 %v973
    %2621 = vmatprep.subr.mxu0 %v986
    %2622 = vmatpush1.msra.mxu0 %v985
    %2623 = vmatprep.subr.mxu0 %v998
    %2624 = vmatpush1.msra.mxu0 %v997
    %2625 = vmatprep.subr.mxu0 %v1010
    %2626 = vmatpush1.msra.mxu0 %v1009
    %2627 = vmatprep.subr.mxu0 %v1022
    %2628 = vmatpush1.msra.mxu0 %v1021
    %2629 = vmatprep.subr.mxu0 %v1034
    %2630 = vmatpush1.msra.mxu0 %v1033
    %2631 = vmatprep.subr.mxu0 %v1046
    %2632 = vmatpush1.msra.mxu0 %v1045
    %2633 = vmatprep.subr.mxu0 %v1058
    %2634 = vmatpush1.msra.mxu0 %v1057
    %2635 = vmatprep.subr.mxu0 %v1070
    %2636 = vmatpush1.msra.mxu0 %v1069
    %2637 = vmatprep.subr.mxu0 %v1082
    %2638 = vmatpush1.msra.mxu0 %v1081
    %2639 = vmatprep.subr.mxu0 %v1094
    %2640 = vmatpush1.msra.mxu0 %v1093
    %2641 = vmatprep.subr.mxu0 %v1106
    %2642 = vmatpush1.msra.mxu0 %v1105
    %2643 = vmatprep.subr.mxu0 %v1118
    %2644 = vmatpush1.msra.mxu0 %v1117
    %2645 = vmatprep.subr.mxu0 %v1130
    %2646 = vmatpush1.msra.mxu0 %v1129
    %2647 = vmatprep.subr.mxu0 %v1142
    %2648 = vmatpush1.msra.mxu0 %v1141
    %2649 = vmatprep.subr.mxu0 %v1154
    %2650 = vmatpush1.msra.mxu0 %v1153
    %2651 = vmatprep.subr.mxu0 %v1166
    %2652 = vmatpush1.msra.mxu0 %v1165
    %2653 = vmatprep.subr.mxu0 %v1178
    %2654 = vmatpush1.msra.mxu0 %v1177
    %2655 = vmatprep.subr.mxu0 %v1190
    %2656 = vmatpush1.msra.mxu0 %v1189
    %2657 = vmatprep.subr.mxu0 %v1202
    %2658 = vmatpush1.msra.mxu0 %v1201
    %2659 = vmatprep.subr.mxu0 %v1214
    %2660 = vmatpush1.msra.mxu0 %v1213
    %2661 = vmatprep.subr.mxu0 %v1226
    %2662 = vmatpush1.msra.mxu0 %v1225
    %2663 = vmatprep.mubr.f32.mxu0 %v75
    %2664 = vmatmul.mubr.f32.gmra.mrb[0].mxu0 %v74
    %v2665 = vpop.f32.mrb[0].mxu0
    %v2666 = vadd.f32 %v2595, %v2665
    %v2667 = vpop.f32.mrb[0].mxu0
    %v2668 = vadd.f32 %v2597, %v2667
    %2669 = vdwg.mxu0
    %2670 = vmatprep.subr.mxu0 %v1238
    %2671 = vmatpush1.msra.mxu0 %v1237
    %2672 = vmatprep.subr.mxu0 %v1250
    %2673 = vmatpush1.msra.mxu0 %v1249
    %2674 = vmatprep.subr.mxu0 0.0
    %2675 = vmatpush1.msra.mxu0 0.0
    %2676 = vmatprep.subr.mxu0 0.0
    %2677 = vmatpush1.msra.mxu0 0.0
    %2678 = vmatprep.subr.mxu0 0.0
    %2679 = vmatpush1.msra.mxu0 0.0
    %2680 = vmatprep.subr.mxu0 0.0
    %2681 = vmatpush1.msra.mxu0 0.0
    %2682 = vmatprep.subr.mxu0 0.0
    %2683 = vmatpush1.msra.mxu0 0.0
    %2684 = vmatprep.subr.mxu0 0.0
    %2685 = vmatpush1.msra.mxu0 0.0
    %2686 = vmatprep.subr.mxu0 0.0
    %2687 = vmatpush1.msra.mxu0 0.0
    %2688 = vmatprep.subr.mxu0 0.0
    %2689 = vmatpush1.msra.mxu0 0.0
    %2690 = vmatprep.subr.mxu0 0.0
    %2691 = vmatpush1.msra.mxu0 0.0
    %2692 = vmatprep.subr.mxu0 0.0
    %2693 = vmatpush1.msra.mxu0 0.0
    %2694 = vmatprep.subr.mxu0 0.0
    %2695 = vmatpush1.msra.mxu0 0.0
    %2696 = vmatprep.subr.mxu0 0.0
    %2697 = vmatpush1.msra.mxu0 0.0
    %2698 = vmatprep.subr.mxu0 0.0
    %2699 = vmatpush1.msra.mxu0 0.0
    %2700 = vmatprep.subr.mxu0 0.0
    %2701 = vmatpush1.msra.mxu0 0.0
    %2702 = vmatprep.subr.mxu0 0.0
    %2703 = vmatpush1.msra.mxu0 0.0
    %2704 = vmatprep.subr.mxu0 0.0
    %2705 = vmatpush1.msra.mxu0 0.0
    %2706 = vmatprep.subr.mxu0 0.0
    %2707 = vmatpush1.msra.mxu0 0.0
    %2708 = vmatprep.subr.mxu0 0.0
    %2709 = vmatpush1.msra.mxu0 0.0
    %2710 = vmatprep.subr.mxu0 0.0
    %2711 = vmatpush1.msra.mxu0 0.0
    %2712 = vmatprep.subr.mxu0 0.0
    %2713 = vmatpush1.msra.mxu0 0.0
    %2714 = vmatprep.subr.mxu0 0.0
    %2715 = vmatpush1.msra.mxu0 0.0
    %2716 = vmatprep.subr.mxu0 0.0
    %2717 = vmatpush1.msra.mxu0 0.0
    %2718 = vmatprep.subr.mxu0 0.0
    %2719 = vmatpush1.msra.mxu0 0.0
    %2720 = vmatprep.subr.mxu0 0.0
    %2721 = vmatpush1.msra.mxu0 0.0
    %2722 = vmatprep.subr.mxu0 0.0
    %2723 = vmatpush1.msra.mxu0 0.0
    %2724 = vmatprep.subr.mxu0 0.0
    %2725 = vmatpush1.msra.mxu0 0.0
    %2726 = vmatprep.subr.mxu0 0.0
    %2727 = vmatpush1.msra.mxu0 0.0
    %2728 = vmatprep.subr.mxu0 0.0
    %2729 = vmatpush1.msra.mxu0 0.0
    %2730 = vmatprep.subr.mxu0 0.0
    %2731 = vmatpush1.msra.mxu0 0.0
    %2732 = vmatprep.subr.mxu0 0.0
    %2733 = vmatpush1.msra.mxu0 0.0
    %2734 = vmatprep.mubr.f32.mxu0 0.0
    %2735 = vmatmul.mubr.f32.gmra.mrb[0].mxu0 %v1319
    %v2736 = vpop.f32.mrb[0].mxu0
    %v2737 = vadd.f32 %v2666, %v2736
    %v2738 = vpop.f32.mrb[0].mxu0
    %v2739 = vadd.f32 %v2668, %v2738
    %2740 = vdwg.mxu0
    %2741 = vmatprep.subr.mxu0 %v88
    %2742 = vmatpush1.msra.mxu0 %v87
    %2743 = vmatprep.subr.mxu0 %v100
    %2744 = vmatpush1.msra.mxu0 %v99
    %2745 = vmatprep.subr.mxu0 %v112
    %2746 = vmatpush1.msra.mxu0 %v111
    %2747 = vmatprep.subr.mxu0 %v124
    %2748 = vmatpush1.msra.mxu0 %v123
    %2749 = vmatprep.subr.mxu0 %v136
    %2750 = vmatpush1.msra.mxu0 %v135
    %2751 = vmatprep.subr.mxu0 %v148
    %2752 = vmatpush1.msra.mxu0 %v147
    %2753 = vmatprep.subr.mxu0 %v160
    %2754 = vmatpush1.msra.mxu0 %v159
    %2755 = vmatprep.subr.mxu0 %v172
    %2756 = vmatpush1.msra.mxu0 %v171
    %2757 = vmatprep.subr.mxu0 %v184
    %2758 = vmatpush1.msra.mxu0 %v183
    %2759 = vmatprep.subr.mxu0 %v196
    %2760 = vmatpush1.msra.mxu0 %v195
    %2761 = vmatprep.subr.mxu0 %v208
    %2762 = vmatpush1.msra.mxu0 %v207
    %2763 = vmatprep.subr.mxu0 %v220
    %2764 = vmatpush1.msra.mxu0 %v219
    %2765 = vmatprep.subr.mxu0 %v232
    %2766 = vmatpush1.msra.mxu0 %v231
    %2767 = vmatprep.subr.mxu0 %v244
    %2768 = vmatpush1.msra.mxu0 %v243
    %2769 = vmatprep.subr.mxu0 %v256
    %2770 = vmatpush1.msra.mxu0 %v255
    %2771 = vmatprep.subr.mxu0 %v268
    %2772 = vmatpush1.msra.mxu0 %v267
    %2773 = vmatprep.subr.mxu0 %v280
    %2774 = vmatpush1.msra.mxu0 %v279
    %2775 = vmatprep.subr.mxu0 %v292
    %2776 = vmatpush1.msra.mxu0 %v291
    %2777 = vmatprep.subr.mxu0 %v304
    %2778 = vmatpush1.msra.mxu0 %v303
    %2779 = vmatprep.subr.mxu0 %v316
    %2780 = vmatpush1.msra.mxu0 %v315
    %2781 = vmatprep.subr.mxu0 %v328
    %2782 = vmatpush1.msra.mxu0 %v327
    %2783 = vmatprep.subr.mxu0 %v340
    %2784 = vmatpush1.msra.mxu0 %v339
    %2785 = vmatprep.subr.mxu0 %v352
    %2786 = vmatpush1.msra.mxu0 %v351
    %2787 = vmatprep.subr.mxu0 %v364
    %2788 = vmatpush1.msra.mxu0 %v363
    %2789 = vmatprep.subr.mxu0 %v376
    %2790 = vmatpush1.msra.mxu0 %v375
    %2791 = vmatprep.subr.mxu0 %v388
    %2792 = vmatpush1.msra.mxu0 %v387
    %2793 = vmatprep.subr.mxu0 %v400
    %2794 = vmatpush1.msra.mxu0 %v399
    %2795 = vmatprep.subr.mxu0 %v412
    %2796 = vmatpush1.msra.mxu0 %v411
    %2797 = vmatprep.subr.mxu0 %v424
    %2798 = vmatpush1.msra.mxu0 %v423
    %2799 = vmatprep.subr.mxu0 %v436
    %2800 = vmatpush1.msra.mxu0 %v435
    %2801 = vmatprep.subr.mxu0 %v448
    %2802 = vmatpush1.msra.mxu0 %v447
    %2803 = vmatprep.subr.mxu0 %v460
    %2804 = vmatpush1.msra.mxu0 %v459
    %2805 = vmatprep.mubr.f32.mxu0 %v71
    %2806 = vmatmul.mubr.f32.gmra.mrb[0].mxu0 %v70
    %v2807 = vpop.f32.mrb[0].mxu0
    %v2808 = vadd.f32 %v1300, %v2807
    %v2809 = vpop.f32.mrb[0].mxu0
    %v2810 = vadd.f32 %v1304, %v2809
    %2811 = vdwg.mxu0
    %2812 = vmatprep.subr.mxu0 %v472
    %2813 = vmatpush1.msra.mxu0 %v471
    %2814 = vmatprep.subr.mxu0 %v484
    %2815 = vmatpush1.msra.mxu0 %v483
    %2816 = vmatprep.subr.mxu0 %v496
    %2817 = vmatpush1.msra.mxu0 %v495
    %2818 = vmatprep.subr.mxu0 %v508
    %2819 = vmatpush1.msra.mxu0 %v507
    %2820 = vmatprep.subr.mxu0 %v520
    %2821 = vmatpush1.msra.mxu0 %v519
    %2822 = vmatprep.subr.mxu0 %v532
    %2823 = vmatpush1.msra.mxu0 %v531
    %2824 = vmatprep.subr.mxu0 %v544
    %2825 = vmatpush1.msra.mxu0 %v543
    %2826 = vmatprep.subr.mxu0 %v556
    %2827 = vmatpush1.msra.mxu0 %v555
    %2828 = vmatprep.subr.mxu0 %v568
    %2829 = vmatpush1.msra.mxu0 %v567
    %2830 = vmatprep.subr.mxu0 %v580
    %2831 = vmatpush1.msra.mxu0 %v579
    %2832 = vmatprep.subr.mxu0 %v592
    %2833 = vmatpush1.msra.mxu0 %v591
    %2834 = vmatprep.subr.mxu0 %v604
    %2835 = vmatpush1.msra.mxu0 %v603
    %2836 = vmatprep.subr.mxu0 %v616
    %2837 = vmatpush1.msra.mxu0 %v615
    %2838 = vmatprep.subr.mxu0 %v628
    %2839 = vmatpush1.msra.mxu0 %v627
    %2840 = vmatprep.subr.mxu0 %v640
    %2841 = vmatpush1.msra.mxu0 %v639
    %2842 = vmatprep.subr.mxu0 %v652
    %2843 = vmatpush1.msra.mxu0 %v651
    %2844 = vmatprep.subr.mxu0 %v664
    %2845 = vmatpush1.msra.mxu0 %v663
    %2846 = vmatprep.subr.mxu0 %v676
    %2847 = vmatpush1.msra.mxu0 %v675
    %2848 = vmatprep.subr.mxu0 %v688
    %2849 = vmatpush1.msra.mxu0 %v687
    %2850 = vmatprep.subr.mxu0 %v700
    %2851 = vmatpush1.msra.mxu0 %v699
    %2852 = vmatprep.subr.mxu0 %v712
    %2853 = vmatpush1.msra.mxu0 %v711
    %2854 = vmatprep.subr.mxu0 %v724
    %2855 = vmatpush1.msra.mxu0 %v723
    %2856 = vmatprep.subr.mxu0 %v736
    %2857 = vmatpush1.msra.mxu0 %v735
    %2858 = vmatprep.subr.mxu0 %v748
    %2859 = vmatpush1.msra.mxu0 %v747
    %2860 = vmatprep.subr.mxu0 %v760
    %2861 = vmatpush1.msra.mxu0 %v759
    %2862 = vmatprep.subr.mxu0 %v772
    %2863 = vmatpush1.msra.mxu0 %v771
    %2864 = vmatprep.subr.mxu0 %v784
    %2865 = vmatpush1.msra.mxu0 %v783
    %2866 = vmatprep.subr.mxu0 %v796
    %2867 = vmatpush1.msra.mxu0 %v795
    %2868 = vmatprep.subr.mxu0 %v808
    %2869 = vmatpush1.msra.mxu0 %v807
    %2870 = vmatprep.subr.mxu0 %v820
    %2871 = vmatpush1.msra.mxu0 %v819
    %2872 = vmatprep.subr.mxu0 %v832
    %2873 = vmatpush1.msra.mxu0 %v831
    %2874 = vmatprep.subr.mxu0 %v844
    %2875 = vmatpush1.msra.mxu0 %v843
    %2876 = vmatprep.mubr.f32.mxu0 %v73
    %2877 = vmatmul.mubr.f32.gmra.mrb[0].mxu0 %v72
    %v2878 = vpop.f32.mrb[0].mxu0
    %v2879 = vadd.f32 %v2808, %v2878
    %v2880 = vpop.f32.mrb[0].mxu0
    %v2881 = vadd.f32 %v2810, %v2880
    %2882 = vdwg.mxu0
    %2883 = vmatprep.subr.mxu0 %v856
    %2884 = vmatpush1.msra.mxu0 %v855
    %2885 = vmatprep.subr.mxu0 %v868
    %2886 = vmatpush1.msra.mxu0 %v867
    %2887 = vmatprep.subr.mxu0 %v880
    %2888 = vmatpush1.msra.mxu0 %v879
    %2889 = vmatprep.subr.mxu0 %v892
    %2890 = vmatpush1.msra.mxu0 %v891
    %2891 = vmatprep.subr.mxu0 %v904
    %2892 = vmatpush1.msra.mxu0 %v903
    %2893 = vmatprep.subr.mxu0 %v916
    %2894 = vmatpush1.msra.mxu0 %v915
    %2895 = vmatprep.subr.mxu0 %v928
    %2896 = vmatpush1.msra.mxu0 %v927
    %2897 = vmatprep.subr.mxu0 %v940
    %2898 = vmatpush1.msra.mxu0 %v939
    %2899 = vmatprep.subr.mxu0 %v952
    %2900 = vmatpush1.msra.mxu0 %v951
    %2901 = vmatprep.subr.mxu0 %v964
    %2902 = vmatpush1.msra.mxu0 %v963
    %2903 = vmatprep.subr.mxu0 %v976
    %2904 = vmatpush1.msra.mxu0 %v975
    %2905 = vmatprep.subr.mxu0 %v988
    %2906 = vmatpush1.msra.mxu0 %v987
    %2907 = vmatprep.subr.mxu0 %v1000
    %2908 = vmatpush1.msra.mxu0 %v999
    %2909 = vmatprep.subr.mxu0 %v1012
    %2910 = vmatpush1.msra.mxu0 %v1011
    %2911 = vmatprep.subr.mxu0 %v1024
    %2912 = vmatpush1.msra.mxu0 %v1023
    %2913 = vmatprep.subr.mxu0 %v1036
    %2914 = vmatpush1.msra.mxu0 %v1035
    %2915 = vmatprep.subr.mxu0 %v1048
    %2916 = vmatpush1.msra.mxu0 %v1047
    %2917 = vmatprep.subr.mxu0 %v1060
    %2918 = vmatpush1.msra.mxu0 %v1059
    %2919 = vmatprep.subr.mxu0 %v1072
    %2920 = vmatpush1.msra.mxu0 %v1071
    %2921 = vmatprep.subr.mxu0 %v1084
    %2922 = vmatpush1.msra.mxu0 %v1083
    %2923 = vmatprep.subr.mxu0 %v1096
    %2924 = vmatpush1.msra.mxu0 %v1095
    %2925 = vmatprep.subr.mxu0 %v1108
    %2926 = vmatpush1.msra.mxu0 %v1107
    %2927 = vmatprep.subr.mxu0 %v1120
    %2928 = vmatpush1.msra.mxu0 %v1119
    %2929 = vmatprep.subr.mxu0 %v1132
    %2930 = vmatpush1.msra.mxu0 %v1131
    %2931 = vmatprep.subr.mxu0 %v1144
    %2932 = vmatpush1.msra.mxu0 %v1143
    %2933 = vmatprep.subr.mxu0 %v1156
    %2934 = vmatpush1.msra.mxu0 %v1155
    %2935 = vmatprep.subr.mxu0 %v1168
    %2936 = vmatpush1.msra.mxu0 %v1167
    %2937 = vmatprep.subr.mxu0 %v1180
    %2938 = vmatpush1.msra.mxu0 %v1179
    %2939 = vmatprep.subr.mxu0 %v1192
    %2940 = vmatpush1.msra.mxu0 %v1191
    %2941 = vmatprep.subr.mxu0 %v1204
    %2942 = vmatpush1.msra.mxu0 %v1203
    %2943 = vmatprep.subr.mxu0 %v1216
    %2944 = vmatpush1.msra.mxu0 %v1215
    %2945 = vmatprep.subr.mxu0 %v1228
    %2946 = vmatpush1.msra.mxu0 %v1227
    %2947 = vmatprep.mubr.f32.mxu0 %v75
    %2948 = vmatmul.mubr.f32.gmra.mrb[0].mxu0 %v74
    %v2949 = vpop.f32.mrb[0].mxu0
    %v2950 = vadd.f32 %v2879, %v2949
    %v2951 = vpop.f32.mrb[0].mxu0
    %v2952 = vadd.f32 %v2881, %v2951
    %2953 = vdwg.mxu0
    %2954 = vmatprep.subr.mxu0 %v1240
    %2955 = vmatpush1.msra.mxu0 %v1239
    %2956 = vmatprep.subr.mxu0 %v1252
    %2957 = vmatpush1.msra.mxu0 %v1251
    %2958 = vmatprep.subr.mxu0 0.0
    %2959 = vmatpush1.msra.mxu0 0.0
    %2960 = vmatprep.subr.mxu0 0.0
    %2961 = vmatpush1.msra.mxu0 0.0
    %2962 = vmatprep.subr.mxu0 0.0
    %2963 = vmatpush1.msra.mxu0 0.0
    %2964 = vmatprep.subr.mxu0 0.0
    %2965 = vmatpush1.msra.mxu0 0.0
    %2966 = vmatprep.subr.mxu0 0.0
    %2967 = vmatpush1.msra.mxu0 0.0
    %2968 = vmatprep.subr.mxu0 0.0
    %2969 = vmatpush1.msra.mxu0 0.0
    %2970 = vmatprep.subr.mxu0 0.0
    %2971 = vmatpush1.msra.mxu0 0.0
    %2972 = vmatprep.subr.mxu0 0.0
    %2973 = vmatpush1.msra.mxu0 0.0
    %2974 = vmatprep.subr.mxu0 0.0
    %2975 = vmatpush1.msra.mxu0 0.0
    %2976 = vmatprep.subr.mxu0 0.0
    %2977 = vmatpush1.msra.mxu0 0.0
    %2978 = vmatprep.subr.mxu0 0.0
    %2979 = vmatpush1.msra.mxu0 0.0
    %2980 = vmatprep.subr.mxu0 0.0
    %2981 = vmatpush1.msra.mxu0 0.0
    %2982 = vmatprep.subr.mxu0 0.0
    %2983 = vmatpush1.msra.mxu0 0.0
    %2984 = vmatprep.subr.mxu0 0.0
    %2985 = vmatpush1.msra.mxu0 0.0
    %2986 = vmatprep.subr.mxu0 0.0
    %2987 = vmatpush1.msra.mxu0 0.0
    %2988 = vmatprep.subr.mxu0 0.0
    %2989 = vmatpush1.msra.mxu0 0.0
    %2990 = vmatprep.subr.mxu0 0.0
    %2991 = vmatpush1.msra.mxu0 0.0
    %2992 = vmatprep.subr.mxu0 0.0
    %2993 = vmatpush1.msra.mxu0 0.0
    %2994 = vmatprep.subr.mxu0 0.0
    %2995 = vmatpush1.msra.mxu0 0.0
    %2996 = vmatprep.subr.mxu0 0.0
    %2997 = vmatpush1.msra.mxu0 0.0
    %2998 = vmatprep.subr.mxu0 0.0
    %2999 = vmatpush1.msra.mxu0 0.0
    %3000 = vmatprep.subr.mxu0 0.0
    %3001 = vmatpush1.msra.mxu0 0.0
    %3002 = vmatprep.subr.mxu0 0.0
    %3003 = vmatpush1.msra.mxu0 0.0
    %3004 = vmatprep.subr.mxu0 0.0
    %3005 = vmatpush1.msra.mxu0 0.0
    %3006 = vmatprep.subr.mxu0 0.0
    %3007 = vmatpush1.msra.mxu0 0.0
    %3008 = vmatprep.subr.mxu0 0.0
    %3009 = vmatpush1.msra.mxu0 0.0
    %3010 = vmatprep.subr.mxu0 0.0
    %3011 = vmatpush1.msra.mxu0 0.0
    %3012 = vmatprep.subr.mxu0 0.0
    %3013 = vmatpush1.msra.mxu0 0.0
    %3014 = vmatprep.subr.mxu0 0.0
    %3015 = vmatpush1.msra.mxu0 0.0
    %3016 = vmatprep.subr.mxu0 0.0
    %3017 = vmatpush1.msra.mxu0 0.0
    %3018 = vmatprep.mubr.f32.mxu0 0.0
    %3019 = vmatmul.mubr.f32.gmra.mrb[0].mxu0 %v1319
    %v3020 = vpop.f32.mrb[0].mxu0
    %v3021 = vadd.f32 %v2950, %v3020
    %v3022 = vpop.f32.mrb[0].mxu0
    %v3023 = vadd.f32 %v2952, %v3022
    %3024 = vdwg.mxu0
    %vm3025 = vcmp.ge.f32.partialorder %v1601, 0.0
    %vm3026 = vcmp.ge.f32.partialorder %v1603, 0.0
    %vm3027 = vcmp.ge.f32.partialorder %v1885, 0.0
    %vm3028 = vcmp.ge.f32.partialorder %v1887, 0.0
    %vm3029 = vcmp.ge.f32.partialorder %v2169, 0.0
    %vm3030 = vcmp.ge.f32.partialorder %v2171, 0.0
    %vm3031 = vcmp.ge.f32.partialorder %v2453, 0.0
    %vm3032 = vcmp.ge.f32.partialorder %v2455, 0.0
    %vm3033 = vcmp.ge.f32.partialorder %v2737, 0.0
    %vm3034 = vcmp.ge.f32.partialorder %v2739, 0.0
    %vm3035 = vcmp.ge.f32.partialorder %v3021, 0.0
    %vm3036 = vcmp.ge.f32.partialorder %v3023, 0.0
    %v3037 = vmul.f32 %v1601, 0.2
    %v3038 = vmul.f32 %v1603, 0.2
    %v3039 = vmul.f32 %v1885, 0.2
    %v3040 = vmul.f32 %v1887, 0.2
    %v3041 = vmul.f32 %v2169, 0.2
    %v3042 = vmul.f32 %v2171, 0.2
    %v3043 = vmul.f32 %v2453, 0.2
    %v3044 = vmul.f32 %v2455, 0.2
    %v3045 = vmul.f32 %v2737, 0.2
    %v3046 = vmul.f32 %v2739, 0.2
    %v3047 = vmul.f32 %v3021, 0.2
    %v3048 = vmul.f32 %v3023, 0.2
    %v3049 = vsel %vm3025, %v1601, %v3037
    %v3050 = vsel %vm3026, %v1603, %v3038
    %v3051 = vsel %vm3027, %v1885, %v3039
    %v3052 = vsel %vm3028, %v1887, %v3040
    %v3053 = vsel %vm3029, %v2169, %v3041
    %v3054 = vsel %vm3030, %v2171, %v3042
    %v3055 = vsel %vm3031, %v2453, %v3043
    %v3056 = vsel %vm3032, %v2455, %v3044
    %v3057 = vsel %vm3033, %v2737, %v3045
    %v3058 = vsel %vm3034, %v2739, %v3046
    %v3059 = vsel %vm3035, %v3021, %v3047
    %v3060 = vsel %vm3036, %v3023, %v3048
    %v3061 = vld [vmem:[%s3] sm:$0xff]
    %v3062 = vld [vmem:[%s3 + $0x8] sm:$0xff]
    %v3063 = vld [vmem:[%s3 + $0x10] sm:$0xff]
    %v3064 = vld [vmem:[%s3 + $0x18] sm:$0xff]
    %v3065 = vld [vmem:[%s3 + $0x20] sm:$0xff]
    %v3066 = vld [vmem:[%s3 + $0x28] sm:$0xff]
    %v3067 = vld [vmem:[%s3 + $0x30] sm:$0xff]
    %v3068 = vld [vmem:[%s3 + $0x38] sm:$0xff]
    %v3069 = vld [vmem:[%s3 + $0x40] sm:$0xff]
    %v3070 = vld [vmem:[%s3 + $0x48] sm:$0xff]
    %v3071 = vld [vmem:[%s3 + $0x50] sm:$0xff]
    %v3072 = vld [vmem:[%s3 + $0x58] sm:$0xff]
    %v3073 = vld [vmem:[%s3 + $0x60] sm:$0xff]
    %v3074 = vld [vmem:[%s3 + $0x68] sm:$0xff]
    %v3075 = vld [vmem:[%s3 + $0x70] sm:$0xff]
    %v3076 = vld [vmem:[%s3 + $0x78] sm:$0xff]
    %v3077 = vld [vmem:[%s3 + $0x80] sm:$0xff]
    %v3078 = vld [vmem:[%s3 + $0x88] sm:$0xff]
    %v3079 = vld [vmem:[%s3 + $0x90] sm:$0xff]
    %v3080 = vld [vmem:[%s3 + $0x98] sm:$0xff]
    %v3081 = vld [vmem:[%s3 + $0xa0] sm:$0xff]
    %v3082 = vld [vmem:[%s3 + $0xa8] sm:$0xff]
    %v3083 = vld [vmem:[%s3 + $0xb0] sm:$0xff]
    %v3084 = vld [vmem:[%s3 + $0xb8] sm:$0xff]
    %v3085 = vld [vmem:[%s3 + $0xc0] sm:$0xff]
    %v3086 = vld [vmem:[%s3 + $0xc8] sm:$0xff]
    %v3087 = vld [vmem:[%s3 + $0xd0] sm:$0xff]
    %v3088 = vld [vmem:[%s3 + $0xd8] sm:$0xff]
    %v3089 = vld [vmem:[%s3 + $0xe0] sm:$0xff]
    %v3090 = vld [vmem:[%s3 + $0xe8] sm:$0xff]
    %v3091 = vld [vmem:[%s3 + $0xf0] sm:$0xff]
    %v3092 = vld [vmem:[%s3 + $0xf8] sm:$0xff]
    %v3093 = vld [vmem:[%s3 + $0x100] sm:$0xff]
    %v3094 = vld [vmem:[%s3 + $0x108] sm:$0xff]
    %v3095 = vld [vmem:[%s3 + $0x110] sm:$0xff]
    %v3096 = vld [vmem:[%s3 + $0x118] sm:$0xff]
    %v3097 = vld [vmem:[%s3 + $0x120] sm:$0xff]
    %v3098 = vld [vmem:[%s3 + $0x128] sm:$0xff]
    %v3099 = vld [vmem:[%s3 + $0x130] sm:$0xff]
    %v3100 = vld [vmem:[%s3 + $0x138] sm:$0xff]
    %v3101 = vld [vmem:[%s3 + $0x140] sm:$0xff]
    %v3102 = vld [vmem:[%s3 + $0x148] sm:$0xff]
    %v3103 = vld [vmem:[%s3 + $0x150] sm:$0xff]
    %v3104 = vld [vmem:[%s3 + $0x158] sm:$0xff]
    %v3105 = vld [vmem:[%s3 + $0x160] sm:$0xff]
    %v3106 = vld [vmem:[%s3 + $0x168] sm:$0xff]
    %v3107 = vld [vmem:[%s3 + $0x170] sm:$0xff]
    %v3108 = vld [vmem:[%s3 + $0x178] sm:$0xff]
    %v3109 = vld [vmem:[%s3 + $0x180] sm:$0xff]
    %v3110 = vld [vmem:[%s3 + $0x188] sm:$0xff]
    %v3111 = vld [vmem:[%s3 + $0x190] sm:$0xff]
    %v3112 = vld [vmem:[%s3 + $0x198] sm:$0xff]
    %v3113 = vld [vmem:[%s3 + $0x1a0] sm:$0xff]
    %v3114 = vld [vmem:[%s3 + $0x1a8] sm:$0xff]
    %v3115 = vld [vmem:[%s3 + $0x1b0] sm:$0xff]
    %v3116 = vld [vmem:[%s3 + $0x1b8] sm:$0xff]
    %v3117 = vld [vmem:[%s3 + $0x1c0] sm:$0xff]
    %v3118 = vld [vmem:[%s3 + $0x1c8] sm:$0xff]
    %v3119 = vld [vmem:[%s3 + $0x1d0] sm:$0xff]
    %v3120 = vld [vmem:[%s3 + $0x1d8] sm:$0xff]
    %v3121 = vld [vmem:[%s3 + $0x1e0] sm:$0xff]
    %v3122 = vld [vmem:[%s3 + $0x1e8] sm:$0xff]
    %v3123 = vld [vmem:[%s3 + $0x1f0] sm:$0xff]
    %v3124 = vld [vmem:[%s3 + $0x1f8] sm:$0xff]
    %v3125 = vld [vmem:[%s3 + $0x200] sm:$0xff]
    %v3126 = vld [vmem:[%s3 + $0x208] sm:$0xff]
    %v3127 = vld [vmem:[%s3 + $0x210] sm:$0xff]
    %v3128 = vld [vmem:[%s3 + $0x218] sm:$0xff]
    %v3129 = vld [vmem:[%s3 + $0x220] sm:$0xff]
    %v3130 = vld [vmem:[%s3 + $0x228] sm:$0xff]
    %v3131 = vld [vmem:[%s3 + $0x230] sm:$0xff]
    %v3132 = vld [vmem:[%s3 + $0x238] sm:$0xff]
    %v3133 = vld [vmem:[%s3 + $0x240] sm:$0xff]
    %v3134 = vld [vmem:[%s3 + $0x248] sm:$0xff]
    %v3135 = vld [vmem:[%s3 + $0x250] sm:$0xff]
    %v3136 = vld [vmem:[%s3 + $0x258] sm:$0xff]
    %v3137 = vld [vmem:[%s3 + $0x260] sm:$0xff]
    %v3138 = vld [vmem:[%s3 + $0x268] sm:$0xff]
    %v3139 = vld [vmem:[%s3 + $0x270] sm:$0xff]
    %v3140 = vld [vmem:[%s3 + $0x278] sm:$0xff]
    %v3141 = vld [vmem:[%s3 + $0x280] sm:$0xff]
    %v3142 = vld [vmem:[%s3 + $0x288] sm:$0xff]
    %v3143 = vld [vmem:[%s3 + $0x290] sm:$0xff]
    %v3144 = vld [vmem:[%s3 + $0x298] sm:$0xff]
    %v3145 = vld [vmem:[%s3 + $0x2a0] sm:$0xff]
    %v3146 = vld [vmem:[%s3 + $0x2a8] sm:$0xff]
    %v3147 = vld [vmem:[%s3 + $0x2b0] sm:$0xff]
    %v3148 = vld [vmem:[%s3 + $0x2b8] sm:$0xff]
    %v3149 = vld [vmem:[%s3 + $0x2c0] sm:$0xff]
    %v3150 = vld [vmem:[%s3 + $0x2c8] sm:$0xff]
    %v3151 = vld [vmem:[%s3 + $0x2d0] sm:$0xff]
    %v3152 = vld [vmem:[%s3 + $0x2d8] sm:$0xff]
    %v3153 = vld [vmem:[%s3 + $0x2e0] sm:$0xff]
    %v3154 = vld [vmem:[%s3 + $0x2e8] sm:$0xff]
    %v3155 = vld [vmem:[%s3 + $0x2f0] sm:$0xff]
    %v3156 = vld [vmem:[%s3 + $0x2f8] sm:$0xff]
    %v3157 = vld [vmem:[%s3 + $0x300] sm:$0xff]
    %v3158 = vld [vmem:[%s3 + $0x308] sm:$0xff]
    %v3159 = vld [vmem:[%s3 + $0x310] sm:$0xff]
    %v3160 = vld [vmem:[%s3 + $0x318] sm:$0xff]
    %v3161 = vld [vmem:[%s3 + $0x320] sm:$0xff]
    %v3162 = vld [vmem:[%s3 + $0x328] sm:$0xff]
    %v3163 = vld [vmem:[%s3 + $0x330] sm:$0xff]
    %v3164 = vld [vmem:[%s3 + $0x338] sm:$0xff]
    %v3165 = vld [vmem:[%s3 + $0x340] sm:$0xff]
    %v3166 = vld [vmem:[%s3 + $0x348] sm:$0xff]
    %v3167 = vld [vmem:[%s3 + $0x350] sm:$0xff]
    %v3168 = vld [vmem:[%s3 + $0x358] sm:$0xff]
    %v3169 = vld [vmem:[%s3 + $0x360] sm:$0xff]
    %v3170 = vld [vmem:[%s3 + $0x368] sm:$0xff]
    %v3171 = vld [vmem:[%s3 + $0x370] sm:$0xff]
    %v3172 = vld [vmem:[%s3 + $0x378] sm:$0xff]
    %v3173 = vld [vmem:[%s3 + $0x380] sm:$0xff]
    %v3174 = vld [vmem:[%s3 + $0x388] sm:$0xff]
    %v3175 = vld [vmem:[%s3 + $0x390] sm:$0xff]
    %v3176 = vld [vmem:[%s3 + $0x398] sm:$0xff]
    %v3177 = vld [vmem:[%s3 + $0x3a0] sm:$0xff]
    %v3178 = vld [vmem:[%s3 + $0x3a8] sm:$0xff]
    %v3179 = vld [vmem:[%s3 + $0x3b0] sm:$0xff]
    %v3180 = vld [vmem:[%s3 + $0x3b8] sm:$0xff]
    %v3181 = vld [vmem:[%s3 + $0x3c0] sm:$0xff]
    %v3182 = vld [vmem:[%s3 + $0x3c8] sm:$0xff]
    %v3183 = vld [vmem:[%s3 + $0x3d0] sm:$0xff]
    %v3184 = vld [vmem:[%s3 + $0x3d8] sm:$0xff]
    %v3185 = vld [vmem:[%s3 + $0x3e0] sm:$0xff]
    %v3186 = vld [vmem:[%s3 + $0x3e8] sm:$0xff]
    %v3187 = vld [vmem:[%s3 + $0x3f0] sm:$0xff]
    %v3188 = vld [vmem:[%s3 + $0x3f8] sm:$0xff]
    %v3189 = vld [vmem:[%s3 + $0x400] sm:$0xff]
    %v3190 = vld [vmem:[%s3 + $0x408] sm:$0xff]
    %v3191 = vld [vmem:[%s3 + $0x410] sm:$0xff]
    %v3192 = vld [vmem:[%s3 + $0x418] sm:$0xff]
    %v3193 = vld [vmem:[%s3 + $0x420] sm:$0xff]
    %v3194 = vld [vmem:[%s3 + $0x428] sm:$0xff]
    %v3195 = vld [vmem:[%s3 + $0x430] sm:$0xff]
    %v3196 = vld [vmem:[%s3 + $0x438] sm:$0xff]
    %v3197 = vld [vmem:[%s3 + $0x440] sm:$0xff]
    %v3198 = vld [vmem:[%s3 + $0x448] sm:$0xff]
    %v3199 = vld [vmem:[%s3 + $0x450] sm:$0xff]
    %v3200 = vld [vmem:[%s3 + $0x458] sm:$0xff]
    %v3201 = vld [vmem:[%s3 + $0x460] sm:$0xff]
    %v3202 = vld [vmem:[%s3 + $0x468] sm:$0xff]
    %v3203 = vld [vmem:[%s3 + $0x470] sm:$0xff]
    %v3204 = vld [vmem:[%s3 + $0x478] sm:$0xff]
    %v3205 = vld [vmem:[%s3 + $0x480] sm:$0xff]
    %v3206 = vld [vmem:[%s3 + $0x488] sm:$0xff]
    %v3207 = vld [vmem:[%s3 + $0x490] sm:$0xff]
    %v3208 = vld [vmem:[%s3 + $0x498] sm:$0xff]
    %v3209 = vld [vmem:[%s3 + $0x4a0] sm:$0xff]
    %v3210 = vld [vmem:[%s3 + $0x4a8] sm:$0xff]
    %v3211 = vld [vmem:[%s3 + $0x4b0] sm:$0xff]
    %v3212 = vld [vmem:[%s3 + $0x4b8] sm:$0xff]
    %v3213 = vld [vmem:[%s3 + $0x4c0] sm:$0xff]
    %v3214 = vld [vmem:[%s3 + $0x4c8] sm:$0xff]
    %v3215 = vld [vmem:[%s3 + $0x4d0] sm:$0xff]
    %v3216 = vld [vmem:[%s3 + $0x4d8] sm:$0xff]
    %v3217 = vld [vmem:[%s3 + $0x4e0] sm:$0xff]
    %v3218 = vld [vmem:[%s3 + $0x4e8] sm:$0xff]
    %v3219 = vld [vmem:[%s3 + $0x4f0] sm:$0xff]
    %v3220 = vld [vmem:[%s3 + $0x4f8] sm:$0xff]
    %v3221 = vld [vmem:[%s3 + $0x500] sm:$0xff]
    %v3222 = vld [vmem:[%s3 + $0x508] sm:$0xff]
    %v3223 = vld [vmem:[%s3 + $0x510] sm:$0xff]
    %v3224 = vld [vmem:[%s3 + $0x518] sm:$0xff]
    %v3225 = vld [vmem:[%s3 + $0x520] sm:$0xff]
    %v3226 = vld [vmem:[%s3 + $0x528] sm:$0xff]
    %v3227 = vld [vmem:[%s3 + $0x530] sm:$0xff]
    %v3228 = vld [vmem:[%s3 + $0x538] sm:$0xff]
    %v3229 = vld [vmem:[%s3 + $0x540] sm:$0xff]
    %v3230 = vld [vmem:[%s3 + $0x548] sm:$0xff]
    %v3231 = vld [vmem:[%s3 + $0x550] sm:$0xff]
    %v3232 = vld [vmem:[%s3 + $0x558] sm:$0xff]
    %v3233 = vld [vmem:[%s3 + $0x560] sm:$0xff]
    %v3234 = vld [vmem:[%s3 + $0x568] sm:$0xff]
    %v3235 = vld [vmem:[%s3 + $0x570] sm:$0xff]
    %v3236 = vld [vmem:[%s3 + $0x578] sm:$0xff]
    %v3237 = vld [vmem:[%s3 + $0x580] sm:$0xff]
    %v3238 = vld [vmem:[%s3 + $0x588] sm:$0xff]
    %v3239 = vld [vmem:[%s3 + $0x590] sm:$0xff]
    %v3240 = vld [vmem:[%s3 + $0x598] sm:$0xff]
    %v3241 = vld [vmem:[%s3 + $0x5a0] sm:$0xff]
    %v3242 = vld [vmem:[%s3 + $0x5a8] sm:$0xff]
    %v3243 = vld [vmem:[%s3 + $0x5b0] sm:$0xff]
    %v3244 = vld [vmem:[%s3 + $0x5b8] sm:$0xff]
    %v3245 = vld [vmem:[%s3 + $0x5c0] sm:$0xff]
    %v3246 = vld [vmem:[%s3 + $0x5c8] sm:$0xff]
    %v3247 = vld [vmem:[%s3 + $0x5d0] sm:$0xff]
    %v3248 = vld [vmem:[%s3 + $0x5d8] sm:$0xff]
    %v3249 = vld [vmem:[%s3 + $0x5e0] sm:$0xff]
    %v3250 = vld [vmem:[%s3 + $0x5e8] sm:$0xff]
    %v3251 = vld [vmem:[%s3 + $0x5f0] sm:$0xff]
    %v3252 = vld [vmem:[%s3 + $0x5f8] sm:$0xff]
    %v3253 = vld [vmem:[#allocation8] sm:$0x1]
    %v3255 = vlaneseq
    %v3256 = vshrl.u32 %v3255, 7
    %v3257 = vsub.s32 0, %v3256
    %v3258 = vrot.slane %v3253, %v3257
    %3260 = vmatprep.subr.mxu0 0.0
    %3261 = vmatpush1.msra.mxu0 %v3061
    %3262 = vmatprep.subr.mxu0 0.0
    %3263 = vmatpush1.msra.mxu0 %v3062
    %3264 = vmatprep.subr.mxu0 0.0
    %3265 = vmatpush1.msra.mxu0 %v3063
    %3266 = vmatprep.subr.mxu0 0.0
    %3267 = vmatpush1.msra.mxu0 %v3064
    %3268 = vmatprep.subr.mxu0 0.0
    %3269 = vmatpush1.msra.mxu0 %v3065
    %3270 = vmatprep.subr.mxu0 0.0
    %3271 = vmatpush1.msra.mxu0 %v3066
    %3272 = vmatprep.subr.mxu0 0.0
    %3273 = vmatpush1.msra.mxu0 %v3067
    %3274 = vmatprep.subr.mxu0 0.0
    %3275 = vmatpush1.msra.mxu0 %v3068
    %3276 = vmatprep.subr.mxu0 0.0
    %3277 = vmatpush1.msra.mxu0 %v3069
    %3278 = vmatprep.subr.mxu0 0.0
    %3279 = vmatpush1.msra.mxu0 %v3070
    %3280 = vmatprep.subr.mxu0 0.0
    %3281 = vmatpush1.msra.mxu0 %v3071
    %3282 = vmatprep.subr.mxu0 0.0
    %3283 = vmatpush1.msra.mxu0 %v3072
    %3284 = vmatprep.subr.mxu0 0.0
    %3285 = vmatpush1.msra.mxu0 %v3073
    %3286 = vmatprep.subr.mxu0 0.0
    %3287 = vmatpush1.msra.mxu0 %v3074
    %3288 = vmatprep.subr.mxu0 0.0
    %3289 = vmatpush1.msra.mxu0 %v3075
    %3290 = vmatprep.subr.mxu0 0.0
    %3291 = vmatpush1.msra.mxu0 %v3076
    %3292 = vmatprep.subr.mxu0 0.0
    %3293 = vmatpush1.msra.mxu0 %v3077
    %3294 = vmatprep.subr.mxu0 0.0
    %3295 = vmatpush1.msra.mxu0 %v3078
    %3296 = vmatprep.subr.mxu0 0.0
    %3297 = vmatpush1.msra.mxu0 %v3079
    %3298 = vmatprep.subr.mxu0 0.0
    %3299 = vmatpush1.msra.mxu0 %v3080
    %3300 = vmatprep.subr.mxu0 0.0
    %3301 = vmatpush1.msra.mxu0 %v3081
    %3302 = vmatprep.subr.mxu0 0.0
    %3303 = vmatpush1.msra.mxu0 %v3082
    %3304 = vmatprep.subr.mxu0 0.0
    %3305 = vmatpush1.msra.mxu0 %v3083
    %3306 = vmatprep.subr.mxu0 0.0
    %3307 = vmatpush1.msra.mxu0 %v3084
    %3308 = vmatprep.subr.mxu0 0.0
    %3309 = vmatpush1.msra.mxu0 %v3085
    %3310 = vmatprep.subr.mxu0 0.0
    %3311 = vmatpush1.msra.mxu0 %v3086
    %3312 = vmatprep.subr.mxu0 0.0
    %3313 = vmatpush1.msra.mxu0 %v3087
    %3314 = vmatprep.subr.mxu0 0.0
    %3315 = vmatpush1.msra.mxu0 %v3088
    %3316 = vmatprep.subr.mxu0 0.0
    %3317 = vmatpush1.msra.mxu0 %v3089
    %3318 = vmatprep.subr.mxu0 0.0
    %3319 = vmatpush1.msra.mxu0 %v3090
    %3320 = vmatprep.subr.mxu0 0.0
    %3321 = vmatpush1.msra.mxu0 %v3091
    %3322 = vmatprep.subr.mxu0 0.0
    %3323 = vmatpush1.msra.mxu0 %v3092
    %3324 = vmatprep.mubr.f32.mxu0 %v3050
    %3325 = vmatmul.mubr.f32.gmra.mrb[0].mxu0 %v3049
    %v3326 = vpop.f32.mrb[0].mxu0
    %v3327 = vadd.f32 %v3258, %v3326
    %v3328 = vpop.f32.mrb[0].mxu0
    %3329 = vdwg.mxu0
    %3330 = vmatprep.subr.mxu0 0.0
    %3331 = vmatpush1.msra.mxu0 %v3093
    %3332 = vmatprep.subr.mxu0 0.0
    %3333 = vmatpush1.msra.mxu0 %v3094
    %3334 = vmatprep.subr.mxu0 0.0
    %3335 = vmatpush1.msra.mxu0 %v3095
    %3336 = vmatprep.subr.mxu0 0.0
    %3337 = vmatpush1.msra.mxu0 %v3096
    %3338 = vmatprep.subr.mxu0 0.0
    %3339 = vmatpush1.msra.mxu0 %v3097
    %3340 = vmatprep.subr.mxu0 0.0
    %3341 = vmatpush1.msra.mxu0 %v3098
    %3342 = vmatprep.subr.mxu0 0.0
    %3343 = vmatpush1.msra.mxu0 %v3099
    %3344 = vmatprep.subr.mxu0 0.0
    %3345 = vmatpush1.msra.mxu0 %v3100
    %3346 = vmatprep.subr.mxu0 0.0
    %3347 = vmatpush1.msra.mxu0 %v3101
    %3348 = vmatprep.subr.mxu0 0.0
    %3349 = vmatpush1.msra.mxu0 %v3102
    %3350 = vmatprep.subr.mxu0 0.0
    %3351 = vmatpush1.msra.mxu0 %v3103
    %3352 = vmatprep.subr.mxu0 0.0
    %3353 = vmatpush1.msra.mxu0 %v3104
    %3354 = vmatprep.subr.mxu0 0.0
    %3355 = vmatpush1.msra.mxu0 %v3105
    %3356 = vmatprep.subr.mxu0 0.0
    %3357 = vmatpush1.msra.mxu0 %v3106
    %3358 = vmatprep.subr.mxu0 0.0
    %3359 = vmatpush1.msra.mxu0 %v3107
    %3360 = vmatprep.subr.mxu0 0.0
    %3361 = vmatpush1.msra.mxu0 %v3108
    %3362 = vmatprep.subr.mxu0 0.0
    %3363 = vmatpush1.msra.mxu0 %v3109
    %3364 = vmatprep.subr.mxu0 0.0
    %3365 = vmatpush1.msra.mxu0 %v3110
    %3366 = vmatprep.subr.mxu0 0.0
    %3367 = vmatpush1.msra.mxu0 %v3111
    %3368 = vmatprep.subr.mxu0 0.0
    %3369 = vmatpush1.msra.mxu0 %v3112
    %3370 = vmatprep.subr.mxu0 0.0
    %3371 = vmatpush1.msra.mxu0 %v3113
    %3372 = vmatprep.subr.mxu0 0.0
    %3373 = vmatpush1.msra.mxu0 %v3114
    %3374 = vmatprep.subr.mxu0 0.0
    %3375 = vmatpush1.msra.mxu0 %v3115
    %3376 = vmatprep.subr.mxu0 0.0
    %3377 = vmatpush1.msra.mxu0 %v3116
    %3378 = vmatprep.subr.mxu0 0.0
    %3379 = vmatpush1.msra.mxu0 %v3117
    %3380 = vmatprep.subr.mxu0 0.0
    %3381 = vmatpush1.msra.mxu0 %v3118
    %3382 = vmatprep.subr.mxu0 0.0
    %3383 = vmatpush1.msra.mxu0 %v3119
    %3384 = vmatprep.subr.mxu0 0.0
    %3385 = vmatpush1.msra.mxu0 %v3120
    %3386 = vmatprep.subr.mxu0 0.0
    %3387 = vmatpush1.msra.mxu0 %v3121
    %3388 = vmatprep.subr.mxu0 0.0
    %3389 = vmatpush1.msra.mxu0 %v3122
    %3390 = vmatprep.subr.mxu0 0.0
    %3391 = vmatpush1.msra.mxu0 %v3123
    %3392 = vmatprep.subr.mxu0 0.0
    %3393 = vmatpush1.msra.mxu0 %v3124
    %3394 = vmatprep.mubr.f32.mxu0 %v3052
    %3395 = vmatmul.mubr.f32.gmra.mrb[0].mxu0 %v3051
    %v3396 = vpop.f32.mrb[0].mxu0
    %v3397 = vadd.f32 %v3327, %v3396
    %v3398 = vpop.f32.mrb[0].mxu0
    %3399 = vdwg.mxu0
    %3400 = vmatprep.subr.mxu0 0.0
    %3401 = vmatpush1.msra.mxu0 %v3125
    %3402 = vmatprep.subr.mxu0 0.0
    %3403 = vmatpush1.msra.mxu0 %v3126
    %3404 = vmatprep.subr.mxu0 0.0
    %3405 = vmatpush1.msra.mxu0 %v3127
    %3406 = vmatprep.subr.mxu0 0.0
    %3407 = vmatpush1.msra.mxu0 %v3128
    %3408 = vmatprep.subr.mxu0 0.0
    %3409 = vmatpush1.msra.mxu0 %v3129
    %3410 = vmatprep.subr.mxu0 0.0
    %3411 = vmatpush1.msra.mxu0 %v3130
    %3412 = vmatprep.subr.mxu0 0.0
    %3413 = vmatpush1.msra.mxu0 %v3131
    %3414 = vmatprep.subr.mxu0 0.0
    %3415 = vmatpush1.msra.mxu0 %v3132
    %3416 = vmatprep.subr.mxu0 0.0
    %3417 = vmatpush1.msra.mxu0 %v3133
    %3418 = vmatprep.subr.mxu0 0.0
    %3419 = vmatpush1.msra.mxu0 %v3134
    %3420 = vmatprep.subr.mxu0 0.0
    %3421 = vmatpush1.msra.mxu0 %v3135
    %3422 = vmatprep.subr.mxu0 0.0
    %3423 = vmatpush1.msra.mxu0 %v3136
    %3424 = vmatprep.subr.mxu0 0.0
    %3425 = vmatpush1.msra.mxu0 %v3137
    %3426 = vmatprep.subr.mxu0 0.0
    %3427 = vmatpush1.msra.mxu0 %v3138
    %3428 = vmatprep.subr.mxu0 0.0
    %3429 = vmatpush1.msra.mxu0 %v3139
    %3430 = vmatprep.subr.mxu0 0.0
    %3431 = vmatpush1.msra.mxu0 %v3140
    %3432 = vmatprep.subr.mxu0 0.0
    %3433 = vmatpush1.msra.mxu0 %v3141
    %3434 = vmatprep.subr.mxu0 0.0
    %3435 = vmatpush1.msra.mxu0 %v3142
    %3436 = vmatprep.subr.mxu0 0.0
    %3437 = vmatpush1.msra.mxu0 %v3143
    %3438 = vmatprep.subr.mxu0 0.0
    %3439 = vmatpush1.msra.mxu0 %v3144
    %3440 = vmatprep.subr.mxu0 0.0
    %3441 = vmatpush1.msra.mxu0 %v3145
    %3442 = vmatprep.subr.mxu0 0.0
    %3443 = vmatpush1.msra.mxu0 %v3146
    %3444 = vmatprep.subr.mxu0 0.0
    %3445 = vmatpush1.msra.mxu0 %v3147
    %3446 = vmatprep.subr.mxu0 0.0
    %3447 = vmatpush1.msra.mxu0 %v3148
    %3448 = vmatprep.subr.mxu0 0.0
    %3449 = vmatpush1.msra.mxu0 %v3149
    %3450 = vmatprep.subr.mxu0 0.0
    %3451 = vmatpush1.msra.mxu0 %v3150
    %3452 = vmatprep.subr.mxu0 0.0
    %3453 = vmatpush1.msra.mxu0 %v3151
    %3454 = vmatprep.subr.mxu0 0.0
    %3455 = vmatpush1.msra.mxu0 %v3152
    %3456 = vmatprep.subr.mxu0 0.0
    %3457 = vmatpush1.msra.mxu0 %v3153
    %3458 = vmatprep.subr.mxu0 0.0
    %3459 = vmatpush1.msra.mxu0 %v3154
    %3460 = vmatprep.subr.mxu0 0.0
    %3461 = vmatpush1.msra.mxu0 %v3155
    %3462 = vmatprep.subr.mxu0 0.0
    %3463 = vmatpush1.msra.mxu0 %v3156
    %3464 = vmatprep.mubr.f32.mxu0 %v3054
    %3465 = vmatmul.mubr.f32.gmra.mrb[0].mxu0 %v3053
    %v3466 = vpop.f32.mrb[0].mxu0
    %v3467 = vadd.f32 %v3397, %v3466
    %v3468 = vpop.f32.mrb[0].mxu0
    %3469 = vdwg.mxu0
    %3470 = vmatprep.subr.mxu0 0.0
    %3471 = vmatpush1.msra.mxu0 %v3157
    %3472 = vmatprep.subr.mxu0 0.0
    %3473 = vmatpush1.msra.mxu0 %v3158
    %3474 = vmatprep.subr.mxu0 0.0
    %3475 = vmatpush1.msra.mxu0 %v3159
    %3476 = vmatprep.subr.mxu0 0.0
    %3477 = vmatpush1.msra.mxu0 %v3160
    %3478 = vmatprep.subr.mxu0 0.0
    %3479 = vmatpush1.msra.mxu0 %v3161
    %3480 = vmatprep.subr.mxu0 0.0
    %3481 = vmatpush1.msra.mxu0 %v3162
    %3482 = vmatprep.subr.mxu0 0.0
    %3483 = vmatpush1.msra.mxu0 %v3163
    %3484 = vmatprep.subr.mxu0 0.0
    %3485 = vmatpush1.msra.mxu0 %v3164
    %3486 = vmatprep.subr.mxu0 0.0
    %3487 = vmatpush1.msra.mxu0 %v3165
    %3488 = vmatprep.subr.mxu0 0.0
    %3489 = vmatpush1.msra.mxu0 %v3166
    %3490 = vmatprep.subr.mxu0 0.0
    %3491 = vmatpush1.msra.mxu0 %v3167
    %3492 = vmatprep.subr.mxu0 0.0
    %3493 = vmatpush1.msra.mxu0 %v3168
    %3494 = vmatprep.subr.mxu0 0.0
    %3495 = vmatpush1.msra.mxu0 %v3169
    %3496 = vmatprep.subr.mxu0 0.0
    %3497 = vmatpush1.msra.mxu0 %v3170
    %3498 = vmatprep.subr.mxu0 0.0
    %3499 = vmatpush1.msra.mxu0 %v3171
    %3500 = vmatprep.subr.mxu0 0.0
    %3501 = vmatpush1.msra.mxu0 %v3172
    %3502 = vmatprep.subr.mxu0 0.0
    %3503 = vmatpush1.msra.mxu0 %v3173
    %3504 = vmatprep.subr.mxu0 0.0
    %3505 = vmatpush1.msra.mxu0 %v3174
    %3506 = vmatprep.subr.mxu0 0.0
    %3507 = vmatpush1.msra.mxu0 %v3175
    %3508 = vmatprep.subr.mxu0 0.0
    %3509 = vmatpush1.msra.mxu0 %v3176
    %3510 = vmatprep.subr.mxu0 0.0
    %3511 = vmatpush1.msra.mxu0 %v3177
    %3512 = vmatprep.subr.mxu0 0.0
    %3513 = vmatpush1.msra.mxu0 %v3178
    %3514 = vmatprep.subr.mxu0 0.0
    %3515 = vmatpush1.msra.mxu0 %v3179
    %3516 = vmatprep.subr.mxu0 0.0
    %3517 = vmatpush1.msra.mxu0 %v3180
    %3518 = vmatprep.subr.mxu0 0.0
    %3519 = vmatpush1.msra.mxu0 %v3181
    %3520 = vmatprep.subr.mxu0 0.0
    %3521 = vmatpush1.msra.mxu0 %v3182
    %3522 = vmatprep.subr.mxu0 0.0
    %3523 = vmatpush1.msra.mxu0 %v3183
    %3524 = vmatprep.subr.mxu0 0.0
    %3525 = vmatpush1.msra.mxu0 %v3184
    %3526 = vmatprep.subr.mxu0 0.0
    %3527 = vmatpush1.msra.mxu0 %v3185
    %3528 = vmatprep.subr.mxu0 0.0
    %3529 = vmatpush1.msra.mxu0 %v3186
    %3530 = vmatprep.subr.mxu0 0.0
    %3531 = vmatpush1.msra.mxu0 %v3187
    %3532 = vmatprep.subr.mxu0 0.0
    %3533 = vmatpush1.msra.mxu0 %v3188
    %3534 = vmatprep.mubr.f32.mxu0 %v3056
    %3535 = vmatmul.mubr.f32.gmra.mrb[0].mxu0 %v3055
    %v3536 = vpop.f32.mrb[0].mxu0
    %v3537 = vadd.f32 %v3467, %v3536
    %v3538 = vpop.f32.mrb[0].mxu0
    %3539 = vdwg.mxu0
    %3540 = vmatprep.subr.mxu0 0.0
    %3541 = vmatpush1.msra.mxu0 %v3189
    %3542 = vmatprep.subr.mxu0 0.0
    %3543 = vmatpush1.msra.mxu0 %v3190
    %3544 = vmatprep.subr.mxu0 0.0
    %3545 = vmatpush1.msra.mxu0 %v3191
    %3546 = vmatprep.subr.mxu0 0.0
    %3547 = vmatpush1.msra.mxu0 %v3192
    %3548 = vmatprep.subr.mxu0 0.0
    %3549 = vmatpush1.msra.mxu0 %v3193
    %3550 = vmatprep.subr.mxu0 0.0
    %3551 = vmatpush1.msra.mxu0 %v3194
    %3552 = vmatprep.subr.mxu0 0.0
    %3553 = vmatpush1.msra.mxu0 %v3195
    %3554 = vmatprep.subr.mxu0 0.0
    %3555 = vmatpush1.msra.mxu0 %v3196
    %3556 = vmatprep.subr.mxu0 0.0
    %3557 = vmatpush1.msra.mxu0 %v3197
    %3558 = vmatprep.subr.mxu0 0.0
    %3559 = vmatpush1.msra.mxu0 %v3198
    %3560 = vmatprep.subr.mxu0 0.0
    %3561 = vmatpush1.msra.mxu0 %v3199
    %3562 = vmatprep.subr.mxu0 0.0
    %3563 = vmatpush1.msra.mxu0 %v3200
    %3564 = vmatprep.subr.mxu0 0.0
    %3565 = vmatpush1.msra.mxu0 %v3201
    %3566 = vmatprep.subr.mxu0 0.0
    %3567 = vmatpush1.msra.mxu0 %v3202
    %3568 = vmatprep.subr.mxu0 0.0
    %3569 = vmatpush1.msra.mxu0 %v3203
    %3570 = vmatprep.subr.mxu0 0.0
    %3571 = vmatpush1.msra.mxu0 %v3204
    %3572 = vmatprep.subr.mxu0 0.0
    %3573 = vmatpush1.msra.mxu0 %v3205
    %3574 = vmatprep.subr.mxu0 0.0
    %3575 = vmatpush1.msra.mxu0 %v3206
    %3576 = vmatprep.subr.mxu0 0.0
    %3577 = vmatpush1.msra.mxu0 %v3207
    %3578 = vmatprep.subr.mxu0 0.0
    %3579 = vmatpush1.msra.mxu0 %v3208
    %3580 = vmatprep.subr.mxu0 0.0
    %3581 = vmatpush1.msra.mxu0 %v3209
    %3582 = vmatprep.subr.mxu0 0.0
    %3583 = vmatpush1.msra.mxu0 %v3210
    %3584 = vmatprep.subr.mxu0 0.0
    %3585 = vmatpush1.msra.mxu0 %v3211
    %3586 = vmatprep.subr.mxu0 0.0
    %3587 = vmatpush1.msra.mxu0 %v3212
    %3588 = vmatprep.subr.mxu0 0.0
    %3589 = vmatpush1.msra.mxu0 %v3213
    %3590 = vmatprep.subr.mxu0 0.0
    %3591 = vmatpush1.msra.mxu0 %v3214
    %3592 = vmatprep.subr.mxu0 0.0
    %3593 = vmatpush1.msra.mxu0 %v3215
    %3594 = vmatprep.subr.mxu0 0.0
    %3595 = vmatpush1.msra.mxu0 %v3216
    %3596 = vmatprep.subr.mxu0 0.0
    %3597 = vmatpush1.msra.mxu0 %v3217
    %3598 = vmatprep.subr.mxu0 0.0
    %3599 = vmatpush1.msra.mxu0 %v3218
    %3600 = vmatprep.subr.mxu0 0.0
    %3601 = vmatpush1.msra.mxu0 %v3219
    %3602 = vmatprep.subr.mxu0 0.0
    %3603 = vmatpush1.msra.mxu0 %v3220
    %3604 = vmatprep.mubr.f32.mxu0 %v3058
    %3605 = vmatmul.mubr.f32.gmra.mrb[0].mxu0 %v3057
    %v3606 = vpop.f32.mrb[0].mxu0
    %v3607 = vadd.f32 %v3537, %v3606
    %v3608 = vpop.f32.mrb[0].mxu0
    %3609 = vdwg.mxu0
    %3610 = vmatprep.subr.mxu0 0.0
    %3611 = vmatpush1.msra.mxu0 %v3221
    %3612 = vmatprep.subr.mxu0 0.0
    %3613 = vmatpush1.msra.mxu0 %v3222
    %3614 = vmatprep.subr.mxu0 0.0
    %3615 = vmatpush1.msra.mxu0 %v3223
    %3616 = vmatprep.subr.mxu0 0.0
    %3617 = vmatpush1.msra.mxu0 %v3224
    %3618 = vmatprep.subr.mxu0 0.0
    %3619 = vmatpush1.msra.mxu0 %v3225
    %3620 = vmatprep.subr.mxu0 0.0
    %3621 = vmatpush1.msra.mxu0 %v3226
    %3622 = vmatprep.subr.mxu0 0.0
    %3623 = vmatpush1.msra.mxu0 %v3227
    %3624 = vmatprep.subr.mxu0 0.0
    %3625 = vmatpush1.msra.mxu0 %v3228
    %3626 = vmatprep.subr.mxu0 0.0
    %3627 = vmatpush1.msra.mxu0 %v3229
    %3628 = vmatprep.subr.mxu0 0.0
    %3629 = vmatpush1.msra.mxu0 %v3230
    %3630 = vmatprep.subr.mxu0 0.0
    %3631 = vmatpush1.msra.mxu0 %v3231
    %3632 = vmatprep.subr.mxu0 0.0
    %3633 = vmatpush1.msra.mxu0 %v3232
    %3634 = vmatprep.subr.mxu0 0.0
    %3635 = vmatpush1.msra.mxu0 %v3233
    %3636 = vmatprep.subr.mxu0 0.0
    %3637 = vmatpush1.msra.mxu0 %v3234
    %3638 = vmatprep.subr.mxu0 0.0
    %3639 = vmatpush1.msra.mxu0 %v3235
    %3640 = vmatprep.subr.mxu0 0.0
    %3641 = vmatpush1.msra.mxu0 %v3236
    %3642 = vmatprep.subr.mxu0 0.0
    %3643 = vmatpush1.msra.mxu0 %v3237
    %3644 = vmatprep.subr.mxu0 0.0
    %3645 = vmatpush1.msra.mxu0 %v3238
    %3646 = vmatprep.subr.mxu0 0.0
    %3647 = vmatpush1.msra.mxu0 %v3239
    %3648 = vmatprep.subr.mxu0 0.0
    %3649 = vmatpush1.msra.mxu0 %v3240
    %3650 = vmatprep.subr.mxu0 0.0
    %3651 = vmatpush1.msra.mxu0 %v3241
    %3652 = vmatprep.subr.mxu0 0.0
    %3653 = vmatpush1.msra.mxu0 %v3242
    %3654 = vmatprep.subr.mxu0 0.0
    %3655 = vmatpush1.msra.mxu0 %v3243
    %3656 = vmatprep.subr.mxu0 0.0
    %3657 = vmatpush1.msra.mxu0 %v3244
    %3658 = vmatprep.subr.mxu0 0.0
    %3659 = vmatpush1.msra.mxu0 %v3245
    %3660 = vmatprep.subr.mxu0 0.0
    %3661 = vmatpush1.msra.mxu0 %v3246
    %3662 = vmatprep.subr.mxu0 0.0
    %3663 = vmatpush1.msra.mxu0 %v3247
    %3664 = vmatprep.subr.mxu0 0.0
    %3665 = vmatpush1.msra.mxu0 %v3248
    %3666 = vmatprep.subr.mxu0 0.0
    %3667 = vmatpush1.msra.mxu0 %v3249
    %3668 = vmatprep.subr.mxu0 0.0
    %3669 = vmatpush1.msra.mxu0 %v3250
    %3670 = vmatprep.subr.mxu0 0.0
    %3671 = vmatpush1.msra.mxu0 %v3251
    %3672 = vmatprep.subr.mxu0 0.0
    %3673 = vmatpush1.msra.mxu0 %v3252
    %3674 = vmatprep.mubr.f32.mxu0 %v3060
    %3675 = vmatmul.mubr.f32.gmra.mrb[0].mxu0 %v3059
    %v3676 = vpop.f32.mrb[0].mxu0
    %v3677 = vadd.f32 %v3607, %v3676
    %v3678 = vpop.f32.mrb[0].mxu0
    %3679 = vdwg.mxu0
    %vm3680 = vcmask 80896
    %3681 = vst.msk [vmem:[#allocation10] sm:$0xff] %vm3680, %v3677
    // Predicated region
    $region38: #{tpu_custom_call.1} parent=1 // pred_check
      _
    $region39: #{tpu_custom_call.1} parent=1 // pred_check_branch
      %3683 = sbr.rel (0) target = $region41
    $region40: #{tpu_custom_call.1} parent=1 // pred_region
      %s3685 = ssub.s32 128, 128
      %3686 = vsyncadd [#allocation4], %s3685
      %s3688 = sshll.u32 [#allocation10], 4
      %s3689 = int_to_ptr.vmem [resolvable:$true] %s3688
      %3691 = dma.vmem_to_hbm [thread:$0]  %s3689, 128, %s5, [#allocation4]
    $region41: #{tpu_custom_call.1} parent=1 // pred_fallthru
      _
    // Predicated region
    $region42: #{tpu_custom_call.1} parent=1 // pred_check
      _
    $region43: #{tpu_custom_call.1} parent=1 // pred_check_branch
      %3693 = sbr.rel (0) target = $region45
    $region44: #{tpu_custom_call.1} parent=1 // pred_region
      %3694 = dma.done [#allocation4], 128
    $region45: #{tpu_custom_call.1} parent=1 // pred_fallthru
      _
    %3695 = vsyncpa [#allocation3], 1
    %3696 = vsyncpa [#allocation6], 1
    %3697 = vsyncpa [#allocation9], 1
    %3698 = vsyncpa [#allocation4], 1

</llo_original>
